<compile_context>
chip_gen: v7x
topology: tpu7x:2x2x1
jax: 0.10.0
libtpu: 0.0.40
codegen_flags: <defaults>
</compile_context>

<pallas_src>
import functools

import jax
import jax.numpy as jnp
import numpy as np
from jax.experimental import pallas as pl
from jax.experimental.pallas import tpu as pltpu

_INV_SQRT2 = 0.7071067811865476
_EPS = 1e-5  # nn.InstanceNorm2d default eps


def _erf_poly(v):
    """Abramowitz & Stegun 7.1.26 erf approximation (|err| <= 1.5e-7).

    Only mul/add/div/abs/exp/select -> lowers cleanly on TPU; exp is EUP work.
    """
    av = jnp.abs(v)
    t = 1.0 / (1.0 + 0.3275911 * av)
    poly = t * (0.254829592 + t * (-0.284496736 + t * (1.421413741
             + t * (-1.453152027 + t * 1.061405429))))
    e = 1.0 - poly * jnp.exp(-av * av)
    return jnp.where(v >= 0.0, e, -e)


def _gelu(v):
    # exact GELU (PyTorch nn.GELU(), approximate='none') to within ~1e-7
    return 0.5 * v * (1.0 + _erf_poly(v * _INV_SQRT2))


def _gelu_ref(v):
    return 0.5 * v * (1.0 + jax.lax.erf(v * _INV_SQRT2))


def spf_unit_kernel(x_ref, mask_ref, p_ref, pt_ref,
                    w1_ref, b1_ref, w2_ref, b2_ref,
                    wid_ref, bid_ref, wf1_ref, bf1_ref, wf2_ref, bf2_ref,
                    o_ref, *, W, HW):
    x = x_ref[0]                       # (Cin_pad, L), L = Bt*H*W, lane-dense
    L = x.shape[-1]
    inv_hw = 1.0 / HW
    pad = W + 1
    masks = mask_ref[...]              # (9, 1, L) halo masks (precomputed, hoisted)
    pool = p_ref[...]                  # (L, Bt)   per-sample pooling matrix
    bcast = pt_ref[...]                # (Bt, L)   per-sample broadcast matrix

    def conv3x3(v, w_ref, b_ref):
        # im2col: stack the 9 shifted+masked taps and issue ONE MXU dot.
        C = v.shape[0]
        z = jnp.zeros((C, pad), jnp.float32)
        vp = jnp.concatenate([z, v, z], axis=1)          # (C, L + 2*pad)
        patches = []
        for k in range(9):
            dh, dw = divmod(k, 3)
            s = (dh - 1) * W + (dw - 1)                  # flat source offset
            if s == 0:
                patches.append(v)
            else:
                shifted = vp[:, pad + s: pad + s + L]    # static lane slice
                patches.append(shifted * masks[k])
        pat = jnp.concatenate(patches, axis=0)           # (9*C, L)
        return jnp.dot(w_ref[...], pat,
                       preferred_element_type=jnp.float32) + b_ref[...]

    def instance_norm(v):
        # Per-sample spatial stats via pooling matmuls; two-pass variance.
        mu = jnp.dot(v, pool, preferred_element_type=jnp.float32) * inv_hw   # (C, Bt)
        d = v - jnp.dot(mu, bcast, preferred_element_type=jnp.float32)       # (C, L)
        var = jnp.dot(d * d, pool, preferred_element_type=jnp.float32) * inv_hw
        inv = jax.lax.rsqrt(var + _EPS)
        return d * jnp.dot(inv, bcast, preferred_element_type=jnp.float32)

    # conv_block1 / conv_block2: 3x3 conv + InstanceNorm + GELU
    y = _gelu(instance_norm(conv3x3(x, w1_ref, b1_ref)))
    y2 = _gelu(instance_norm(conv3x3(y, w2_ref, b2_ref)))      # _x

    # identity_conv (1x1), resize_type='none'
    xid = jnp.dot(wid_ref[...], y2,
                  preferred_element_type=jnp.float32) + bid_ref[...]

    # channel attention: GAP -> fc1 -> GELU -> fc2 -> sigmoid
    pooled = jnp.dot(y2, pool, preferred_element_type=jnp.float32) * inv_hw  # (Co, Bt)
    h1 = _gelu(jnp.dot(wf1_ref[...], pooled,
                       preferred_element_type=jnp.float32) + bf1_ref[...])   # (Ch, Bt)
    h2 = jnp.dot(wf2_ref[...], h1,
                 preferred_element_type=jnp.float32) + bf2_ref[...]          # (Co, Bt)
    attn = 1.0 / (1.0 + jnp.exp(-h2))                                        # (Co, Bt)
    o_ref[0] = xid * jnp.dot(attn, bcast, preferred_element_type=jnp.float32)


def spf_unit_forward(Fi, Fsp, params, *, batch_tile=None):
    """Pallas implementation of SPFUnit.forward (resize_type='none')."""
    x = jnp.concatenate([Fi, Fsp], axis=1)                 # (B, Cin, H, W)
    B, Cin, H, W = x.shape
    HW = H * W
    Co = params['w1'].shape[0]
    Ch = params['wf1'].shape[0]

    Bt = B if batch_tile is None else batch_tile
    assert B % Bt == 0, "batch must be divisible by batch_tile"
    n_tiles = B // Bt
    L = Bt * HW

    # Pad conv1 input channels so each im2col piece is sublane-aligned.
    cin_pad = ((Cin + 7) // 8) * 8
    if cin_pad != Cin:
        x = jnp.pad(x, ((0, 0), (0, cin_pad - Cin), (0, 0), (0, 0)))

    # Lane-dense, batch-folded layout: (n_tiles, C, Bt*HW), lane = b*HW + q.
    xl = (x.reshape(n_tiles, Bt, cin_pad, HW)
            .transpose(0, 2, 1, 3)
            .reshape(n_tiles, cin_pad, L))

    # ----- constant side inputs (built once on host) -----------------------
    q = np.arange(HW)
    hh, ww = q // W, q % W
    masks = np.empty((9, HW), np.float32)
    for k in range(9):
        dh, dw = divmod(k, 3)
        oh, ow = dh - 1, dw - 1
        m = np.ones(HW, dtype=bool)
        if oh < 0:
            m &= (hh + oh) >= 0
        if oh > 0:
            m &= (hh + oh) < H
        if ow < 0:
            m &= (ww + ow) >= 0
        if ow > 0:
            m &= (ww + ow) < W
        masks[k] = m.astype(np.float32)
    mask_l = jnp.asarray(np.tile(masks, (1, Bt))[:, None, :])        # (9, 1, L)

    pool_np = (np.arange(L)[:, None] // HW
               == np.arange(Bt)[None, :]).astype(np.float32)
    pool = jnp.asarray(pool_np)                                      # (L, Bt)
    bcast = jnp.asarray(pool_np.T)                                   # (Bt, L)

    def flat_conv_w(w, ci_pad):
        co, ci = w.shape[0], w.shape[1]
        wt = jnp.transpose(w, (0, 2, 3, 1))                          # (Co,3,3,Ci)
        if ci_pad != ci:
            wt = jnp.pad(wt, ((0, 0), (0, 0), (0, 0), (0, ci_pad - ci)))
        return wt.reshape(co, 9 * ci_pad)

    w1f = flat_conv_w(params['w1'], cin_pad)                         # (Co, 9*cin_pad)
    w2f = flat_conv_w(params['w2'], Co)                              # (Co, 9*Co)
    wid = params['wid'].reshape(Co, Co)
    wf1 = params['wf1']                                              # (Ch, Co)
    wf2 = params['wf2']                                              # (Co, Ch)
    b1 = params['b1'][:, None]
    b2 = params['b2'][:, None]
    bid = params['bid'][:, None]
    bf1 = params['bf1'][:, None]
    bf2 = params['bf2'][:, None]

    def const_spec(a):
        return pl.BlockSpec(a.shape, lambda t, _n=a.ndim: (0,) * _n)

    param_elems = sum(int(a.size) for a in
                      (mask_l, pool, bcast, w1f, b1, w2f, b2,
                       wid, bid, wf1, bf1, wf2, bf2))
    flops_tile = (2 * L * Co * (9 * cin_pad + 9 * Co + Co)
                  + 16 * Co * L * Bt + 4 * Co * Ch * Bt)
    cost = pl.CostEstimate(
        flops=int(n_tiles * flops_tile),
        transcendentals=int(n_tiles * (2 * Co * L + (Ch + Co) * Bt)),
        bytes_accessed=int(4 * (B * (cin_pad + Co) * HW + param_elems)))

    out = pl.pallas_call(
        functools.partial(spf_unit_kernel, W=W, HW=HW),
        out_shape=jax.ShapeDtypeStruct((n_tiles, Co, L), jnp.float32),
        grid=(n_tiles,),
        in_specs=[
            pl.BlockSpec((1, cin_pad, L), lambda t: (t, 0, 0)),
            const_spec(mask_l), const_spec(pool), const_spec(bcast),
            const_spec(w1f), const_spec(b1), const_spec(w2f), const_spec(b2),
            const_spec(wid), const_spec(bid),
            const_spec(wf1), const_spec(bf1), const_spec(wf2), const_spec(bf2),
        ],
        out_specs=pl.BlockSpec((1, Co, L), lambda t: (t, 0, 0)),
        # NOTE: on v7x (2 TCs/chip) use batch_tile=B//2 with CORE_PARALLEL on
        # this axis to shard batch tiles across TensorCores; on single-TC
        # v5e/v6e folding the whole batch into one step is preferred.
        compiler_params=pltpu.CompilerParams(
            dimension_semantics=("parallel",)),
        cost_estimate=cost,
    )(xl, mask_l, pool, bcast, w1f, b1, w2f, b2, wid, bid, wf1, bf1, wf2, bf2)

    return (out.reshape(n_tiles, Co, Bt, HW)
               .transpose(0, 2, 1, 3)
               .reshape(B, Co, H, W))


def init_params(key, in_channels, out_channels):
    ch = out_channels // 2
    ks = jax.random.split(key, 10)

    def u(k, shape, fan_in):
        b = 1.0 / np.sqrt(fan_in)
        return jax.random.uniform(k, shape, jnp.float32, -b, b)

    return dict(
        w1=u(ks[0], (out_channels, in_channels, 3, 3), in_channels * 9),
        b1=u(ks[1], (out_channels,), in_channels * 9),
        w2=u(ks[2], (out_channels, out_channels, 3, 3), out_channels * 9),
        b2=u(ks[3], (out_channels,), out_channels * 9),
        wid=u(ks[4], (out_channels, out_channels, 1, 1), out_channels),
        bid=u(ks[5], (out_channels,), out_channels),
        wf1=u(ks[6], (ch, out_channels), out_channels),
        bf1=u(ks[7], (ch,), out_channels),
        wf2=u(ks[8], (out_channels, ch), ch),
        bf2=u(ks[9], (out_channels,), ch),
    )


def reference(Fi, Fsp, p):
    """Pure-JAX reference mirroring the PyTorch forward (resize_type='none')."""
    x = jnp.concatenate([Fi, Fsp], axis=1)

    def conv(v, w, b, pad):
        y = jax.lax.conv_general_dilated(
            v, w, window_strides=(1, 1), padding=((pad, pad), (pad, pad)),
            dimension_numbers=('NCHW', 'OIHW', 'NCHW'))
        return y + b[None, :, None, None]

    def inorm(v):
        mu = jnp.mean(v, axis=(2, 3), keepdims=True)
        var = jnp.mean((v - mu) ** 2, axis=(2, 3), keepdims=True)
        return (v - mu) / jnp.sqrt(var + _EPS)

    y = _gelu_ref(inorm(conv(x, p['w1'], p['b1'], 1)))
    y = _gelu_ref(inorm(conv(y, p['w2'], p['b2'], 1)))
    xid = conv(y, p['wid'], p['bid'], 0)
    pooled = jnp.mean(y, axis=(2, 3))                      # (B, Co)
    h = _gelu_ref(pooled @ p['wf1'].T + p['bf1'])
    attn = jax.nn.sigmoid(h @ p['wf2'].T + p['bf2'])
    return xid * attn[:, :, None, None]


if __name__ == "__main__":
    key = jax.random.PRNGKey(0)
    k_p, k_fi, k_fs = jax.random.split(key, 3)

    B, H, W = 2, 16, 16
    in_channels, out_channels = 4, 8          # Fi and F_spf each carry 2 channels
    c_fi = in_channels // 2

    Fi = jax.random.normal(k_fi, (B, c_fi, H, W), jnp.float32)
    Fsp = jax.random.normal(k_fs, (B, in_channels - c_fi, H, W), jnp.float32)
    params = init_params(k_p, in_channels, out_channels)

    out = spf_unit_forward(Fi, Fsp, params)
    out = jax.block_until_ready(out)

    ref = reference(Fi, Fsp, params)
    assert out.shape == (B, out_channels, H, W)
    np.testing.assert_allclose(np.asarray(out), np.asarray(ref), rtol=1e-3, atol=1e-3)
    print("KERNEL_OK")
</pallas_src>

<mosaic_0001>
module attributes {stable_mosaic.version = 11 : i64} {
  func.func @spf_unit_kernel(%arg0: i32, %arg1: memref<1x8x512xf32, #tpu.memory_space<vmem>>, %arg2: memref<9x1x512xf32, #tpu.memory_space<vmem>>, %arg3: memref<512x2xf32, #tpu.memory_space<vmem>>, %arg4: memref<2x512xf32, #tpu.memory_space<vmem>>, %arg5: memref<8x72xf32, #tpu.memory_space<vmem>>, %arg6: memref<8x1xf32, #tpu.memory_space<vmem>>, %arg7: memref<8x72xf32, #tpu.memory_space<vmem>>, %arg8: memref<8x1xf32, #tpu.memory_space<vmem>>, %arg9: memref<8x8xf32, #tpu.memory_space<vmem>>, %arg10: memref<8x1xf32, #tpu.memory_space<vmem>>, %arg11: memref<4x8xf32, #tpu.memory_space<vmem>>, %arg12: memref<4x1xf32, #tpu.memory_space<vmem>>, %arg13: memref<8x4xf32, #tpu.memory_space<vmem>>, %arg14: memref<8x1xf32, #tpu.memory_space<vmem>>, %arg15: memref<1x8x512xf32, #tpu.memory_space<vmem>>) attributes {dimension_semantics = [#tpu.dimension_semantics<parallel>], iteration_bounds = array<i64: 1>, scalar_prefetch = 0 : i64, scratch_operands = 0 : i64, tpu.core_type = #tpu.core_type<tc>, window_params = [{transform_indices = @transform_0, window_bounds = array<i64: 1, 8, 512>}, {pipeline_mode = #tpu.pipeline_mode<synchronous>, transform_indices = @transform_1, window_bounds = array<i64: 9, 1, 512>}, {pipeline_mode = #tpu.pipeline_mode<synchronous>, transform_indices = @transform_2, window_bounds = array<i64: 512, 2>}, {pipeline_mode = #tpu.pipeline_mode<synchronous>, transform_indices = @transform_3, window_bounds = array<i64: 2, 512>}, {pipeline_mode = #tpu.pipeline_mode<synchronous>, transform_indices = @transform_4, window_bounds = array<i64: 8, 72>}, {pipeline_mode = #tpu.pipeline_mode<synchronous>, transform_indices = @transform_5, window_bounds = array<i64: 8, 1>}, {pipeline_mode = #tpu.pipeline_mode<synchronous>, transform_indices = @transform_6, window_bounds = array<i64: 8, 72>}, {pipeline_mode = #tpu.pipeline_mode<synchronous>, transform_indices = @transform_7, window_bounds = array<i64: 8, 1>}, {pipeline_mode = #tpu.pipeline_mode<synchronous>, transform_indices = @transform_8, window_bounds = array<i64: 8, 8>}, {pipeline_mode = #tpu.pipeline_mode<synchronous>, transform_indices = @transform_9, window_bounds = array<i64: 8, 1>}, {pipeline_mode = #tpu.pipeline_mode<synchronous>, transform_indices = @transform_10, window_bounds = array<i64: 4, 8>}, {pipeline_mode = #tpu.pipeline_mode<synchronous>, transform_indices = @transform_11, window_bounds = array<i64: 4, 1>}, {pipeline_mode = #tpu.pipeline_mode<synchronous>, transform_indices = @transform_12, window_bounds = array<i64: 8, 4>}, {pipeline_mode = #tpu.pipeline_mode<synchronous>, transform_indices = @transform_13, window_bounds = array<i64: 8, 1>}, {transform_indices = @transform_14, window_bounds = array<i64: 1, 8, 512>}]} {
    %c0 = arith.constant 0 : index
    %c0_0 = arith.constant 0 : index
    %c0_1 = arith.constant 0 : index
    %0 = vector.load %arg1[%c0, %c0_0, %c0_1] : memref<1x8x512xf32, #tpu.memory_space<vmem>>, vector<1x8x512xf32>
    %1 = vector.shape_cast %0 : vector<1x8x512xf32> to vector<8x512xf32>
    %c0_2 = arith.constant 0 : index
    %c0_3 = arith.constant 0 : index
    %c0_4 = arith.constant 0 : index
    %2 = vector.load %arg2[%c0_2, %c0_3, %c0_4] : memref<9x1x512xf32, #tpu.memory_space<vmem>>, vector<9x1x512xf32>
    %c0_5 = arith.constant 0 : index
    %c0_6 = arith.constant 0 : index
    %3 = vector.load %arg3[%c0_5, %c0_6] : memref<512x2xf32, #tpu.memory_space<vmem>>, vector<512x2xf32>
    %c0_7 = arith.constant 0 : index
    %c0_8 = arith.constant 0 : index
    %4 = vector.load %arg4[%c0_7, %c0_8] : memref<2x512xf32, #tpu.memory_space<vmem>>, vector<2x512xf32>
    %cst = arith.constant 0.000000e+00 : f32
    %5 = vector.broadcast %cst : f32 to vector<8x17xf32>
    %6 = tpu.concatenate %5, %1, %5 in 1 : vector<8x17xf32>, vector<8x512xf32>, vector<8x17xf32> -> vector<8x546xf32>
    %7 = vector.extract_strided_slice %6 {offsets = [0, 0], sizes = [8, 512], strides = [1, 1]} : vector<8x546xf32> to vector<8x512xf32>
    %8 = vector.extract_strided_slice %2 {offsets = [0, 0, 0], sizes = [1, 1, 512], strides = [1, 1, 1]} : vector<9x1x512xf32> to vector<1x1x512xf32>
    %9 = vector.shape_cast %8 : vector<1x1x512xf32> to vector<1x512xf32>
    %10 = vector.broadcast %9 : vector<1x512xf32> to vector<8x512xf32>
    %11 = arith.mulf %7, %10 : vector<8x512xf32>
    %12 = vector.extract_strided_slice %6 {offsets = [0, 1], sizes = [8, 512], strides = [1, 1]} : vector<8x546xf32> to vector<8x512xf32>
    %13 = vector.extract_strided_slice %2 {offsets = [1, 0, 0], sizes = [1, 1, 512], strides = [1, 1, 1]} : vector<9x1x512xf32> to vector<1x1x512xf32>
    %14 = vector.shape_cast %13 : vector<1x1x512xf32> to vector<1x512xf32>
    %15 = vector.broadcast %14 : vector<1x512xf32> to vector<8x512xf32>
    %16 = arith.mulf %12, %15 : vector<8x512xf32>
    %17 = vector.extract_strided_slice %6 {offsets = [0, 2], sizes = [8, 512], strides = [1, 1]} : vector<8x546xf32> to vector<8x512xf32>
    %18 = vector.extract_strided_slice %2 {offsets = [2, 0, 0], sizes = [1, 1, 512], strides = [1, 1, 1]} : vector<9x1x512xf32> to vector<1x1x512xf32>
    %19 = vector.shape_cast %18 : vector<1x1x512xf32> to vector<1x512xf32>
    %20 = vector.broadcast %19 : vector<1x512xf32> to vector<8x512xf32>
    %21 = arith.mulf %17, %20 : vector<8x512xf32>
    %22 = vector.extract_strided_slice %6 {offsets = [0, 16], sizes = [8, 512], strides = [1, 1]} : vector<8x546xf32> to vector<8x512xf32>
    %23 = vector.extract_strided_slice %2 {offsets = [3, 0, 0], sizes = [1, 1, 512], strides = [1, 1, 1]} : vector<9x1x512xf32> to vector<1x1x512xf32>
    %24 = vector.shape_cast %23 : vector<1x1x512xf32> to vector<1x512xf32>
    %25 = vector.broadcast %24 : vector<1x512xf32> to vector<8x512xf32>
    %26 = arith.mulf %22, %25 : vector<8x512xf32>
    %27 = vector.extract_strided_slice %6 {offsets = [0, 18], sizes = [8, 512], strides = [1, 1]} : vector<8x546xf32> to vector<8x512xf32>
    %28 = vector.extract_strided_slice %2 {offsets = [5, 0, 0], sizes = [1, 1, 512], strides = [1, 1, 1]} : vector<9x1x512xf32> to vector<1x1x512xf32>
    %29 = vector.shape_cast %28 : vector<1x1x512xf32> to vector<1x512xf32>
    %30 = vector.broadcast %29 : vector<1x512xf32> to vector<8x512xf32>
    %31 = arith.mulf %27, %30 : vector<8x512xf32>
    %32 = vector.extract_strided_slice %6 {offsets = [0, 32], sizes = [8, 512], strides = [1, 1]} : vector<8x546xf32> to vector<8x512xf32>
    %33 = vector.extract_strided_slice %2 {offsets = [6, 0, 0], sizes = [1, 1, 512], strides = [1, 1, 1]} : vector<9x1x512xf32> to vector<1x1x512xf32>
    %34 = vector.shape_cast %33 : vector<1x1x512xf32> to vector<1x512xf32>
    %35 = vector.broadcast %34 : vector<1x512xf32> to vector<8x512xf32>
    %36 = arith.mulf %32, %35 : vector<8x512xf32>
    %37 = vector.extract_strided_slice %6 {offsets = [0, 33], sizes = [8, 512], strides = [1, 1]} : vector<8x546xf32> to vector<8x512xf32>
    %38 = vector.extract_strided_slice %2 {offsets = [7, 0, 0], sizes = [1, 1, 512], strides = [1, 1, 1]} : vector<9x1x512xf32> to vector<1x1x512xf32>
    %39 = vector.shape_cast %38 : vector<1x1x512xf32> to vector<1x512xf32>
    %40 = vector.broadcast %39 : vector<1x512xf32> to vector<8x512xf32>
    %41 = arith.mulf %37, %40 : vector<8x512xf32>
    %42 = vector.extract_strided_slice %6 {offsets = [0, 34], sizes = [8, 512], strides = [1, 1]} : vector<8x546xf32> to vector<8x512xf32>
    %43 = vector.extract_strided_slice %2 {offsets = [8, 0, 0], sizes = [1, 1, 512], strides = [1, 1, 1]} : vector<9x1x512xf32> to vector<1x1x512xf32>
    %44 = vector.shape_cast %43 : vector<1x1x512xf32> to vector<1x512xf32>
    %45 = vector.broadcast %44 : vector<1x512xf32> to vector<8x512xf32>
    %46 = arith.mulf %42, %45 : vector<8x512xf32>
    %47 = tpu.concatenate %11, %16, %21, %26, %1, %31, %36, %41, %46 in 0 : vector<8x512xf32>, vector<8x512xf32>, vector<8x512xf32>, vector<8x512xf32>, vector<8x512xf32>, vector<8x512xf32>, vector<8x512xf32>, vector<8x512xf32>, vector<8x512xf32> -> vector<72x512xf32>
    %c0_9 = arith.constant 0 : index
    %c0_10 = arith.constant 0 : index
    %48 = vector.load %arg5[%c0_9, %c0_10] : memref<8x72xf32, #tpu.memory_space<vmem>>, vector<8x72xf32>
    %cst_11 = arith.constant dense<0.000000e+00> : vector<8x512xf32>
    %49 = tpu.matmul %48, %47, %cst_11 {dimension_numbers = #tpu.dot_dimension_numbers<[1], [0], [0], [1], [0, 0, 1, 1], [], []>} : vector<8x72xf32>, vector<72x512xf32>, vector<8x512xf32> -> vector<8x512xf32>
    %c0_12 = arith.constant 0 : index
    %c0_13 = arith.constant 0 : index
    %50 = vector.load %arg6[%c0_12, %c0_13] : memref<8x1xf32, #tpu.memory_space<vmem>>, vector<8x1xf32>
    %51 = vector.broadcast %50 : vector<8x1xf32> to vector<8x512xf32>
    %52 = arith.addf %49, %51 : vector<8x512xf32>
    %cst_14 = arith.constant dense<0.000000e+00> : vector<8x2xf32>
    %53 = tpu.matmul %52, %3, %cst_14 {dimension_numbers = #tpu.dot_dimension_numbers<[1], [0], [0], [1], [0, 0, 1, 1], [], []>} : vector<8x512xf32>, vector<512x2xf32>, vector<8x2xf32> -> vector<8x2xf32>
    %cst_15 = arith.constant 3.906250e-03 : f32
    %54 = vector.broadcast %cst_15 : f32 to vector<8x2xf32>
    %55 = arith.mulf %53, %54 : vector<8x2xf32>
    %cst_16 = arith.constant dense<0.000000e+00> : vector<8x512xf32>
    %56 = tpu.matmul %55, %4, %cst_16 {dimension_numbers = #tpu.dot_dimension_numbers<[1], [0], [0], [1], [0, 0, 1, 1], [], []>} : vector<8x2xf32>, vector<2x512xf32>, vector<8x512xf32> -> vector<8x512xf32>
    %57 = arith.subf %52, %56 : vector<8x512xf32>
    %58 = arith.mulf %57, %57 : vector<8x512xf32>
    %cst_17 = arith.constant dense<0.000000e+00> : vector<8x2xf32>
    %59 = tpu.matmul %58, %3, %cst_17 {dimension_numbers = #tpu.dot_dimension_numbers<[1], [0], [0], [1], [0, 0, 1, 1], [], []>} : vector<8x512xf32>, vector<512x2xf32>, vector<8x2xf32> -> vector<8x2xf32>
    %cst_18 = arith.constant 3.906250e-03 : f32
    %60 = vector.broadcast %cst_18 : f32 to vector<8x2xf32>
    %61 = arith.mulf %59, %60 : vector<8x2xf32>
    %cst_19 = arith.constant 9.99999974E-6 : f32
    %62 = vector.broadcast %cst_19 : f32 to vector<8x2xf32>
    %63 = arith.addf %61, %62 : vector<8x2xf32>
    %64 = math.rsqrt %63 : vector<8x2xf32>
    %cst_20 = arith.constant dense<0.000000e+00> : vector<8x512xf32>
    %65 = tpu.matmul %64, %4, %cst_20 {dimension_numbers = #tpu.dot_dimension_numbers<[1], [0], [0], [1], [0, 0, 1, 1], [], []>} : vector<8x2xf32>, vector<2x512xf32>, vector<8x512xf32> -> vector<8x512xf32>
    %66 = arith.mulf %57, %65 : vector<8x512xf32>
    %cst_21 = arith.constant 5.000000e-01 : f32
    %67 = vector.broadcast %cst_21 : f32 to vector<8x512xf32>
    %68 = arith.mulf %67, %66 : vector<8x512xf32>
    %cst_22 = arith.constant 0.707106769 : f32
    %69 = vector.broadcast %cst_22 : f32 to vector<8x512xf32>
    %70 = arith.mulf %66, %69 : vector<8x512xf32>
    %71 = math.absf %70 : vector<8x512xf32>
    %cst_23 = arith.constant 0.327591091 : f32
    %72 = vector.broadcast %cst_23 : f32 to vector<8x512xf32>
    %73 = arith.mulf %72, %71 : vector<8x512xf32>
    %cst_24 = arith.constant 1.000000e+00 : f32
    %74 = vector.broadcast %cst_24 : f32 to vector<8x512xf32>
    %75 = arith.addf %74, %73 : vector<8x512xf32>
    %cst_25 = arith.constant 1.000000e+00 : f32
    %76 = vector.broadcast %cst_25 : f32 to vector<8x512xf32>
    %77 = arith.divf %76, %75 : vector<8x512xf32>
    %cst_26 = arith.constant 1.06140542 : f32
    %78 = vector.broadcast %cst_26 : f32 to vector<8x512xf32>
    %79 = arith.mulf %77, %78 : vector<8x512xf32>
    %cst_27 = arith.constant -1.45315206 : f32
    %80 = vector.broadcast %cst_27 : f32 to vector<8x512xf32>
    %81 = arith.addf %80, %79 : vector<8x512xf32>
    %82 = arith.mulf %77, %81 : vector<8x512xf32>
    %cst_28 = arith.constant 1.42141378 : f32
    %83 = vector.broadcast %cst_28 : f32 to vector<8x512xf32>
    %84 = arith.addf %83, %82 : vector<8x512xf32>
    %85 = arith.mulf %77, %84 : vector<8x512xf32>
    %cst_29 = arith.constant -0.284496725 : f32
    %86 = vector.broadcast %cst_29 : f32 to vector<8x512xf32>
    %87 = arith.addf %86, %85 : vector<8x512xf32>
    %88 = arith.mulf %77, %87 : vector<8x512xf32>
    %cst_30 = arith.constant 0.254829586 : f32
    %89 = vector.broadcast %cst_30 : f32 to vector<8x512xf32>
    %90 = arith.addf %89, %88 : vector<8x512xf32>
    %91 = arith.mulf %77, %90 : vector<8x512xf32>
    %cst_31 = arith.constant 0.000000e+00 : f32
    %92 = vector.broadcast %cst_31 : f32 to vector<8x512xf32>
    %93 = arith.subf %92, %71 : vector<8x512xf32>
    %94 = arith.mulf %93, %71 : vector<8x512xf32>
    %95 = math.exp %94 : vector<8x512xf32>
    %96 = arith.mulf %91, %95 : vector<8x512xf32>
    %cst_32 = arith.constant 1.000000e+00 : f32
    %97 = vector.broadcast %cst_32 : f32 to vector<8x512xf32>
    %98 = arith.subf %97, %96 : vector<8x512xf32>
    %cst_33 = arith.constant 0.000000e+00 : f32
    %99 = vector.broadcast %cst_33 : f32 to vector<8x512xf32>
    %100 = arith.cmpf oge, %70, %99 : vector<8x512xf32>
    %cst_34 = arith.constant 0.000000e+00 : f32
    %101 = vector.broadcast %cst_34 : f32 to vector<8x512xf32>
    %102 = arith.subf %101, %98 : vector<8x512xf32>
    %103 = arith.select %100, %98, %102 : vector<8x512xi1>, vector<8x512xf32>
    %cst_35 = arith.constant 1.000000e+00 : f32
    %104 = vector.broadcast %cst_35 : f32 to vector<8x512xf32>
    %105 = arith.addf %104, %103 : vector<8x512xf32>
    %106 = arith.mulf %68, %105 : vector<8x512xf32>
    %cst_36 = arith.constant 0.000000e+00 : f32
    %107 = vector.broadcast %cst_36 : f32 to vector<8x17xf32>
    %108 = tpu.concatenate %107, %106, %107 in 1 : vector<8x17xf32>, vector<8x512xf32>, vector<8x17xf32> -> vector<8x546xf32>
    %109 = vector.extract_strided_slice %108 {offsets = [0, 0], sizes = [8, 512], strides = [1, 1]} : vector<8x546xf32> to vector<8x512xf32>
    %110 = vector.extract_strided_slice %2 {offsets = [0, 0, 0], sizes = [1, 1, 512], strides = [1, 1, 1]} : vector<9x1x512xf32> to vector<1x1x512xf32>
    %111 = vector.shape_cast %110 : vector<1x1x512xf32> to vector<1x512xf32>
    %112 = vector.broadcast %111 : vector<1x512xf32> to vector<8x512xf32>
    %113 = arith.mulf %109, %112 : vector<8x512xf32>
    %114 = vector.extract_strided_slice %108 {offsets = [0, 1], sizes = [8, 512], strides = [1, 1]} : vector<8x546xf32> to vector<8x512xf32>
    %115 = vector.extract_strided_slice %2 {offsets = [1, 0, 0], sizes = [1, 1, 512], strides = [1, 1, 1]} : vector<9x1x512xf32> to vector<1x1x512xf32>
    %116 = vector.shape_cast %115 : vector<1x1x512xf32> to vector<1x512xf32>
    %117 = vector.broadcast %116 : vector<1x512xf32> to vector<8x512xf32>
    %118 = arith.mulf %114, %117 : vector<8x512xf32>
    %119 = vector.extract_strided_slice %108 {offsets = [0, 2], sizes = [8, 512], strides = [1, 1]} : vector<8x546xf32> to vector<8x512xf32>
    %120 = vector.extract_strided_slice %2 {offsets = [2, 0, 0], sizes = [1, 1, 512], strides = [1, 1, 1]} : vector<9x1x512xf32> to vector<1x1x512xf32>
    %121 = vector.shape_cast %120 : vector<1x1x512xf32> to vector<1x512xf32>
    %122 = vector.broadcast %121 : vector<1x512xf32> to vector<8x512xf32>
    %123 = arith.mulf %119, %122 : vector<8x512xf32>
    %124 = vector.extract_strided_slice %108 {offsets = [0, 16], sizes = [8, 512], strides = [1, 1]} : vector<8x546xf32> to vector<8x512xf32>
    %125 = vector.extract_strided_slice %2 {offsets = [3, 0, 0], sizes = [1, 1, 512], strides = [1, 1, 1]} : vector<9x1x512xf32> to vector<1x1x512xf32>
    %126 = vector.shape_cast %125 : vector<1x1x512xf32> to vector<1x512xf32>
    %127 = vector.broadcast %126 : vector<1x512xf32> to vector<8x512xf32>
    %128 = arith.mulf %124, %127 : vector<8x512xf32>
    %129 = vector.extract_strided_slice %108 {offsets = [0, 18], sizes = [8, 512], strides = [1, 1]} : vector<8x546xf32> to vector<8x512xf32>
    %130 = vector.extract_strided_slice %2 {offsets = [5, 0, 0], sizes = [1, 1, 512], strides = [1, 1, 1]} : vector<9x1x512xf32> to vector<1x1x512xf32>
    %131 = vector.shape_cast %130 : vector<1x1x512xf32> to vector<1x512xf32>
    %132 = vector.broadcast %131 : vector<1x512xf32> to vector<8x512xf32>
    %133 = arith.mulf %129, %132 : vector<8x512xf32>
    %134 = vector.extract_strided_slice %108 {offsets = [0, 32], sizes = [8, 512], strides = [1, 1]} : vector<8x546xf32> to vector<8x512xf32>
    %135 = vector.extract_strided_slice %2 {offsets = [6, 0, 0], sizes = [1, 1, 512], strides = [1, 1, 1]} : vector<9x1x512xf32> to vector<1x1x512xf32>
    %136 = vector.shape_cast %135 : vector<1x1x512xf32> to vector<1x512xf32>
    %137 = vector.broadcast %136 : vector<1x512xf32> to vector<8x512xf32>
    %138 = arith.mulf %134, %137 : vector<8x512xf32>
    %139 = vector.extract_strided_slice %108 {offsets = [0, 33], sizes = [8, 512], strides = [1, 1]} : vector<8x546xf32> to vector<8x512xf32>
    %140 = vector.extract_strided_slice %2 {offsets = [7, 0, 0], sizes = [1, 1, 512], strides = [1, 1, 1]} : vector<9x1x512xf32> to vector<1x1x512xf32>
    %141 = vector.shape_cast %140 : vector<1x1x512xf32> to vector<1x512xf32>
    %142 = vector.broadcast %141 : vector<1x512xf32> to vector<8x512xf32>
    %143 = arith.mulf %139, %142 : vector<8x512xf32>
    %144 = vector.extract_strided_slice %108 {offsets = [0, 34], sizes = [8, 512], strides = [1, 1]} : vector<8x546xf32> to vector<8x512xf32>
    %145 = vector.extract_strided_slice %2 {offsets = [8, 0, 0], sizes = [1, 1, 512], strides = [1, 1, 1]} : vector<9x1x512xf32> to vector<1x1x512xf32>
    %146 = vector.shape_cast %145 : vector<1x1x512xf32> to vector<1x512xf32>
    %147 = vector.broadcast %146 : vector<1x512xf32> to vector<8x512xf32>
    %148 = arith.mulf %144, %147 : vector<8x512xf32>
    %149 = tpu.concatenate %113, %118, %123, %128, %106, %133, %138, %143, %148 in 0 : vector<8x512xf32>, vector<8x512xf32>, vector<8x512xf32>, vector<8x512xf32>, vector<8x512xf32>, vector<8x512xf32>, vector<8x512xf32>, vector<8x512xf32>, vector<8x512xf32> -> vector<72x512xf32>
    %c0_37 = arith.constant 0 : index
    %c0_38 = arith.constant 0 : index
    %150 = vector.load %arg7[%c0_37, %c0_38] : memref<8x72xf32, #tpu.memory_space<vmem>>, vector<8x72xf32>
    %cst_39 = arith.constant dense<0.000000e+00> : vector<8x512xf32>
    %151 = tpu.matmul %150, %149, %cst_39 {dimension_numbers = #tpu.dot_dimension_numbers<[1], [0], [0], [1], [0, 0, 1, 1], [], []>} : vector<8x72xf32>, vector<72x512xf32>, vector<8x512xf32> -> vector<8x512xf32>
    %c0_40 = arith.constant 0 : index
    %c0_41 = arith.constant 0 : index
    %152 = vector.load %arg8[%c0_40, %c0_41] : memref<8x1xf32, #tpu.memory_space<vmem>>, vector<8x1xf32>
    %153 = vector.broadcast %152 : vector<8x1xf32> to vector<8x512xf32>
    %154 = arith.addf %151, %153 : vector<8x512xf32>
    %cst_42 = arith.constant dense<0.000000e+00> : vector<8x2xf32>
    %155 = tpu.matmul %154, %3, %cst_42 {dimension_numbers = #tpu.dot_dimension_numbers<[1], [0], [0], [1], [0, 0, 1, 1], [], []>} : vector<8x512xf32>, vector<512x2xf32>, vector<8x2xf32> -> vector<8x2xf32>
    %cst_43 = arith.constant 3.906250e-03 : f32
    %156 = vector.broadcast %cst_43 : f32 to vector<8x2xf32>
    %157 = arith.mulf %155, %156 : vector<8x2xf32>
    %cst_44 = arith.constant dense<0.000000e+00> : vector<8x512xf32>
    %158 = tpu.matmul %157, %4, %cst_44 {dimension_numbers = #tpu.dot_dimension_numbers<[1], [0], [0], [1], [0, 0, 1, 1], [], []>} : vector<8x2xf32>, vector<2x512xf32>, vector<8x512xf32> -> vector<8x512xf32>
    %159 = arith.subf %154, %158 : vector<8x512xf32>
    %160 = arith.mulf %159, %159 : vector<8x512xf32>
    %cst_45 = arith.constant dense<0.000000e+00> : vector<8x2xf32>
    %161 = tpu.matmul %160, %3, %cst_45 {dimension_numbers = #tpu.dot_dimension_numbers<[1], [0], [0], [1], [0, 0, 1, 1], [], []>} : vector<8x512xf32>, vector<512x2xf32>, vector<8x2xf32> -> vector<8x2xf32>
    %cst_46 = arith.constant 3.906250e-03 : f32
    %162 = vector.broadcast %cst_46 : f32 to vector<8x2xf32>
    %163 = arith.mulf %161, %162 : vector<8x2xf32>
    %cst_47 = arith.constant 9.99999974E-6 : f32
    %164 = vector.broadcast %cst_47 : f32 to vector<8x2xf32>
    %165 = arith.addf %163, %164 : vector<8x2xf32>
    %166 = math.rsqrt %165 : vector<8x2xf32>
    %cst_48 = arith.constant dense<0.000000e+00> : vector<8x512xf32>
    %167 = tpu.matmul %166, %4, %cst_48 {dimension_numbers = #tpu.dot_dimension_numbers<[1], [0], [0], [1], [0, 0, 1, 1], [], []>} : vector<8x2xf32>, vector<2x512xf32>, vector<8x512xf32> -> vector<8x512xf32>
    %168 = arith.mulf %159, %167 : vector<8x512xf32>
    %cst_49 = arith.constant 5.000000e-01 : f32
    %169 = vector.broadcast %cst_49 : f32 to vector<8x512xf32>
    %170 = arith.mulf %169, %168 : vector<8x512xf32>
    %cst_50 = arith.constant 0.707106769 : f32
    %171 = vector.broadcast %cst_50 : f32 to vector<8x512xf32>
    %172 = arith.mulf %168, %171 : vector<8x512xf32>
    %173 = math.absf %172 : vector<8x512xf32>
    %cst_51 = arith.constant 0.327591091 : f32
    %174 = vector.broadcast %cst_51 : f32 to vector<8x512xf32>
    %175 = arith.mulf %174, %173 : vector<8x512xf32>
    %cst_52 = arith.constant 1.000000e+00 : f32
    %176 = vector.broadcast %cst_52 : f32 to vector<8x512xf32>
    %177 = arith.addf %176, %175 : vector<8x512xf32>
    %cst_53 = arith.constant 1.000000e+00 : f32
    %178 = vector.broadcast %cst_53 : f32 to vector<8x512xf32>
    %179 = arith.divf %178, %177 : vector<8x512xf32>
    %cst_54 = arith.constant 1.06140542 : f32
    %180 = vector.broadcast %cst_54 : f32 to vector<8x512xf32>
    %181 = arith.mulf %179, %180 : vector<8x512xf32>
    %cst_55 = arith.constant -1.45315206 : f32
    %182 = vector.broadcast %cst_55 : f32 to vector<8x512xf32>
    %183 = arith.addf %182, %181 : vector<8x512xf32>
    %184 = arith.mulf %179, %183 : vector<8x512xf32>
    %cst_56 = arith.constant 1.42141378 : f32
    %185 = vector.broadcast %cst_56 : f32 to vector<8x512xf32>
    %186 = arith.addf %185, %184 : vector<8x512xf32>
    %187 = arith.mulf %179, %186 : vector<8x512xf32>
    %cst_57 = arith.constant -0.284496725 : f32
    %188 = vector.broadcast %cst_57 : f32 to vector<8x512xf32>
    %189 = arith.addf %188, %187 : vector<8x512xf32>
    %190 = arith.mulf %179, %189 : vector<8x512xf32>
    %cst_58 = arith.constant 0.254829586 : f32
    %191 = vector.broadcast %cst_58 : f32 to vector<8x512xf32>
    %192 = arith.addf %191, %190 : vector<8x512xf32>
    %193 = arith.mulf %179, %192 : vector<8x512xf32>
    %cst_59 = arith.constant 0.000000e+00 : f32
    %194 = vector.broadcast %cst_59 : f32 to vector<8x512xf32>
    %195 = arith.subf %194, %173 : vector<8x512xf32>
    %196 = arith.mulf %195, %173 : vector<8x512xf32>
    %197 = math.exp %196 : vector<8x512xf32>
    %198 = arith.mulf %193, %197 : vector<8x512xf32>
    %cst_60 = arith.constant 1.000000e+00 : f32
    %199 = vector.broadcast %cst_60 : f32 to vector<8x512xf32>
    %200 = arith.subf %199, %198 : vector<8x512xf32>
    %cst_61 = arith.constant 0.000000e+00 : f32
    %201 = vector.broadcast %cst_61 : f32 to vector<8x512xf32>
    %202 = arith.cmpf oge, %172, %201 : vector<8x512xf32>
    %cst_62 = arith.constant 0.000000e+00 : f32
    %203 = vector.broadcast %cst_62 : f32 to vector<8x512xf32>
    %204 = arith.subf %203, %200 : vector<8x512xf32>
    %205 = arith.select %202, %200, %204 : vector<8x512xi1>, vector<8x512xf32>
    %cst_63 = arith.constant 1.000000e+00 : f32
    %206 = vector.broadcast %cst_63 : f32 to vector<8x512xf32>
    %207 = arith.addf %206, %205 : vector<8x512xf32>
    %208 = arith.mulf %170, %207 : vector<8x512xf32>
    %c0_64 = arith.constant 0 : index
    %c0_65 = arith.constant 0 : index
    %209 = vector.load %arg9[%c0_64, %c0_65] : memref<8x8xf32, #tpu.memory_space<vmem>>, vector<8x8xf32>
    %cst_66 = arith.constant dense<0.000000e+00> : vector<8x512xf32>
    %210 = tpu.matmul %209, %208, %cst_66 {dimension_numbers = #tpu.dot_dimension_numbers<[1], [0], [0], [1], [0, 0, 1, 1], [], []>} : vector<8x8xf32>, vector<8x512xf32>, vector<8x512xf32> -> vector<8x512xf32>
    %c0_67 = arith.constant 0 : index
    %c0_68 = arith.constant 0 : index
    %211 = vector.load %arg10[%c0_67, %c0_68] : memref<8x1xf32, #tpu.memory_space<vmem>>, vector<8x1xf32>
    %212 = vector.broadcast %211 : vector<8x1xf32> to vector<8x512xf32>
    %213 = arith.addf %210, %212 : vector<8x512xf32>
    %cst_69 = arith.constant dense<0.000000e+00> : vector<8x2xf32>
    %214 = tpu.matmul %208, %3, %cst_69 {dimension_numbers = #tpu.dot_dimension_numbers<[1], [0], [0], [1], [0, 0, 1, 1], [], []>} : vector<8x512xf32>, vector<512x2xf32>, vector<8x2xf32> -> vector<8x2xf32>
    %cst_70 = arith.constant 3.906250e-03 : f32
    %215 = vector.broadcast %cst_70 : f32 to vector<8x2xf32>
    %216 = arith.mulf %214, %215 : vector<8x2xf32>
    %c0_71 = arith.constant 0 : index
    %c0_72 = arith.constant 0 : index
    %217 = vector.load %arg11[%c0_71, %c0_72] : memref<4x8xf32, #tpu.memory_space<vmem>>, vector<4x8xf32>
    %cst_73 = arith.constant dense<0.000000e+00> : vector<4x2xf32>
    %218 = tpu.matmul %217, %216, %cst_73 {dimension_numbers = #tpu.dot_dimension_numbers<[1], [0], [0], [1], [0, 0, 1, 1], [], []>} : vector<4x8xf32>, vector<8x2xf32>, vector<4x2xf32> -> vector<4x2xf32>
    %c0_74 = arith.constant 0 : index
    %c0_75 = arith.constant 0 : index
    %219 = vector.load %arg12[%c0_74, %c0_75] : memref<4x1xf32, #tpu.memory_space<vmem>>, vector<4x1xf32>
    %220 = vector.broadcast %219 : vector<4x1xf32> to vector<4x2xf32>
    %221 = arith.addf %218, %220 : vector<4x2xf32>
    %cst_76 = arith.constant 5.000000e-01 : f32
    %222 = vector.broadcast %cst_76 : f32 to vector<4x2xf32>
    %223 = arith.mulf %222, %221 : vector<4x2xf32>
    %cst_77 = arith.constant 0.707106769 : f32
    %224 = vector.broadcast %cst_77 : f32 to vector<4x2xf32>
    %225 = arith.mulf %221, %224 : vector<4x2xf32>
    %226 = math.absf %225 : vector<4x2xf32>
    %cst_78 = arith.constant 0.327591091 : f32
    %227 = vector.broadcast %cst_78 : f32 to vector<4x2xf32>
    %228 = arith.mulf %227, %226 : vector<4x2xf32>
    %cst_79 = arith.constant 1.000000e+00 : f32
    %229 = vector.broadcast %cst_79 : f32 to vector<4x2xf32>
    %230 = arith.addf %229, %228 : vector<4x2xf32>
    %cst_80 = arith.constant 1.000000e+00 : f32
    %231 = vector.broadcast %cst_80 : f32 to vector<4x2xf32>
    %232 = arith.divf %231, %230 : vector<4x2xf32>
    %cst_81 = arith.constant 1.06140542 : f32
    %233 = vector.broadcast %cst_81 : f32 to vector<4x2xf32>
    %234 = arith.mulf %232, %233 : vector<4x2xf32>
    %cst_82 = arith.constant -1.45315206 : f32
    %235 = vector.broadcast %cst_82 : f32 to vector<4x2xf32>
    %236 = arith.addf %235, %234 : vector<4x2xf32>
    %237 = arith.mulf %232, %236 : vector<4x2xf32>
    %cst_83 = arith.constant 1.42141378 : f32
    %238 = vector.broadcast %cst_83 : f32 to vector<4x2xf32>
    %239 = arith.addf %238, %237 : vector<4x2xf32>
    %240 = arith.mulf %232, %239 : vector<4x2xf32>
    %cst_84 = arith.constant -0.284496725 : f32
    %241 = vector.broadcast %cst_84 : f32 to vector<4x2xf32>
    %242 = arith.addf %241, %240 : vector<4x2xf32>
    %243 = arith.mulf %232, %242 : vector<4x2xf32>
    %cst_85 = arith.constant 0.254829586 : f32
    %244 = vector.broadcast %cst_85 : f32 to vector<4x2xf32>
    %245 = arith.addf %244, %243 : vector<4x2xf32>
    %246 = arith.mulf %232, %245 : vector<4x2xf32>
    %cst_86 = arith.constant 0.000000e+00 : f32
    %247 = vector.broadcast %cst_86 : f32 to vector<4x2xf32>
    %248 = arith.subf %247, %226 : vector<4x2xf32>
    %249 = arith.mulf %248, %226 : vector<4x2xf32>
    %250 = math.exp %249 : vector<4x2xf32>
    %251 = arith.mulf %246, %250 : vector<4x2xf32>
    %cst_87 = arith.constant 1.000000e+00 : f32
    %252 = vector.broadcast %cst_87 : f32 to vector<4x2xf32>
    %253 = arith.subf %252, %251 : vector<4x2xf32>
    %cst_88 = arith.constant 0.000000e+00 : f32
    %254 = vector.broadcast %cst_88 : f32 to vector<4x2xf32>
    %255 = arith.cmpf oge, %225, %254 : vector<4x2xf32>
    %cst_89 = arith.constant 0.000000e+00 : f32
    %256 = vector.broadcast %cst_89 : f32 to vector<4x2xf32>
    %257 = arith.subf %256, %253 : vector<4x2xf32>
    %258 = arith.select %255, %253, %257 : vector<4x2xi1>, vector<4x2xf32>
    %cst_90 = arith.constant 1.000000e+00 : f32
    %259 = vector.broadcast %cst_90 : f32 to vector<4x2xf32>
    %260 = arith.addf %259, %258 : vector<4x2xf32>
    %261 = arith.mulf %223, %260 : vector<4x2xf32>
    %c0_91 = arith.constant 0 : index
    %c0_92 = arith.constant 0 : index
    %262 = vector.load %arg13[%c0_91, %c0_92] : memref<8x4xf32, #tpu.memory_space<vmem>>, vector<8x4xf32>
    %cst_93 = arith.constant dense<0.000000e+00> : vector<8x2xf32>
    %263 = tpu.matmul %262, %261, %cst_93 {dimension_numbers = #tpu.dot_dimension_numbers<[1], [0], [0], [1], [0, 0, 1, 1], [], []>} : vector<8x4xf32>, vector<4x2xf32>, vector<8x2xf32> -> vector<8x2xf32>
    %c0_94 = arith.constant 0 : index
    %c0_95 = arith.constant 0 : index
    %264 = vector.load %arg14[%c0_94, %c0_95] : memref<8x1xf32, #tpu.memory_space<vmem>>, vector<8x1xf32>
    %265 = vector.broadcast %264 : vector<8x1xf32> to vector<8x2xf32>
    %266 = arith.addf %263, %265 : vector<8x2xf32>
    %cst_96 = arith.constant 0.000000e+00 : f32
    %267 = vector.broadcast %cst_96 : f32 to vector<8x2xf32>
    %268 = arith.subf %267, %266 : vector<8x2xf32>
    %269 = math.exp %268 : vector<8x2xf32>
    %cst_97 = arith.constant 1.000000e+00 : f32
    %270 = vector.broadcast %cst_97 : f32 to vector<8x2xf32>
    %271 = arith.addf %270, %269 : vector<8x2xf32>
    %cst_98 = arith.constant 1.000000e+00 : f32
    %272 = vector.broadcast %cst_98 : f32 to vector<8x2xf32>
    %273 = arith.divf %272, %271 : vector<8x2xf32>
    %cst_99 = arith.constant dense<0.000000e+00> : vector<8x512xf32>
    %274 = tpu.matmul %273, %4, %cst_99 {dimension_numbers = #tpu.dot_dimension_numbers<[1], [0], [0], [1], [0, 0, 1, 1], [], []>} : vector<8x2xf32>, vector<2x512xf32>, vector<8x512xf32> -> vector<8x512xf32>
    %275 = arith.mulf %213, %274 : vector<8x512xf32>
    %c0_100 = arith.constant 0 : index
    %c0_101 = arith.constant 0 : index
    %c0_102 = arith.constant 0 : index
    %276 = vector.load %arg15[%c0_100, %c0_101, %c0_102] : memref<1x8x512xf32, #tpu.memory_space<vmem>>, vector<1x8x512xf32>
    %277 = vector.shape_cast %276 : vector<1x8x512xf32> to vector<8x512xf32>
    %278 = vector.shape_cast %275 : vector<8x512xf32> to vector<1x8x512xf32>
    tpu.vector_store %arg15[%c0_100, %c0_101, %c0_102], %278 {strides = array<i32>} : memref<1x8x512xf32, #tpu.memory_space<vmem>>, vector<1x8x512xf32>,
    return
  }
  func.func @transform_0(%arg0: i32) -> (i32, i32, i32) {
    %c0_i32 = arith.constant 0 : i32
    %c0_i32_0 = arith.constant 0 : i32
    %c0_i32_1 = arith.constant 0 : i32
    return %arg0, %c0_i32, %c0_i32_0 : i32, i32, i32
  }
  func.func @transform_1(%arg0: i32) -> (i32, i32, i32) {
    %c0_i32 = arith.constant 0 : i32
    %c0_i32_0 = arith.constant 0 : i32
    %c0_i32_1 = arith.constant 0 : i32
    %c0_i32_2 = arith.constant 0 : i32
    return %c0_i32, %c0_i32_0, %c0_i32_1 : i32, i32, i32
  }
  func.func @transform_2(%arg0: i32) -> (i32, i32) {
    %c0_i32 = arith.constant 0 : i32
    %c0_i32_0 = arith.constant 0 : i32
    %c0_i32_1 = arith.constant 0 : i32
    return %c0_i32, %c0_i32_0 : i32, i32
  }
  func.func @transform_3(%arg0: i32) -> (i32, i32) {
    %c0_i32 = arith.constant 0 : i32
    %c0_i32_0 = arith.constant 0 : i32
    %c0_i32_1 = arith.constant 0 : i32
    return %c0_i32, %c0_i32_0 : i32, i32
  }
  func.func @transform_4(%arg0: i32) -> (i32, i32) {
    %c0_i32 = arith.constant 0 : i32
    %c0_i32_0 = arith.constant 0 : i32
    %c0_i32_1 = arith.constant 0 : i32
    return %c0_i32, %c0_i32_0 : i32, i32
  }
  func.func @transform_5(%arg0: i32) -> (i32, i32) {
    %c0_i32 = arith.constant 0 : i32
    %c0_i32_0 = arith.constant 0 : i32
    %c0_i32_1 = arith.constant 0 : i32
    return %c0_i32, %c0_i32_0 : i32, i32
  }
  func.func @transform_6(%arg0: i32) -> (i32, i32) {
    %c0_i32 = arith.constant 0 : i32
    %c0_i32_0 = arith.constant 0 : i32
    %c0_i32_1 = arith.constant 0 : i32
    return %c0_i32, %c0_i32_0 : i32, i32
  }
  func.func @transform_7(%arg0: i32) -> (i32, i32) {
    %c0_i32 = arith.constant 0 : i32
    %c0_i32_0 = arith.constant 0 : i32
    %c0_i32_1 = arith.constant 0 : i32
    return %c0_i32, %c0_i32_0 : i32, i32
  }
  func.func @transform_8(%arg0: i32) -> (i32, i32) {
    %c0_i32 = arith.constant 0 : i32
    %c0_i32_0 = arith.constant 0 : i32
    %c0_i32_1 = arith.constant 0 : i32
    return %c0_i32, %c0_i32_0 : i32, i32
  }
  func.func @transform_9(%arg0: i32) -> (i32, i32) {
    %c0_i32 = arith.constant 0 : i32
    %c0_i32_0 = arith.constant 0 : i32
    %c0_i32_1 = arith.constant 0 : i32
    return %c0_i32, %c0_i32_0 : i32, i32
  }
  func.func @transform_10(%arg0: i32) -> (i32, i32) {
    %c0_i32 = arith.constant 0 : i32
    %c0_i32_0 = arith.constant 0 : i32
    %c0_i32_1 = arith.constant 0 : i32
    return %c0_i32, %c0_i32_0 : i32, i32
  }
  func.func @transform_11(%arg0: i32) -> (i32, i32) {
    %c0_i32 = arith.constant 0 : i32
    %c0_i32_0 = arith.constant 0 : i32
    %c0_i32_1 = arith.constant 0 : i32
    return %c0_i32, %c0_i32_0 : i32, i32
  }
  func.func @transform_12(%arg0: i32) -> (i32, i32) {
    %c0_i32 = arith.constant 0 : i32
    %c0_i32_0 = arith.constant 0 : i32
    %c0_i32_1 = arith.constant 0 : i32
    return %c0_i32, %c0_i32_0 : i32, i32
  }
  func.func @transform_13(%arg0: i32) -> (i32, i32) {
    %c0_i32 = arith.constant 0 : i32
    %c0_i32_0 = arith.constant 0 : i32
    %c0_i32_1 = arith.constant 0 : i32
    return %c0_i32, %c0_i32_0 : i32, i32
  }
  func.func @transform_14(%arg0: i32) -> (i32, i32, i32) {
    %c0_i32 = arith.constant 0 : i32
    %c0_i32_0 = arith.constant 0 : i32
    %c0_i32_1 = arith.constant 0 : i32
    return %arg0, %c0_i32, %c0_i32_0 : i32, i32, i32
  }
}

</mosaic_0001>

<llo_original>
// kernel: tpu_custom_call.1
$region0: #{tpu_custom_call.1}
  #allocation0 [shape = 'u32[]', space=smem, size = 0x4, offset = 0x4, fixed_abs, tag = 'smem constant byte address 0x4 - core index']
  #allocation1 [shape = 'u32[144,128]{1,0:T(1,128)}', space=vmem, size = 0x12000, scoped, tag = 'internal scratch']
  %s0 = inlined_call_operand.vmem [shape: f32[1,8,512], index: 0, kind: input, shape index: {}]
  %s1 = inlined_call_operand.vmem [shape: f32[9,1,512], index: 1, kind: input, shape index: {}]
  %s2 = inlined_call_operand.vmem [shape: f32[512,2], index: 2, kind: input, shape index: {}]
  %s3 = inlined_call_operand.vmem [shape: f32[2,512], index: 3, kind: input, shape index: {}]
  %s4 = inlined_call_operand.vmem [shape: f32[8,72], index: 4, kind: input, shape index: {}]
  %s5 = inlined_call_operand.vmem [shape: f32[8,1], index: 5, kind: input, shape index: {}]
  %s6 = inlined_call_operand.vmem [shape: f32[8,72], index: 6, kind: input, shape index: {}]
  %s7 = inlined_call_operand.vmem [shape: f32[8,1], index: 7, kind: input, shape index: {}]
  %s8 = inlined_call_operand.vmem [shape: f32[8,8], index: 8, kind: input, shape index: {}]
  %s9 = inlined_call_operand.vmem [shape: f32[8,1], index: 9, kind: input, shape index: {}]
  %s10 = inlined_call_operand.vmem [shape: f32[4,8], index: 10, kind: input, shape index: {}]
  %s11 = inlined_call_operand.vmem [shape: f32[4,1], index: 11, kind: input, shape index: {}]
  %s12 = inlined_call_operand.vmem [shape: f32[8,4], index: 12, kind: input, shape index: {}]
  %s13 = inlined_call_operand.vmem [shape: f32[8,1], index: 13, kind: input, shape index: {}]
  %s14 = inlined_call_operand.hbm [shape: f32[1,8,512], index: 14, kind: output, shape index: {}]
  %s15 = sld [smem:[#allocation0]]
  $region66: #{tpu_custom_call.1} parent=0
    _
  %s17 = ssub.s32 1, %s15
  %s18 = scalar_select 0, %s17, %s15
  $region1: #{tpu_custom_call.1} parent=0
    #allocation2 [shape = 'u8[16384]{0}', space=vmem, size = 0x4000, scoped, tag = 'output window, operand 0, single buffered']
    #allocation3 [shape = 's32[1]{0}', space=sflag, size = 0x4, scoped, tag = 'scoped memory for tpu_custom_call.1']
    %19 = vsyncpa [#allocation3], 0
    // Predicated region
    $region2: #{tpu_custom_call.1} parent=1 // pred_check
      _
    $region3: #{tpu_custom_call.1} parent=1 // pred_check_branch
      %21 = sbr.rel (0) target = $region5
    $region4: #{tpu_custom_call.1} parent=1 // pred_region
      _
    $region5: #{tpu_custom_call.1} parent=1 // pred_fallthru
      _
    // Predicated region
    $region6: #{tpu_custom_call.1} parent=1 // pred_check
      _
    $region7: #{tpu_custom_call.1} parent=1 // pred_check_branch
      %23 = sbr.rel (0) target = $region9
    $region8: #{tpu_custom_call.1} parent=1 // pred_region
      _
    $region9: #{tpu_custom_call.1} parent=1 // pred_fallthru
      _
    // Predicated region
    $region10: #{tpu_custom_call.1} parent=1 // pred_check
      _
    $region11: #{tpu_custom_call.1} parent=1 // pred_check_branch
      %25 = sbr.rel (0) target = $region13
    $region12: #{tpu_custom_call.1} parent=1 // pred_region
      _
    $region13: #{tpu_custom_call.1} parent=1 // pred_fallthru
      _
    // Predicated region
    $region14: #{tpu_custom_call.1} parent=1 // pred_check
      _
    $region15: #{tpu_custom_call.1} parent=1 // pred_check_branch
      %27 = sbr.rel (0) target = $region17
    $region16: #{tpu_custom_call.1} parent=1 // pred_region
      _
    $region17: #{tpu_custom_call.1} parent=1 // pred_fallthru
      _
    // Predicated region
    $region18: #{tpu_custom_call.1} parent=1 // pred_check
      _
    $region19: #{tpu_custom_call.1} parent=1 // pred_check_branch
      %29 = sbr.rel (0) target = $region21
    $region20: #{tpu_custom_call.1} parent=1 // pred_region
      _
    $region21: #{tpu_custom_call.1} parent=1 // pred_fallthru
      _
    // Predicated region
    $region22: #{tpu_custom_call.1} parent=1 // pred_check
      _
    $region23: #{tpu_custom_call.1} parent=1 // pred_check_branch
      %31 = sbr.rel (0) target = $region25
    $region24: #{tpu_custom_call.1} parent=1 // pred_region
      _
    $region25: #{tpu_custom_call.1} parent=1 // pred_fallthru
      _
    // Predicated region
    $region26: #{tpu_custom_call.1} parent=1 // pred_check
      _
    $region27: #{tpu_custom_call.1} parent=1 // pred_check_branch
      %33 = sbr.rel (0) target = $region29
    $region28: #{tpu_custom_call.1} parent=1 // pred_region
      _
    $region29: #{tpu_custom_call.1} parent=1 // pred_fallthru
      _
    // Predicated region
    $region30: #{tpu_custom_call.1} parent=1 // pred_check
      _
    $region31: #{tpu_custom_call.1} parent=1 // pred_check_branch
      %35 = sbr.rel (0) target = $region33
    $region32: #{tpu_custom_call.1} parent=1 // pred_region
      _
    $region33: #{tpu_custom_call.1} parent=1 // pred_fallthru
      _
    // Predicated region
    $region34: #{tpu_custom_call.1} parent=1 // pred_check
      _
    $region35: #{tpu_custom_call.1} parent=1 // pred_check_branch
      %37 = sbr.rel (0) target = $region37
    $region36: #{tpu_custom_call.1} parent=1 // pred_region
      _
    $region37: #{tpu_custom_call.1} parent=1 // pred_fallthru
      _
    // Predicated region
    $region38: #{tpu_custom_call.1} parent=1 // pred_check
      _
    $region39: #{tpu_custom_call.1} parent=1 // pred_check_branch
      %39 = sbr.rel (0) target = $region41
    $region40: #{tpu_custom_call.1} parent=1 // pred_region
      _
    $region41: #{tpu_custom_call.1} parent=1 // pred_fallthru
      _
    // Predicated region
    $region42: #{tpu_custom_call.1} parent=1 // pred_check
      _
    $region43: #{tpu_custom_call.1} parent=1 // pred_check_branch
      %41 = sbr.rel (0) target = $region45
    $region44: #{tpu_custom_call.1} parent=1 // pred_region
      _
    $region45: #{tpu_custom_call.1} parent=1 // pred_fallthru
      _
    // Predicated region
    $region46: #{tpu_custom_call.1} parent=1 // pred_check
      _
    $region47: #{tpu_custom_call.1} parent=1 // pred_check_branch
      %43 = sbr.rel (0) target = $region49
    $region48: #{tpu_custom_call.1} parent=1 // pred_region
      _
    $region49: #{tpu_custom_call.1} parent=1 // pred_fallthru
      _
    // Predicated region
    $region50: #{tpu_custom_call.1} parent=1 // pred_check
      _
    $region51: #{tpu_custom_call.1} parent=1 // pred_check_branch
      %45 = sbr.rel (0) target = $region53
    $region52: #{tpu_custom_call.1} parent=1 // pred_region
      _
    $region53: #{tpu_custom_call.1} parent=1 // pred_fallthru
      _
    // Predicated region
    $region54: #{tpu_custom_call.1} parent=1 // pred_check
      _
    $region55: #{tpu_custom_call.1} parent=1 // pred_check_branch
      %47 = sbr.rel (0) target = $region57
    $region56: #{tpu_custom_call.1} parent=1 // pred_region
      _
    $region57: #{tpu_custom_call.1} parent=1 // pred_fallthru
      _
    %v48 = vld [vmem:[%s0] sm:$0xff]
    %v49 = vld [vmem:[%s0 + $0x8] sm:$0xff]
    %v50 = vld [vmem:[%s0 + $0x10] sm:$0xff]
    %v51 = vld [vmem:[%s0 + $0x18] sm:$0xff]
    %v52 = vld [vmem:[%s1] sm:$0xf]
    %v53 = vld [vmem:[%s1 + $0x4] sm:$0xf]
    %v54 = vld [vmem:[%s1 + $0x8] sm:$0xf]
    %v55 = vld [vmem:[%s1 + $0xc] sm:$0xf]
    %v56 = vld [vmem:[%s1 + $0x14] sm:$0xf]
    %v57 = vld [vmem:[%s1 + $0x18] sm:$0xf]
    %v58 = vld [vmem:[%s1 + $0x1c] sm:$0xf]
    %v59 = vld [vmem:[%s1 + $0x20] sm:$0xf]
    %v60 = vld [vmem:[%s2] sm:$0xff]
    %v61 = vld [vmem:[%s2 + $0x8] sm:$0xff]
    %v62 = vld [vmem:[%s2 + $0x10] sm:$0xff]
    %v63 = vld [vmem:[%s2 + $0x18] sm:$0xff]
    %v64 = vld [vmem:[%s2 + $0x20] sm:$0xff]
    %v65 = vld [vmem:[%s2 + $0x28] sm:$0xff]
    %v66 = vld [vmem:[%s2 + $0x30] sm:$0xff]
    %v67 = vld [vmem:[%s2 + $0x38] sm:$0xff]
    %v68 = vld [vmem:[%s2 + $0x40] sm:$0xff]
    %v69 = vld [vmem:[%s2 + $0x48] sm:$0xff]
    %v70 = vld [vmem:[%s2 + $0x50] sm:$0xff]
    %v71 = vld [vmem:[%s2 + $0x58] sm:$0xff]
    %v72 = vld [vmem:[%s2 + $0x60] sm:$0xff]
    %v73 = vld [vmem:[%s2 + $0x68] sm:$0xff]
    %v74 = vld [vmem:[%s2 + $0x70] sm:$0xff]
    %v75 = vld [vmem:[%s2 + $0x78] sm:$0xff]
    %v76 = vld [vmem:[%s2 + $0x80] sm:$0xff]
    %v77 = vld [vmem:[%s2 + $0x88] sm:$0xff]
    %v78 = vld [vmem:[%s2 + $0x90] sm:$0xff]
    %v79 = vld [vmem:[%s2 + $0x98] sm:$0xff]
    %v80 = vld [vmem:[%s2 + $0xa0] sm:$0xff]
    %v81 = vld [vmem:[%s2 + $0xa8] sm:$0xff]
    %v82 = vld [vmem:[%s2 + $0xb0] sm:$0xff]
    %v83 = vld [vmem:[%s2 + $0xb8] sm:$0xff]
    %v84 = vld [vmem:[%s2 + $0xc0] sm:$0xff]
    %v85 = vld [vmem:[%s2 + $0xc8] sm:$0xff]
    %v86 = vld [vmem:[%s2 + $0xd0] sm:$0xff]
    %v87 = vld [vmem:[%s2 + $0xd8] sm:$0xff]
    %v88 = vld [vmem:[%s2 + $0xe0] sm:$0xff]
    %v89 = vld [vmem:[%s2 + $0xe8] sm:$0xff]
    %v90 = vld [vmem:[%s2 + $0xf0] sm:$0xff]
    %v91 = vld [vmem:[%s2 + $0xf8] sm:$0xff]
    %v92 = vld [vmem:[%s2 + $0x100] sm:$0xff]
    %v93 = vld [vmem:[%s2 + $0x108] sm:$0xff]
    %v94 = vld [vmem:[%s2 + $0x110] sm:$0xff]
    %v95 = vld [vmem:[%s2 + $0x118] sm:$0xff]
    %v96 = vld [vmem:[%s2 + $0x120] sm:$0xff]
    %v97 = vld [vmem:[%s2 + $0x128] sm:$0xff]
    %v98 = vld [vmem:[%s2 + $0x130] sm:$0xff]
    %v99 = vld [vmem:[%s2 + $0x138] sm:$0xff]
    %v100 = vld [vmem:[%s2 + $0x140] sm:$0xff]
    %v101 = vld [vmem:[%s2 + $0x148] sm:$0xff]
    %v102 = vld [vmem:[%s2 + $0x150] sm:$0xff]
    %v103 = vld [vmem:[%s2 + $0x158] sm:$0xff]
    %v104 = vld [vmem:[%s2 + $0x160] sm:$0xff]
    %v105 = vld [vmem:[%s2 + $0x168] sm:$0xff]
    %v106 = vld [vmem:[%s2 + $0x170] sm:$0xff]
    %v107 = vld [vmem:[%s2 + $0x178] sm:$0xff]
    %v108 = vld [vmem:[%s2 + $0x180] sm:$0xff]
    %v109 = vld [vmem:[%s2 + $0x188] sm:$0xff]
    %v110 = vld [vmem:[%s2 + $0x190] sm:$0xff]
    %v111 = vld [vmem:[%s2 + $0x198] sm:$0xff]
    %v112 = vld [vmem:[%s2 + $0x1a0] sm:$0xff]
    %v113 = vld [vmem:[%s2 + $0x1a8] sm:$0xff]
    %v114 = vld [vmem:[%s2 + $0x1b0] sm:$0xff]
    %v115 = vld [vmem:[%s2 + $0x1b8] sm:$0xff]
    %v116 = vld [vmem:[%s2 + $0x1c0] sm:$0xff]
    %v117 = vld [vmem:[%s2 + $0x1c8] sm:$0xff]
    %v118 = vld [vmem:[%s2 + $0x1d0] sm:$0xff]
    %v119 = vld [vmem:[%s2 + $0x1d8] sm:$0xff]
    %v120 = vld [vmem:[%s2 + $0x1e0] sm:$0xff]
    %v121 = vld [vmem:[%s2 + $0x1e8] sm:$0xff]
    %v122 = vld [vmem:[%s2 + $0x1f0] sm:$0xff]
    %v123 = vld [vmem:[%s2 + $0x1f8] sm:$0xff]
    %v124 = vld [vmem:[%s3] sm:$0xff]
    %129 = vrot.lane.b32.xlu0 %v48, 17
    %v130 = vpop.permute.xlu0 %129
    %131 = vrot.lane.b32.xlu0 %v49, 17
    %v132 = vpop.permute.xlu0 %131
    %133 = vrot.lane.b32.xlu0 %v50, 17
    %v134 = vpop.permute.xlu0 %133
    %135 = vrot.lane.b32.xlu0 %v51, 17
    %v136 = vpop.permute.xlu0 %135
    %vm137 = vcmask 138240
    %v138 = vsel %vm137, %v130, %v132
    %v139 = vsel %vm137, %v132, %v134
    %v140 = vsel %vm137, %v134, %v136
    %v146 = vsel %vm137, 0.0, %v130
    %v147 = vsel %vm137, %v136, 0.0
    %v149 = vlaneseq
    %v150 = vshrl.u32 %v149, 7
    %v151 = vsub.s32 0, %v150
    %v152 = vrot.slane %v52, %v151
    %v153 = vlaneseq
    %v154 = vshrl.u32 %v153, 7
    %v155 = vsub.s32 1, %v154
    %v156 = vrot.slane %v52, %v155
    %v157 = vlaneseq
    %v158 = vshrl.u32 %v157, 7
    %v159 = vsub.s32 2, %v158
    %v160 = vrot.slane %v52, %v159
    %v161 = vlaneseq
    %v162 = vshrl.u32 %v161, 7
    %v163 = vsub.s32 3, %v162
    %v164 = vrot.slane %v52, %v163
    %v169 = vmul.f32 %v146, %v152
    %v170 = vmul.f32 %v138, %v156
    %v171 = vmul.f32 %v139, %v160
    %v172 = vmul.f32 %v140, %v164
    %v174 = vlaneseq
    %v175 = vshrl.u32 %v174, 7
    %v176 = vsub.s32 0, %v175
    %v177 = vrot.slane %v53, %v176
    %v178 = vlaneseq
    %v179 = vshrl.u32 %v178, 7
    %v180 = vsub.s32 1, %v179
    %v181 = vrot.slane %v53, %v180
    %v182 = vlaneseq
    %v183 = vshrl.u32 %v182, 7
    %v184 = vsub.s32 2, %v183
    %v185 = vrot.slane %v53, %v184
    %v186 = vlaneseq
    %v187 = vshrl.u32 %v186, 7
    %v188 = vsub.s32 3, %v187
    %v189 = vrot.slane %v53, %v188
    %190 = vrot.lane.b32.xlu0 %v177, 1
    %v191 = vpop.permute.xlu0 %190
    %192 = vrot.lane.b32.xlu0 %v181, 1
    %v193 = vpop.permute.xlu0 %192
    %194 = vrot.lane.b32.xlu0 %v185, 1
    %v195 = vpop.permute.xlu0 %194
    %196 = vrot.lane.b32.xlu0 %v189, 1
    %v197 = vpop.permute.xlu0 %196
    %vm198 = vcmask 7168
    %v199 = vsel %vm198, %v191, %v193
    %v200 = vsel %vm198, %v193, %v195
    %v201 = vsel %vm198, %v195, %v197
    %v207 = vmul.f32 %v146, %v191
    %v208 = vmul.f32 %v138, %v199
    %v209 = vmul.f32 %v139, %v200
    %v210 = vmul.f32 %v140, %v201
    %v211 = vmul.f32 %v147, %v197
    %v213 = vlaneseq
    %v214 = vshrl.u32 %v213, 7
    %v215 = vsub.s32 0, %v214
    %v216 = vrot.slane %v54, %v215
    %v217 = vlaneseq
    %v218 = vshrl.u32 %v217, 7
    %v219 = vsub.s32 1, %v218
    %v220 = vrot.slane %v54, %v219
    %v221 = vlaneseq
    %v222 = vshrl.u32 %v221, 7
    %v223 = vsub.s32 2, %v222
    %v224 = vrot.slane %v54, %v223
    %v225 = vlaneseq
    %v226 = vshrl.u32 %v225, 7
    %v227 = vsub.s32 3, %v226
    %v228 = vrot.slane %v54, %v227
    %229 = vrot.lane.b32.xlu0 %v216, 2
    %v230 = vpop.permute.xlu0 %229
    %231 = vrot.lane.b32.xlu0 %v220, 2
    %v232 = vpop.permute.xlu0 %231
    %233 = vrot.lane.b32.xlu0 %v224, 2
    %v234 = vpop.permute.xlu0 %233
    %235 = vrot.lane.b32.xlu0 %v228, 2
    %v236 = vpop.permute.xlu0 %235
    %vm237 = vcmask 15360
    %v238 = vsel %vm237, %v230, %v232
    %v239 = vsel %vm237, %v232, %v234
    %v240 = vsel %vm237, %v234, %v236
    %v246 = vmul.f32 %v146, %v230
    %v247 = vmul.f32 %v138, %v238
    %v248 = vmul.f32 %v139, %v239
    %v249 = vmul.f32 %v140, %v240
    %v250 = vmul.f32 %v147, %v236
    %v252 = vlaneseq
    %v253 = vshrl.u32 %v252, 7
    %v254 = vsub.s32 0, %v253
    %v255 = vrot.slane %v55, %v254
    %v256 = vlaneseq
    %v257 = vshrl.u32 %v256, 7
    %v258 = vsub.s32 1, %v257
    %v259 = vrot.slane %v55, %v258
    %v260 = vlaneseq
    %v261 = vshrl.u32 %v260, 7
    %v262 = vsub.s32 2, %v261
    %v263 = vrot.slane %v55, %v262
    %v264 = vlaneseq
    %v265 = vshrl.u32 %v264, 7
    %v266 = vsub.s32 3, %v265
    %v267 = vrot.slane %v55, %v266
    %268 = vrot.lane.b32.xlu0 %v255, 16
    %v269 = vpop.permute.xlu0 %268
    %270 = vrot.lane.b32.xlu0 %v259, 16
    %v271 = vpop.permute.xlu0 %270
    %272 = vrot.lane.b32.xlu0 %v263, 16
    %v273 = vpop.permute.xlu0 %272
    %274 = vrot.lane.b32.xlu0 %v267, 16
    %v275 = vpop.permute.xlu0 %274
    %vm276 = vcmask 130048
    %v277 = vsel %vm276, %v269, %v271
    %v278 = vsel %vm276, %v271, %v273
    %v279 = vsel %vm276, %v273, %v275
    %v285 = vmul.f32 %v146, %v269
    %v286 = vmul.f32 %v138, %v277
    %v287 = vmul.f32 %v139, %v278
    %v288 = vmul.f32 %v140, %v279
    %v289 = vmul.f32 %v147, %v275
    %v291 = vlaneseq
    %v292 = vshrl.u32 %v291, 7
    %v293 = vsub.s32 0, %v292
    %v294 = vrot.slane %v56, %v293
    %v295 = vlaneseq
    %v296 = vshrl.u32 %v295, 7
    %v297 = vsub.s32 1, %v296
    %v298 = vrot.slane %v56, %v297
    %v299 = vlaneseq
    %v300 = vshrl.u32 %v299, 7
    %v301 = vsub.s32 2, %v300
    %v302 = vrot.slane %v56, %v301
    %v303 = vlaneseq
    %v304 = vshrl.u32 %v303, 7
    %v305 = vsub.s32 3, %v304
    %v306 = vrot.slane %v56, %v305
    %307 = vrot.lane.b32.xlu0 %v294, 18
    %v308 = vpop.permute.xlu0 %307
    %309 = vrot.lane.b32.xlu0 %v298, 18
    %v310 = vpop.permute.xlu0 %309
    %311 = vrot.lane.b32.xlu0 %v302, 18
    %v312 = vpop.permute.xlu0 %311
    %313 = vrot.lane.b32.xlu0 %v306, 18
    %v314 = vpop.permute.xlu0 %313
    %vm315 = vcmask 146432
    %v316 = vsel %vm315, %v308, %v310
    %v317 = vsel %vm315, %v310, %v312
    %v318 = vsel %vm315, %v312, %v314
    %v324 = vmul.f32 %v146, %v308
    %v325 = vmul.f32 %v138, %v316
    %v326 = vmul.f32 %v139, %v317
    %v327 = vmul.f32 %v140, %v318
    %v328 = vmul.f32 %v147, %v314
    %v330 = vlaneseq
    %v331 = vshrl.u32 %v330, 7
    %v332 = vsub.s32 0, %v331
    %v333 = vrot.slane %v57, %v332
    %v334 = vlaneseq
    %v335 = vshrl.u32 %v334, 7
    %v336 = vsub.s32 1, %v335
    %v337 = vrot.slane %v57, %v336
    %v338 = vlaneseq
    %v339 = vshrl.u32 %v338, 7
    %v340 = vsub.s32 2, %v339
    %v341 = vrot.slane %v57, %v340
    %v342 = vlaneseq
    %v343 = vshrl.u32 %v342, 7
    %v344 = vsub.s32 3, %v343
    %v345 = vrot.slane %v57, %v344
    %346 = vrot.lane.b32.xlu0 %v333, 32
    %v347 = vpop.permute.xlu0 %346
    %348 = vrot.lane.b32.xlu0 %v337, 32
    %v349 = vpop.permute.xlu0 %348
    %350 = vrot.lane.b32.xlu0 %v341, 32
    %v351 = vpop.permute.xlu0 %350
    %352 = vrot.lane.b32.xlu0 %v345, 32
    %v353 = vpop.permute.xlu0 %352
    %vm354 = vcmask 261120
    %v355 = vsel %vm354, %v347, %v349
    %v356 = vsel %vm354, %v349, %v351
    %v357 = vsel %vm354, %v351, %v353
    %v363 = vmul.f32 %v146, %v347
    %v364 = vmul.f32 %v138, %v355
    %v365 = vmul.f32 %v139, %v356
    %v366 = vmul.f32 %v140, %v357
    %v367 = vmul.f32 %v147, %v353
    %v369 = vlaneseq
    %v370 = vshrl.u32 %v369, 7
    %v371 = vsub.s32 0, %v370
    %v372 = vrot.slane %v58, %v371
    %v373 = vlaneseq
    %v374 = vshrl.u32 %v373, 7
    %v375 = vsub.s32 1, %v374
    %v376 = vrot.slane %v58, %v375
    %v377 = vlaneseq
    %v378 = vshrl.u32 %v377, 7
    %v379 = vsub.s32 2, %v378
    %v380 = vrot.slane %v58, %v379
    %v381 = vlaneseq
    %v382 = vshrl.u32 %v381, 7
    %v383 = vsub.s32 3, %v382
    %v384 = vrot.slane %v58, %v383
    %385 = vrot.lane.b32.xlu0 %v372, 33
    %v386 = vpop.permute.xlu0 %385
    %387 = vrot.lane.b32.xlu0 %v376, 33
    %v388 = vpop.permute.xlu0 %387
    %389 = vrot.lane.b32.xlu0 %v380, 33
    %v390 = vpop.permute.xlu0 %389
    %391 = vrot.lane.b32.xlu0 %v384, 33
    %v392 = vpop.permute.xlu0 %391
    %vm393 = vcmask 269312
    %v394 = vsel %vm393, %v386, %v388
    %v395 = vsel %vm393, %v388, %v390
    %v396 = vsel %vm393, %v390, %v392
    %v402 = vmul.f32 %v146, %v386
    %v403 = vmul.f32 %v138, %v394
    %v404 = vmul.f32 %v139, %v395
    %v405 = vmul.f32 %v140, %v396
    %v406 = vmul.f32 %v147, %v392
    %v408 = vlaneseq
    %v409 = vshrl.u32 %v408, 7
    %v410 = vsub.s32 0, %v409
    %v411 = vrot.slane %v59, %v410
    %v412 = vlaneseq
    %v413 = vshrl.u32 %v412, 7
    %v414 = vsub.s32 1, %v413
    %v415 = vrot.slane %v59, %v414
    %v416 = vlaneseq
    %v417 = vshrl.u32 %v416, 7
    %v418 = vsub.s32 2, %v417
    %v419 = vrot.slane %v59, %v418
    %v420 = vlaneseq
    %v421 = vshrl.u32 %v420, 7
    %v422 = vsub.s32 3, %v421
    %v423 = vrot.slane %v59, %v422
    %424 = vrot.lane.b32.xlu0 %v411, 34
    %v425 = vpop.permute.xlu0 %424
    %426 = vrot.lane.b32.xlu0 %v415, 34
    %v427 = vpop.permute.xlu0 %426
    %428 = vrot.lane.b32.xlu0 %v419, 34
    %v429 = vpop.permute.xlu0 %428
    %430 = vrot.lane.b32.xlu0 %v423, 34
    %v431 = vpop.permute.xlu0 %430
    %vm432 = vcmask 277504
    %v433 = vsel %vm432, %v425, %v427
    %v434 = vsel %vm432, %v427, %v429
    %v435 = vsel %vm432, %v429, %v431
    %v441 = vmul.f32 %v146, %v425
    %v442 = vmul.f32 %v138, %v433
    %v443 = vmul.f32 %v139, %v434
    %v444 = vmul.f32 %v140, %v435
    %v445 = vmul.f32 %v147, %v431
    %451 = vrot.lane.b32.xlu0 %v207, 127
    %v452 = vpop.permute.xlu0 %451
    %453 = vrot.lane.b32.xlu0 %v208, 127
    %v454 = vpop.permute.xlu0 %453
    %455 = vrot.lane.b32.xlu0 %v209, 127
    %v456 = vpop.permute.xlu0 %455
    %457 = vrot.lane.b32.xlu0 %v210, 127
    %v458 = vpop.permute.xlu0 %457
    %459 = vrot.lane.b32.xlu0 %v211, 127
    %v460 = vpop.permute.xlu0 %459
    %vm461 = vcmask 1039360
    %v462 = vsel %vm461, %v452, %v454
    %v463 = vsel %vm461, %v454, %v456
    %v464 = vsel %vm461, %v456, %v458
    %v465 = vsel %vm461, %v458, %v460
    %475 = vrot.lane.b32.xlu0 %v246, 126
    %v476 = vpop.permute.xlu0 %475
    %477 = vrot.lane.b32.xlu0 %v247, 126
    %v478 = vpop.permute.xlu0 %477
    %479 = vrot.lane.b32.xlu0 %v248, 126
    %v480 = vpop.permute.xlu0 %479
    %481 = vrot.lane.b32.xlu0 %v249, 126
    %v482 = vpop.permute.xlu0 %481
    %483 = vrot.lane.b32.xlu0 %v250, 126
    %v484 = vpop.permute.xlu0 %483
    %vm485 = vcmask 1031168
    %v486 = vsel %vm485, %v476, %v478
    %v487 = vsel %vm485, %v478, %v480
    %v488 = vsel %vm485, %v480, %v482
    %v489 = vsel %vm485, %v482, %v484
    %499 = vrot.lane.b32.xlu0 %v285, 112
    %v500 = vpop.permute.xlu0 %499
    %501 = vrot.lane.b32.xlu0 %v286, 112
    %v502 = vpop.permute.xlu0 %501
    %503 = vrot.lane.b32.xlu0 %v287, 112
    %v504 = vpop.permute.xlu0 %503
    %505 = vrot.lane.b32.xlu0 %v288, 112
    %v506 = vpop.permute.xlu0 %505
    %507 = vrot.lane.b32.xlu0 %v289, 112
    %v508 = vpop.permute.xlu0 %507
    %vm509 = vcmask 916480
    %v510 = vsel %vm509, %v500, %v502
    %v511 = vsel %vm509, %v502, %v504
    %v512 = vsel %vm509, %v504, %v506
    %v513 = vsel %vm509, %v506, %v508
    %523 = vrot.lane.b32.xlu0 %v324, 110
    %v524 = vpop.permute.xlu0 %523
    %525 = vrot.lane.b32.xlu0 %v325, 110
    %v526 = vpop.permute.xlu0 %525
    %527 = vrot.lane.b32.xlu0 %v326, 110
    %v528 = vpop.permute.xlu0 %527
    %529 = vrot.lane.b32.xlu0 %v327, 110
    %v530 = vpop.permute.xlu0 %529
    %531 = vrot.lane.b32.xlu0 %v328, 110
    %v532 = vpop.permute.xlu0 %531
    %vm533 = vcmask 900096
    %v534 = vsel %vm533, %v524, %v526
    %v535 = vsel %vm533, %v526, %v528
    %v536 = vsel %vm533, %v528, %v530
    %v537 = vsel %vm533, %v530, %v532
    %547 = vrot.lane.b32.xlu0 %v363, 96
    %v548 = vpop.permute.xlu0 %547
    %549 = vrot.lane.b32.xlu0 %v364, 96
    %v550 = vpop.permute.xlu0 %549
    %551 = vrot.lane.b32.xlu0 %v365, 96
    %v552 = vpop.permute.xlu0 %551
    %553 = vrot.lane.b32.xlu0 %v366, 96
    %v554 = vpop.permute.xlu0 %553
    %555 = vrot.lane.b32.xlu0 %v367, 96
    %v556 = vpop.permute.xlu0 %555
    %vm557 = vcmask 785408
    %v558 = vsel %vm557, %v548, %v550
    %v559 = vsel %vm557, %v550, %v552
    %v560 = vsel %vm557, %v552, %v554
    %v561 = vsel %vm557, %v554, %v556
    %571 = vrot.lane.b32.xlu0 %v402, 95
    %v572 = vpop.permute.xlu0 %571
    %573 = vrot.lane.b32.xlu0 %v403, 95
    %v574 = vpop.permute.xlu0 %573
    %575 = vrot.lane.b32.xlu0 %v404, 95
    %v576 = vpop.permute.xlu0 %575
    %577 = vrot.lane.b32.xlu0 %v405, 95
    %v578 = vpop.permute.xlu0 %577
    %579 = vrot.lane.b32.xlu0 %v406, 95
    %v580 = vpop.permute.xlu0 %579
    %vm581 = vcmask 777216
    %v582 = vsel %vm581, %v572, %v574
    %v583 = vsel %vm581, %v574, %v576
    %v584 = vsel %vm581, %v576, %v578
    %v585 = vsel %vm581, %v578, %v580
    %595 = vrot.lane.b32.xlu0 %v441, 94
    %v596 = vpop.permute.xlu0 %595
    %597 = vrot.lane.b32.xlu0 %v442, 94
    %v598 = vpop.permute.xlu0 %597
    %599 = vrot.lane.b32.xlu0 %v443, 94
    %v600 = vpop.permute.xlu0 %599
    %601 = vrot.lane.b32.xlu0 %v444, 94
    %v602 = vpop.permute.xlu0 %601
    %603 = vrot.lane.b32.xlu0 %v445, 94
    %v604 = vpop.permute.xlu0 %603
    %vm605 = vcmask 769024
    %v606 = vsel %vm605, %v596, %v598
    %v607 = vsel %vm605, %v598, %v600
    %v608 = vsel %vm605, %v600, %v602
    %v609 = vsel %vm605, %v602, %v604
    %v614 = vld [vmem:[%s4] sm:$0xff]
    %v615 = vld [vmem:[%s5] sm:$0xff]
    %617 = vset.pattern.permute.xlu0 0
    %618 = vperm.xlu0 %617, %v615
    %v619 = vpop.permute.xlu0 %618
    %vm621 = vcmask 588800
    %v623 = vsel %vm621, %v614, 0
    %625 = vmatprep.subr.mxu0 %v170
    %626 = vmatpush1.msra.mxu0 %v169
    %627 = vmatprep.subr.mxu0 %v463
    %628 = vmatpush1.msra.mxu0 %v462
    %629 = vmatprep.subr.mxu0 %v487
    %630 = vmatpush1.msra.mxu0 %v486
    %631 = vmatprep.subr.mxu0 %v511
    %632 = vmatpush1.msra.mxu0 %v510
    %633 = vmatprep.subr.mxu0 %v49
    %634 = vmatpush1.msra.mxu0 %v48
    %635 = vmatprep.subr.mxu0 %v535
    %636 = vmatpush1.msra.mxu0 %v534
    %637 = vmatprep.subr.mxu0 %v559
    %638 = vmatpush1.msra.mxu0 %v558
    %639 = vmatprep.subr.mxu0 %v583
    %640 = vmatpush1.msra.mxu0 %v582
    %641 = vmatprep.subr.mxu0 %v607
    %642 = vmatpush1.msra.mxu0 %v606
    %643 = vmatprep.subr.mxu0 0.0
    %644 = vmatpush1.msra.mxu0 0.0
    %645 = vmatprep.subr.mxu0 0.0
    %646 = vmatpush1.msra.mxu0 0.0
    %647 = vmatprep.subr.mxu0 0.0
    %648 = vmatpush1.msra.mxu0 0.0
    %649 = vmatprep.subr.mxu0 0.0
    %650 = vmatpush1.msra.mxu0 0.0
    %651 = vmatprep.subr.mxu0 0.0
    %652 = vmatpush1.msra.mxu0 0.0
    %653 = vmatprep.subr.mxu0 0.0
    %654 = vmatpush1.msra.mxu0 0.0
    %655 = vmatprep.subr.mxu0 0.0
    %656 = vmatpush1.msra.mxu0 0.0
    %657 = vmatprep.subr.mxu0 0.0
    %658 = vmatpush1.msra.mxu0 0.0
    %659 = vmatprep.subr.mxu0 0.0
    %660 = vmatpush1.msra.mxu0 0.0
    %661 = vmatprep.subr.mxu0 0.0
    %662 = vmatpush1.msra.mxu0 0.0
    %663 = vmatprep.subr.mxu0 0.0
    %664 = vmatpush1.msra.mxu0 0.0
    %665 = vmatprep.subr.mxu0 0.0
    %666 = vmatpush1.msra.mxu0 0.0
    %667 = vmatprep.subr.mxu0 0.0
    %668 = vmatpush1.msra.mxu0 0.0
    %669 = vmatprep.subr.mxu0 0.0
    %670 = vmatpush1.msra.mxu0 0.0
    %671 = vmatprep.subr.mxu0 0.0
    %672 = vmatpush1.msra.mxu0 0.0
    %673 = vmatprep.subr.mxu0 0.0
    %674 = vmatpush1.msra.mxu0 0.0
    %675 = vmatprep.subr.mxu0 0.0
    %676 = vmatpush1.msra.mxu0 0.0
    %677 = vmatprep.subr.mxu0 0.0
    %678 = vmatpush1.msra.mxu0 0.0
    %679 = vmatprep.subr.mxu0 0.0
    %680 = vmatpush1.msra.mxu0 0.0
    %681 = vmatprep.subr.mxu0 0.0
    %682 = vmatpush1.msra.mxu0 0.0
    %683 = vmatprep.subr.mxu0 0.0
    %684 = vmatpush1.msra.mxu0 0.0
    %685 = vmatprep.subr.mxu0 0.0
    %686 = vmatpush1.msra.mxu0 0.0
    %687 = vmatprep.subr.mxu0 0.0
    %688 = vmatpush1.msra.mxu0 0.0
    %689 = vmatprep.mubr.f32.mxu0 0.0
    %690 = vmatmul.mubr.f32.gmra.mrb[0].mxu0 %v623
    %v691 = vpop.f32.mrb[0].mxu0
    %v692 = vadd.f32 %v619, %v691
    %v693 = vpop.f32.mrb[0].mxu0
    %v694 = vadd.f32 %v619, %v693
    %695 = vdwg.mxu0
    %696 = vmatprep.subr.mxu0 %v172
    %697 = vmatpush1.msra.mxu0 %v171
    %698 = vmatprep.subr.mxu0 %v465
    %699 = vmatpush1.msra.mxu0 %v464
    %700 = vmatprep.subr.mxu0 %v489
    %701 = vmatpush1.msra.mxu0 %v488
    %702 = vmatprep.subr.mxu0 %v513
    %703 = vmatpush1.msra.mxu0 %v512
    %704 = vmatprep.subr.mxu0 %v51
    %705 = vmatpush1.msra.mxu0 %v50
    %706 = vmatprep.subr.mxu0 %v537
    %707 = vmatpush1.msra.mxu0 %v536
    %708 = vmatprep.subr.mxu0 %v561
    %709 = vmatpush1.msra.mxu0 %v560
    %710 = vmatprep.subr.mxu0 %v585
    %711 = vmatpush1.msra.mxu0 %v584
    %712 = vmatprep.subr.mxu0 %v609
    %713 = vmatpush1.msra.mxu0 %v608
    %714 = vmatprep.subr.mxu0 0.0
    %715 = vmatpush1.msra.mxu0 0.0
    %716 = vmatprep.subr.mxu0 0.0
    %717 = vmatpush1.msra.mxu0 0.0
    %718 = vmatprep.subr.mxu0 0.0
    %719 = vmatpush1.msra.mxu0 0.0
    %720 = vmatprep.subr.mxu0 0.0
    %721 = vmatpush1.msra.mxu0 0.0
    %722 = vmatprep.subr.mxu0 0.0
    %723 = vmatpush1.msra.mxu0 0.0
    %724 = vmatprep.subr.mxu0 0.0
    %725 = vmatpush1.msra.mxu0 0.0
    %726 = vmatprep.subr.mxu0 0.0
    %727 = vmatpush1.msra.mxu0 0.0
    %728 = vmatprep.subr.mxu0 0.0
    %729 = vmatpush1.msra.mxu0 0.0
    %730 = vmatprep.subr.mxu0 0.0
    %731 = vmatpush1.msra.mxu0 0.0
    %732 = vmatprep.subr.mxu0 0.0
    %733 = vmatpush1.msra.mxu0 0.0
    %734 = vmatprep.subr.mxu0 0.0
    %735 = vmatpush1.msra.mxu0 0.0
    %736 = vmatprep.subr.mxu0 0.0
    %737 = vmatpush1.msra.mxu0 0.0
    %738 = vmatprep.subr.mxu0 0.0
    %739 = vmatpush1.msra.mxu0 0.0
    %740 = vmatprep.subr.mxu0 0.0
    %741 = vmatpush1.msra.mxu0 0.0
    %742 = vmatprep.subr.mxu0 0.0
    %743 = vmatpush1.msra.mxu0 0.0
    %744 = vmatprep.subr.mxu0 0.0
    %745 = vmatpush1.msra.mxu0 0.0
    %746 = vmatprep.subr.mxu0 0.0
    %747 = vmatpush1.msra.mxu0 0.0
    %748 = vmatprep.subr.mxu0 0.0
    %749 = vmatpush1.msra.mxu0 0.0
    %750 = vmatprep.subr.mxu0 0.0
    %751 = vmatpush1.msra.mxu0 0.0
    %752 = vmatprep.subr.mxu0 0.0
    %753 = vmatpush1.msra.mxu0 0.0
    %754 = vmatprep.subr.mxu0 0.0
    %755 = vmatpush1.msra.mxu0 0.0
    %756 = vmatprep.subr.mxu0 0.0
    %757 = vmatpush1.msra.mxu0 0.0
    %758 = vmatprep.subr.mxu0 0.0
    %759 = vmatpush1.msra.mxu0 0.0
    %760 = vmatprep.mubr.f32.mxu0 0.0
    %761 = vmatmul.mubr.f32.gmra.mrb[0].mxu0 %v623
    %v762 = vpop.f32.mrb[0].mxu0
    %v763 = vadd.f32 %v619, %v762
    %v764 = vpop.f32.mrb[0].mxu0
    %v765 = vadd.f32 %v619, %v764
    %766 = vdwg.mxu0
    %767 = vmatprep.subr.mxu0 0.0
    %768 = vmatpush1.msra.mxu0 %v60
    %769 = vmatprep.subr.mxu0 0.0
    %770 = vmatpush1.msra.mxu0 %v61
    %771 = vmatprep.subr.mxu0 0.0
    %772 = vmatpush1.msra.mxu0 %v62
    %773 = vmatprep.subr.mxu0 0.0
    %774 = vmatpush1.msra.mxu0 %v63
    %775 = vmatprep.subr.mxu0 0.0
    %776 = vmatpush1.msra.mxu0 %v64
    %777 = vmatprep.subr.mxu0 0.0
    %778 = vmatpush1.msra.mxu0 %v65
    %779 = vmatprep.subr.mxu0 0.0
    %780 = vmatpush1.msra.mxu0 %v66
    %781 = vmatprep.subr.mxu0 0.0
    %782 = vmatpush1.msra.mxu0 %v67
    %783 = vmatprep.subr.mxu0 0.0
    %784 = vmatpush1.msra.mxu0 %v68
    %785 = vmatprep.subr.mxu0 0.0
    %786 = vmatpush1.msra.mxu0 %v69
    %787 = vmatprep.subr.mxu0 0.0
    %788 = vmatpush1.msra.mxu0 %v70
    %789 = vmatprep.subr.mxu0 0.0
    %790 = vmatpush1.msra.mxu0 %v71
    %791 = vmatprep.subr.mxu0 0.0
    %792 = vmatpush1.msra.mxu0 %v72
    %793 = vmatprep.subr.mxu0 0.0
    %794 = vmatpush1.msra.mxu0 %v73
    %795 = vmatprep.subr.mxu0 0.0
    %796 = vmatpush1.msra.mxu0 %v74
    %797 = vmatprep.subr.mxu0 0.0
    %798 = vmatpush1.msra.mxu0 %v75
    %799 = vmatprep.subr.mxu0 0.0
    %800 = vmatpush1.msra.mxu0 %v76
    %801 = vmatprep.subr.mxu0 0.0
    %802 = vmatpush1.msra.mxu0 %v77
    %803 = vmatprep.subr.mxu0 0.0
    %804 = vmatpush1.msra.mxu0 %v78
    %805 = vmatprep.subr.mxu0 0.0
    %806 = vmatpush1.msra.mxu0 %v79
    %807 = vmatprep.subr.mxu0 0.0
    %808 = vmatpush1.msra.mxu0 %v80
    %809 = vmatprep.subr.mxu0 0.0
    %810 = vmatpush1.msra.mxu0 %v81
    %811 = vmatprep.subr.mxu0 0.0
    %812 = vmatpush1.msra.mxu0 %v82
    %813 = vmatprep.subr.mxu0 0.0
    %814 = vmatpush1.msra.mxu0 %v83
    %815 = vmatprep.subr.mxu0 0.0
    %816 = vmatpush1.msra.mxu0 %v84
    %817 = vmatprep.subr.mxu0 0.0
    %818 = vmatpush1.msra.mxu0 %v85
    %819 = vmatprep.subr.mxu0 0.0
    %820 = vmatpush1.msra.mxu0 %v86
    %821 = vmatprep.subr.mxu0 0.0
    %822 = vmatpush1.msra.mxu0 %v87
    %823 = vmatprep.subr.mxu0 0.0
    %824 = vmatpush1.msra.mxu0 %v88
    %825 = vmatprep.subr.mxu0 0.0
    %826 = vmatpush1.msra.mxu0 %v89
    %827 = vmatprep.subr.mxu0 0.0
    %828 = vmatpush1.msra.mxu0 %v90
    %829 = vmatprep.subr.mxu0 0.0
    %830 = vmatpush1.msra.mxu0 %v91
    %831 = vmatprep.mubr.f32.mxu0 %v694
    %832 = vmatmul.mubr.f32.gmra.mrb[0].mxu0 %v692
    %v833 = vpop.f32.mrb[0].mxu0
    %v834 = vadd.f32 0.0, %v833
    %v835 = vpop.f32.mrb[0].mxu0
    %836 = vdwg.mxu0
    %837 = vmatprep.subr.mxu0 0.0
    %838 = vmatpush1.msra.mxu0 %v92
    %839 = vmatprep.subr.mxu0 0.0
    %840 = vmatpush1.msra.mxu0 %v93
    %841 = vmatprep.subr.mxu0 0.0
    %842 = vmatpush1.msra.mxu0 %v94
    %843 = vmatprep.subr.mxu0 0.0
    %844 = vmatpush1.msra.mxu0 %v95
    %845 = vmatprep.subr.mxu0 0.0
    %846 = vmatpush1.msra.mxu0 %v96
    %847 = vmatprep.subr.mxu0 0.0
    %848 = vmatpush1.msra.mxu0 %v97
    %849 = vmatprep.subr.mxu0 0.0
    %850 = vmatpush1.msra.mxu0 %v98
    %851 = vmatprep.subr.mxu0 0.0
    %852 = vmatpush1.msra.mxu0 %v99
    %853 = vmatprep.subr.mxu0 0.0
    %854 = vmatpush1.msra.mxu0 %v100
    %855 = vmatprep.subr.mxu0 0.0
    %856 = vmatpush1.msra.mxu0 %v101
    %857 = vmatprep.subr.mxu0 0.0
    %858 = vmatpush1.msra.mxu0 %v102
    %859 = vmatprep.subr.mxu0 0.0
    %860 = vmatpush1.msra.mxu0 %v103
    %861 = vmatprep.subr.mxu0 0.0
    %862 = vmatpush1.msra.mxu0 %v104
    %863 = vmatprep.subr.mxu0 0.0
    %864 = vmatpush1.msra.mxu0 %v105
    %865 = vmatprep.subr.mxu0 0.0
    %866 = vmatpush1.msra.mxu0 %v106
    %867 = vmatprep.subr.mxu0 0.0
    %868 = vmatpush1.msra.mxu0 %v107
    %869 = vmatprep.subr.mxu0 0.0
    %870 = vmatpush1.msra.mxu0 %v108
    %871 = vmatprep.subr.mxu0 0.0
    %872 = vmatpush1.msra.mxu0 %v109
    %873 = vmatprep.subr.mxu0 0.0
    %874 = vmatpush1.msra.mxu0 %v110
    %875 = vmatprep.subr.mxu0 0.0
    %876 = vmatpush1.msra.mxu0 %v111
    %877 = vmatprep.subr.mxu0 0.0
    %878 = vmatpush1.msra.mxu0 %v112
    %879 = vmatprep.subr.mxu0 0.0
    %880 = vmatpush1.msra.mxu0 %v113
    %881 = vmatprep.subr.mxu0 0.0
    %882 = vmatpush1.msra.mxu0 %v114
    %883 = vmatprep.subr.mxu0 0.0
    %884 = vmatpush1.msra.mxu0 %v115
    %885 = vmatprep.subr.mxu0 0.0
    %886 = vmatpush1.msra.mxu0 %v116
    %887 = vmatprep.subr.mxu0 0.0
    %888 = vmatpush1.msra.mxu0 %v117
    %889 = vmatprep.subr.mxu0 0.0
    %890 = vmatpush1.msra.mxu0 %v118
    %891 = vmatprep.subr.mxu0 0.0
    %892 = vmatpush1.msra.mxu0 %v119
    %893 = vmatprep.subr.mxu0 0.0
    %894 = vmatpush1.msra.mxu0 %v120
    %895 = vmatprep.subr.mxu0 0.0
    %896 = vmatpush1.msra.mxu0 %v121
    %897 = vmatprep.subr.mxu0 0.0
    %898 = vmatpush1.msra.mxu0 %v122
    %899 = vmatprep.subr.mxu0 0.0
    %900 = vmatpush1.msra.mxu0 %v123
    %901 = vmatprep.mubr.f32.mxu0 %v765
    %902 = vmatmul.mubr.f32.gmra.mrb[0].mxu0 %v763
    %v903 = vpop.f32.mrb[0].mxu0
    %v904 = vadd.f32 %v834, %v903
    %v905 = vpop.f32.mrb[0].mxu0
    %906 = vdwg.mxu0
    %v907 = vmul.f32 %v904, 0.00390625
    %v909 = vcombine.high %v124, %v124
    %v911 = vunpack.c.l.s4 1983009808
    %v912 = vunpack.c.0.s8 %v911
    %v913 = vlaneseq
    %v914 = vshrl.u32 %v913, 7
    %v915 = vsub.s32 %v912, %v914
    %v916 = vrot.slane %v124, %v915
    %v918 = vunpack.c.l.s4 1983009808
    %v919 = vunpack.c.0.s8 %v918
    %v920 = vlaneseq
    %v921 = vshrl.u32 %v920, 7
    %v922 = vsub.s32 %v919, %v921
    %v923 = vrot.slane %v909, %v922
    %v924 = vcombine.high %v916, %v916
    %v925 = vcombine.high %v923, %v923
    %v927 = vsel %vm237, %v907, 0
    %vm929 = vcmask 1041408
    %v930 = vsel %vm929, %v916, 0
    %v932 = vsel %vm929, %v924, 0
    %v934 = vsel %vm929, %v923, 0
    %v936 = vsel %vm929, %v925, 0
    %938 = vmatprep.subr.mxu0 %v932
    %939 = vmatpush1.msra.mxu0 %v930
    %940 = vmatprep.subr.mxu0 0.0
    %941 = vmatpush1.msra.mxu0 0.0
    %942 = vmatprep.subr.mxu0 0.0
    %943 = vmatpush1.msra.mxu0 0.0
    %944 = vmatprep.subr.mxu0 0.0
    %945 = vmatpush1.msra.mxu0 0.0
    %946 = vmatprep.subr.mxu0 0.0
    %947 = vmatpush1.msra.mxu0 0.0
    %948 = vmatprep.subr.mxu0 0.0
    %949 = vmatpush1.msra.mxu0 0.0
    %950 = vmatprep.subr.mxu0 0.0
    %951 = vmatpush1.msra.mxu0 0.0
    %952 = vmatprep.subr.mxu0 0.0
    %953 = vmatpush1.msra.mxu0 0.0
    %954 = vmatprep.subr.mxu0 0.0
    %955 = vmatpush1.msra.mxu0 0.0
    %956 = vmatprep.subr.mxu0 0.0
    %957 = vmatpush1.msra.mxu0 0.0
    %958 = vmatprep.subr.mxu0 0.0
    %959 = vmatpush1.msra.mxu0 0.0
    %960 = vmatprep.subr.mxu0 0.0
    %961 = vmatpush1.msra.mxu0 0.0
    %962 = vmatprep.subr.mxu0 0.0
    %963 = vmatpush1.msra.mxu0 0.0
    %964 = vmatprep.subr.mxu0 0.0
    %965 = vmatpush1.msra.mxu0 0.0
    %966 = vmatprep.subr.mxu0 0.0
    %967 = vmatpush1.msra.mxu0 0.0
    %968 = vmatprep.subr.mxu0 0.0
    %969 = vmatpush1.msra.mxu0 0.0
    %970 = vmatprep.subr.mxu0 0.0
    %971 = vmatpush1.msra.mxu0 0.0
    %972 = vmatprep.subr.mxu0 0.0
    %973 = vmatpush1.msra.mxu0 0.0
    %974 = vmatprep.subr.mxu0 0.0
    %975 = vmatpush1.msra.mxu0 0.0
    %976 = vmatprep.subr.mxu0 0.0
    %977 = vmatpush1.msra.mxu0 0.0
    %978 = vmatprep.subr.mxu0 0.0
    %979 = vmatpush1.msra.mxu0 0.0
    %980 = vmatprep.subr.mxu0 0.0
    %981 = vmatpush1.msra.mxu0 0.0
    %982 = vmatprep.subr.mxu0 0.0
    %983 = vmatpush1.msra.mxu0 0.0
    %984 = vmatprep.subr.mxu0 0.0
    %985 = vmatpush1.msra.mxu0 0.0
    %986 = vmatprep.subr.mxu0 0.0
    %987 = vmatpush1.msra.mxu0 0.0
    %988 = vmatprep.subr.mxu0 0.0
    %989 = vmatpush1.msra.mxu0 0.0
    %990 = vmatprep.subr.mxu0 0.0
    %991 = vmatpush1.msra.mxu0 0.0
    %992 = vmatprep.subr.mxu0 0.0
    %993 = vmatpush1.msra.mxu0 0.0
    %994 = vmatprep.subr.mxu0 0.0
    %995 = vmatpush1.msra.mxu0 0.0
    %996 = vmatprep.subr.mxu0 0.0
    %997 = vmatpush1.msra.mxu0 0.0
    %998 = vmatprep.subr.mxu0 0.0
    %999 = vmatpush1.msra.mxu0 0.0
    %1000 = vmatprep.subr.mxu0 0.0
    %1001 = vmatpush1.msra.mxu0 0.0
    %1002 = vmatprep.mubr.f32.mxu0 0.0
    %1003 = vmatmul.mubr.f32.gmra.mrb[0].mxu0 %v927
    %v1004 = vpop.f32.mrb[0].mxu0
    %v1005 = vadd.f32 0.0, %v1004
    %v1006 = vpop.f32.mrb[0].mxu0
    %v1007 = vadd.f32 0.0, %v1006
    %1008 = vdwg.mxu0
    %1009 = vmatprep.subr.mxu0 %v936
    %1010 = vmatpush1.msra.mxu0 %v934
    %1011 = vmatprep.subr.mxu0 0.0
    %1012 = vmatpush1.msra.mxu0 0.0
    %1013 = vmatprep.subr.mxu0 0.0
    %1014 = vmatpush1.msra.mxu0 0.0
    %1015 = vmatprep.subr.mxu0 0.0
    %1016 = vmatpush1.msra.mxu0 0.0
    %1017 = vmatprep.subr.mxu0 0.0
    %1018 = vmatpush1.msra.mxu0 0.0
    %1019 = vmatprep.subr.mxu0 0.0
    %1020 = vmatpush1.msra.mxu0 0.0
    %1021 = vmatprep.subr.mxu0 0.0
    %1022 = vmatpush1.msra.mxu0 0.0
    %1023 = vmatprep.subr.mxu0 0.0
    %1024 = vmatpush1.msra.mxu0 0.0
    %1025 = vmatprep.subr.mxu0 0.0
    %1026 = vmatpush1.msra.mxu0 0.0
    %1027 = vmatprep.subr.mxu0 0.0
    %1028 = vmatpush1.msra.mxu0 0.0
    %1029 = vmatprep.subr.mxu0 0.0
    %1030 = vmatpush1.msra.mxu0 0.0
    %1031 = vmatprep.subr.mxu0 0.0
    %1032 = vmatpush1.msra.mxu0 0.0
    %1033 = vmatprep.subr.mxu0 0.0
    %1034 = vmatpush1.msra.mxu0 0.0
    %1035 = vmatprep.subr.mxu0 0.0
    %1036 = vmatpush1.msra.mxu0 0.0
    %1037 = vmatprep.subr.mxu0 0.0
    %1038 = vmatpush1.msra.mxu0 0.0
    %1039 = vmatprep.subr.mxu0 0.0
    %1040 = vmatpush1.msra.mxu0 0.0
    %1041 = vmatprep.subr.mxu0 0.0
    %1042 = vmatpush1.msra.mxu0 0.0
    %1043 = vmatprep.subr.mxu0 0.0
    %1044 = vmatpush1.msra.mxu0 0.0
    %1045 = vmatprep.subr.mxu0 0.0
    %1046 = vmatpush1.msra.mxu0 0.0
    %1047 = vmatprep.subr.mxu0 0.0
    %1048 = vmatpush1.msra.mxu0 0.0
    %1049 = vmatprep.subr.mxu0 0.0
    %1050 = vmatpush1.msra.mxu0 0.0
    %1051 = vmatprep.subr.mxu0 0.0
    %1052 = vmatpush1.msra.mxu0 0.0
    %1053 = vmatprep.subr.mxu0 0.0
    %1054 = vmatpush1.msra.mxu0 0.0
    %1055 = vmatprep.subr.mxu0 0.0
    %1056 = vmatpush1.msra.mxu0 0.0
    %1057 = vmatprep.subr.mxu0 0.0
    %1058 = vmatpush1.msra.mxu0 0.0
    %1059 = vmatprep.subr.mxu0 0.0
    %1060 = vmatpush1.msra.mxu0 0.0
    %1061 = vmatprep.subr.mxu0 0.0
    %1062 = vmatpush1.msra.mxu0 0.0
    %1063 = vmatprep.subr.mxu0 0.0
    %1064 = vmatpush1.msra.mxu0 0.0
    %1065 = vmatprep.subr.mxu0 0.0
    %1066 = vmatpush1.msra.mxu0 0.0
    %1067 = vmatprep.subr.mxu0 0.0
    %1068 = vmatpush1.msra.mxu0 0.0
    %1069 = vmatprep.subr.mxu0 0.0
    %1070 = vmatpush1.msra.mxu0 0.0
    %1071 = vmatprep.subr.mxu0 0.0
    %1072 = vmatpush1.msra.mxu0 0.0
    %1073 = vmatprep.mubr.f32.mxu0 0.0
    %1074 = vmatmul.mubr.f32.gmra.mrb[0].mxu0 %v927
    %v1075 = vpop.f32.mrb[0].mxu0
    %v1076 = vadd.f32 0.0, %v1075
    %v1077 = vpop.f32.mrb[0].mxu0
    %v1078 = vadd.f32 0.0, %v1077
    %1079 = vdwg.mxu0
    %v1080 = vsub.f32 %v692, %v1005
    %v1081 = vsub.f32 %v694, %v1007
    %v1082 = vsub.f32 %v763, %v1076
    %v1083 = vsub.f32 %v765, %v1078
    %v1084 = vmul.f32 %v1080, %v1080
    %v1085 = vmul.f32 %v1081, %v1081
    %v1086 = vmul.f32 %v1082, %v1082
    %v1087 = vmul.f32 %v1083, %v1083
    %1088 = vmatprep.subr.mxu0 0.0
    %1089 = vmatpush1.msra.mxu0 %v60
    %1090 = vmatprep.subr.mxu0 0.0
    %1091 = vmatpush1.msra.mxu0 %v61
    %1092 = vmatprep.subr.mxu0 0.0
    %1093 = vmatpush1.msra.mxu0 %v62
    %1094 = vmatprep.subr.mxu0 0.0
    %1095 = vmatpush1.msra.mxu0 %v63
    %1096 = vmatprep.subr.mxu0 0.0
    %1097 = vmatpush1.msra.mxu0 %v64
    %1098 = vmatprep.subr.mxu0 0.0
    %1099 = vmatpush1.msra.mxu0 %v65
    %1100 = vmatprep.subr.mxu0 0.0
    %1101 = vmatpush1.msra.mxu0 %v66
    %1102 = vmatprep.subr.mxu0 0.0
    %1103 = vmatpush1.msra.mxu0 %v67
    %1104 = vmatprep.subr.mxu0 0.0
    %1105 = vmatpush1.msra.mxu0 %v68
    %1106 = vmatprep.subr.mxu0 0.0
    %1107 = vmatpush1.msra.mxu0 %v69
    %1108 = vmatprep.subr.mxu0 0.0
    %1109 = vmatpush1.msra.mxu0 %v70
    %1110 = vmatprep.subr.mxu0 0.0
    %1111 = vmatpush1.msra.mxu0 %v71
    %1112 = vmatprep.subr.mxu0 0.0
    %1113 = vmatpush1.msra.mxu0 %v72
    %1114 = vmatprep.subr.mxu0 0.0
    %1115 = vmatpush1.msra.mxu0 %v73
    %1116 = vmatprep.subr.mxu0 0.0
    %1117 = vmatpush1.msra.mxu0 %v74
    %1118 = vmatprep.subr.mxu0 0.0
    %1119 = vmatpush1.msra.mxu0 %v75
    %1120 = vmatprep.subr.mxu0 0.0
    %1121 = vmatpush1.msra.mxu0 %v76
    %1122 = vmatprep.subr.mxu0 0.0
    %1123 = vmatpush1.msra.mxu0 %v77
    %1124 = vmatprep.subr.mxu0 0.0
    %1125 = vmatpush1.msra.mxu0 %v78
    %1126 = vmatprep.subr.mxu0 0.0
    %1127 = vmatpush1.msra.mxu0 %v79
    %1128 = vmatprep.subr.mxu0 0.0
    %1129 = vmatpush1.msra.mxu0 %v80
    %1130 = vmatprep.subr.mxu0 0.0
    %1131 = vmatpush1.msra.mxu0 %v81
    %1132 = vmatprep.subr.mxu0 0.0
    %1133 = vmatpush1.msra.mxu0 %v82
    %1134 = vmatprep.subr.mxu0 0.0
    %1135 = vmatpush1.msra.mxu0 %v83
    %1136 = vmatprep.subr.mxu0 0.0
    %1137 = vmatpush1.msra.mxu0 %v84
    %1138 = vmatprep.subr.mxu0 0.0
    %1139 = vmatpush1.msra.mxu0 %v85
    %1140 = vmatprep.subr.mxu0 0.0
    %1141 = vmatpush1.msra.mxu0 %v86
    %1142 = vmatprep.subr.mxu0 0.0
    %1143 = vmatpush1.msra.mxu0 %v87
    %1144 = vmatprep.subr.mxu0 0.0
    %1145 = vmatpush1.msra.mxu0 %v88
    %1146 = vmatprep.subr.mxu0 0.0
    %1147 = vmatpush1.msra.mxu0 %v89
    %1148 = vmatprep.subr.mxu0 0.0
    %1149 = vmatpush1.msra.mxu0 %v90
    %1150 = vmatprep.subr.mxu0 0.0
    %1151 = vmatpush1.msra.mxu0 %v91
    %1152 = vmatprep.mubr.f32.mxu0 %v1085
    %1153 = vmatmul.mubr.f32.gmra.mrb[0].mxu0 %v1084
    %v1154 = vpop.f32.mrb[0].mxu0
    %v1155 = vadd.f32 0.0, %v1154
    %v1156 = vpop.f32.mrb[0].mxu0
    %1157 = vdwg.mxu0
    %1158 = vmatprep.subr.mxu0 0.0
    %1159 = vmatpush1.msra.mxu0 %v92
    %1160 = vmatprep.subr.mxu0 0.0
    %1161 = vmatpush1.msra.mxu0 %v93
    %1162 = vmatprep.subr.mxu0 0.0
    %1163 = vmatpush1.msra.mxu0 %v94
    %1164 = vmatprep.subr.mxu0 0.0
    %1165 = vmatpush1.msra.mxu0 %v95
    %1166 = vmatprep.subr.mxu0 0.0
    %1167 = vmatpush1.msra.mxu0 %v96
    %1168 = vmatprep.subr.mxu0 0.0
    %1169 = vmatpush1.msra.mxu0 %v97
    %1170 = vmatprep.subr.mxu0 0.0
    %1171 = vmatpush1.msra.mxu0 %v98
    %1172 = vmatprep.subr.mxu0 0.0
    %1173 = vmatpush1.msra.mxu0 %v99
    %1174 = vmatprep.subr.mxu0 0.0
    %1175 = vmatpush1.msra.mxu0 %v100
    %1176 = vmatprep.subr.mxu0 0.0
    %1177 = vmatpush1.msra.mxu0 %v101
    %1178 = vmatprep.subr.mxu0 0.0
    %1179 = vmatpush1.msra.mxu0 %v102
    %1180 = vmatprep.subr.mxu0 0.0
    %1181 = vmatpush1.msra.mxu0 %v103
    %1182 = vmatprep.subr.mxu0 0.0
    %1183 = vmatpush1.msra.mxu0 %v104
    %1184 = vmatprep.subr.mxu0 0.0
    %1185 = vmatpush1.msra.mxu0 %v105
    %1186 = vmatprep.subr.mxu0 0.0
    %1187 = vmatpush1.msra.mxu0 %v106
    %1188 = vmatprep.subr.mxu0 0.0
    %1189 = vmatpush1.msra.mxu0 %v107
    %1190 = vmatprep.subr.mxu0 0.0
    %1191 = vmatpush1.msra.mxu0 %v108
    %1192 = vmatprep.subr.mxu0 0.0
    %1193 = vmatpush1.msra.mxu0 %v109
    %1194 = vmatprep.subr.mxu0 0.0
    %1195 = vmatpush1.msra.mxu0 %v110
    %1196 = vmatprep.subr.mxu0 0.0
    %1197 = vmatpush1.msra.mxu0 %v111
    %1198 = vmatprep.subr.mxu0 0.0
    %1199 = vmatpush1.msra.mxu0 %v112
    %1200 = vmatprep.subr.mxu0 0.0
    %1201 = vmatpush1.msra.mxu0 %v113
    %1202 = vmatprep.subr.mxu0 0.0
    %1203 = vmatpush1.msra.mxu0 %v114
    %1204 = vmatprep.subr.mxu0 0.0
    %1205 = vmatpush1.msra.mxu0 %v115
    %1206 = vmatprep.subr.mxu0 0.0
    %1207 = vmatpush1.msra.mxu0 %v116
    %1208 = vmatprep.subr.mxu0 0.0
    %1209 = vmatpush1.msra.mxu0 %v117
    %1210 = vmatprep.subr.mxu0 0.0
    %1211 = vmatpush1.msra.mxu0 %v118
    %1212 = vmatprep.subr.mxu0 0.0
    %1213 = vmatpush1.msra.mxu0 %v119
    %1214 = vmatprep.subr.mxu0 0.0
    %1215 = vmatpush1.msra.mxu0 %v120
    %1216 = vmatprep.subr.mxu0 0.0
    %1217 = vmatpush1.msra.mxu0 %v121
    %1218 = vmatprep.subr.mxu0 0.0
    %1219 = vmatpush1.msra.mxu0 %v122
    %1220 = vmatprep.subr.mxu0 0.0
    %1221 = vmatpush1.msra.mxu0 %v123
    %1222 = vmatprep.mubr.f32.mxu0 %v1087
    %1223 = vmatmul.mubr.f32.gmra.mrb[0].mxu0 %v1086
    %v1224 = vpop.f32.mrb[0].mxu0
    %v1225 = vadd.f32 %v1155, %v1224
    %v1226 = vpop.f32.mrb[0].mxu0
    %1227 = vdwg.mxu0
    %v1228 = vmul.f32 %v1225, 0.00390625
    %v1229 = vadd.f32 %v1228, 1e-05
    %v1230 = vrsqrt.pop %v1229
    %v1232 = vsel %vm237, %v1230, 0
    %1234 = vmatprep.subr.mxu0 %v932
    %1235 = vmatpush1.msra.mxu0 %v930
    %1236 = vmatprep.subr.mxu0 0.0
    %1237 = vmatpush1.msra.mxu0 0.0
    %1238 = vmatprep.subr.mxu0 0.0
    %1239 = vmatpush1.msra.mxu0 0.0
    %1240 = vmatprep.subr.mxu0 0.0
    %1241 = vmatpush1.msra.mxu0 0.0
    %1242 = vmatprep.subr.mxu0 0.0
    %1243 = vmatpush1.msra.mxu0 0.0
    %1244 = vmatprep.subr.mxu0 0.0
    %1245 = vmatpush1.msra.mxu0 0.0
    %1246 = vmatprep.subr.mxu0 0.0
    %1247 = vmatpush1.msra.mxu0 0.0
    %1248 = vmatprep.subr.mxu0 0.0
    %1249 = vmatpush1.msra.mxu0 0.0
    %1250 = vmatprep.subr.mxu0 0.0
    %1251 = vmatpush1.msra.mxu0 0.0
    %1252 = vmatprep.subr.mxu0 0.0
    %1253 = vmatpush1.msra.mxu0 0.0
    %1254 = vmatprep.subr.mxu0 0.0
    %1255 = vmatpush1.msra.mxu0 0.0
    %1256 = vmatprep.subr.mxu0 0.0
    %1257 = vmatpush1.msra.mxu0 0.0
    %1258 = vmatprep.subr.mxu0 0.0
    %1259 = vmatpush1.msra.mxu0 0.0
    %1260 = vmatprep.subr.mxu0 0.0
    %1261 = vmatpush1.msra.mxu0 0.0
    %1262 = vmatprep.subr.mxu0 0.0
    %1263 = vmatpush1.msra.mxu0 0.0
    %1264 = vmatprep.subr.mxu0 0.0
    %1265 = vmatpush1.msra.mxu0 0.0
    %1266 = vmatprep.subr.mxu0 0.0
    %1267 = vmatpush1.msra.mxu0 0.0
    %1268 = vmatprep.subr.mxu0 0.0
    %1269 = vmatpush1.msra.mxu0 0.0
    %1270 = vmatprep.subr.mxu0 0.0
    %1271 = vmatpush1.msra.mxu0 0.0
    %1272 = vmatprep.subr.mxu0 0.0
    %1273 = vmatpush1.msra.mxu0 0.0
    %1274 = vmatprep.subr.mxu0 0.0
    %1275 = vmatpush1.msra.mxu0 0.0
    %1276 = vmatprep.subr.mxu0 0.0
    %1277 = vmatpush1.msra.mxu0 0.0
    %1278 = vmatprep.subr.mxu0 0.0
    %1279 = vmatpush1.msra.mxu0 0.0
    %1280 = vmatprep.subr.mxu0 0.0
    %1281 = vmatpush1.msra.mxu0 0.0
    %1282 = vmatprep.subr.mxu0 0.0
    %1283 = vmatpush1.msra.mxu0 0.0
    %1284 = vmatprep.subr.mxu0 0.0
    %1285 = vmatpush1.msra.mxu0 0.0
    %1286 = vmatprep.subr.mxu0 0.0
    %1287 = vmatpush1.msra.mxu0 0.0
    %1288 = vmatprep.subr.mxu0 0.0
    %1289 = vmatpush1.msra.mxu0 0.0
    %1290 = vmatprep.subr.mxu0 0.0
    %1291 = vmatpush1.msra.mxu0 0.0
    %1292 = vmatprep.subr.mxu0 0.0
    %1293 = vmatpush1.msra.mxu0 0.0
    %1294 = vmatprep.subr.mxu0 0.0
    %1295 = vmatpush1.msra.mxu0 0.0
    %1296 = vmatprep.subr.mxu0 0.0
    %1297 = vmatpush1.msra.mxu0 0.0
    %1298 = vmatprep.mubr.f32.mxu0 0.0
    %1299 = vmatmul.mubr.f32.gmra.mrb[0].mxu0 %v1232
    %v1300 = vpop.f32.mrb[0].mxu0
    %v1301 = vadd.f32 0.0, %v1300
    %v1302 = vpop.f32.mrb[0].mxu0
    %v1303 = vadd.f32 0.0, %v1302
    %1304 = vdwg.mxu0
    %1305 = vmatprep.subr.mxu0 %v936
    %1306 = vmatpush1.msra.mxu0 %v934
    %1307 = vmatprep.subr.mxu0 0.0
    %1308 = vmatpush1.msra.mxu0 0.0
    %1309 = vmatprep.subr.mxu0 0.0
    %1310 = vmatpush1.msra.mxu0 0.0
    %1311 = vmatprep.subr.mxu0 0.0
    %1312 = vmatpush1.msra.mxu0 0.0
    %1313 = vmatprep.subr.mxu0 0.0
    %1314 = vmatpush1.msra.mxu0 0.0
    %1315 = vmatprep.subr.mxu0 0.0
    %1316 = vmatpush1.msra.mxu0 0.0
    %1317 = vmatprep.subr.mxu0 0.0
    %1318 = vmatpush1.msra.mxu0 0.0
    %1319 = vmatprep.subr.mxu0 0.0
    %1320 = vmatpush1.msra.mxu0 0.0
    %1321 = vmatprep.subr.mxu0 0.0
    %1322 = vmatpush1.msra.mxu0 0.0
    %1323 = vmatprep.subr.mxu0 0.0
    %1324 = vmatpush1.msra.mxu0 0.0
    %1325 = vmatprep.subr.mxu0 0.0
    %1326 = vmatpush1.msra.mxu0 0.0
    %1327 = vmatprep.subr.mxu0 0.0
    %1328 = vmatpush1.msra.mxu0 0.0
    %1329 = vmatprep.subr.mxu0 0.0
    %1330 = vmatpush1.msra.mxu0 0.0
    %1331 = vmatprep.subr.mxu0 0.0
    %1332 = vmatpush1.msra.mxu0 0.0
    %1333 = vmatprep.subr.mxu0 0.0
    %1334 = vmatpush1.msra.mxu0 0.0
    %1335 = vmatprep.subr.mxu0 0.0
    %1336 = vmatpush1.msra.mxu0 0.0
    %1337 = vmatprep.subr.mxu0 0.0
    %1338 = vmatpush1.msra.mxu0 0.0
    %1339 = vmatprep.subr.mxu0 0.0
    %1340 = vmatpush1.msra.mxu0 0.0
    %1341 = vmatprep.subr.mxu0 0.0
    %1342 = vmatpush1.msra.mxu0 0.0
    %1343 = vmatprep.subr.mxu0 0.0
    %1344 = vmatpush1.msra.mxu0 0.0
    %1345 = vmatprep.subr.mxu0 0.0
    %1346 = vmatpush1.msra.mxu0 0.0
    %1347 = vmatprep.subr.mxu0 0.0
    %1348 = vmatpush1.msra.mxu0 0.0
    %1349 = vmatprep.subr.mxu0 0.0
    %1350 = vmatpush1.msra.mxu0 0.0
    %1351 = vmatprep.subr.mxu0 0.0
    %1352 = vmatpush1.msra.mxu0 0.0
    %1353 = vmatprep.subr.mxu0 0.0
    %1354 = vmatpush1.msra.mxu0 0.0
    %1355 = vmatprep.subr.mxu0 0.0
    %1356 = vmatpush1.msra.mxu0 0.0
    %1357 = vmatprep.subr.mxu0 0.0
    %1358 = vmatpush1.msra.mxu0 0.0
    %1359 = vmatprep.subr.mxu0 0.0
    %1360 = vmatpush1.msra.mxu0 0.0
    %1361 = vmatprep.subr.mxu0 0.0
    %1362 = vmatpush1.msra.mxu0 0.0
    %1363 = vmatprep.subr.mxu0 0.0
    %1364 = vmatpush1.msra.mxu0 0.0
    %1365 = vmatprep.subr.mxu0 0.0
    %1366 = vmatpush1.msra.mxu0 0.0
    %1367 = vmatprep.subr.mxu0 0.0
    %1368 = vmatpush1.msra.mxu0 0.0
    %1369 = vmatprep.mubr.f32.mxu0 0.0
    %1370 = vmatmul.mubr.f32.gmra.mrb[0].mxu0 %v1232
    %v1371 = vpop.f32.mrb[0].mxu0
    %v1372 = vadd.f32 0.0, %v1371
    %v1373 = vpop.f32.mrb[0].mxu0
    %v1374 = vadd.f32 0.0, %v1373
    %1375 = vdwg.mxu0
    %v1376 = vmul.f32 %v1080, %v1301
    %v1377 = vmul.f32 %v1081, %v1303
    %v1378 = vmul.f32 %v1082, %v1372
    %v1379 = vmul.f32 %v1083, %v1374
    %v1380 = vmul.f32 %v1376, 0.5
    %v1381 = vmul.f32 %v1377, 0.5
    %v1382 = vmul.f32 %v1378, 0.5
    %v1383 = vmul.f32 %v1379, 0.5
    %v1384 = vmul.f32 %v1376, 0.70710677
    %v1385 = vmul.f32 %v1377, 0.70710677
    %v1386 = vmul.f32 %v1378, 0.70710677
    %v1387 = vmul.f32 %v1379, 0.70710677
    %v1388 = vand.u32 2147483647, %v1384
    %v1389 = vand.u32 2147483647, %v1385
    %v1390 = vand.u32 2147483647, %v1386
    %v1391 = vand.u32 2147483647, %v1387
    %v1392 = vmul.f32 %v1388, 0.3275911
    %v1393 = vmul.f32 %v1389, 0.3275911
    %v1394 = vmul.f32 %v1390, 0.3275911
    %v1395 = vmul.f32 %v1391, 0.3275911
    %v1396 = vadd.f32 %v1392, 1.0
    %v1397 = vadd.f32 %v1393, 1.0
    %v1398 = vadd.f32 %v1394, 1.0
    %v1399 = vadd.f32 %v1395, 1.0
    %v1400 = vrcp.pop %v1396
    %v1401 = vmul.f32 1.0, %v1400
    %v1402 = vrcp.pop %v1397
    %v1403 = vmul.f32 1.0, %v1402
    %v1404 = vrcp.pop %v1398
    %v1405 = vmul.f32 1.0, %v1404
    %v1406 = vrcp.pop %v1399
    %v1407 = vmul.f32 1.0, %v1406
    %v1408 = vmul.f32 %v1401, 1.0614054
    %v1409 = vmul.f32 %v1403, 1.0614054
    %v1410 = vmul.f32 %v1405, 1.0614054
    %v1411 = vmul.f32 %v1407, 1.0614054
    %v1412 = vadd.f32 %v1408, -1.4531521
    %v1413 = vadd.f32 %v1409, -1.4531521
    %v1414 = vadd.f32 %v1410, -1.4531521
    %v1415 = vadd.f32 %v1411, -1.4531521
    %v1416 = vmul.f32 %v1401, %v1412
    %v1417 = vmul.f32 %v1403, %v1413
    %v1418 = vmul.f32 %v1405, %v1414
    %v1419 = vmul.f32 %v1407, %v1415
    %v1420 = vadd.f32 %v1416, 1.4214138
    %v1421 = vadd.f32 %v1417, 1.4214138
    %v1422 = vadd.f32 %v1418, 1.4214138
    %v1423 = vadd.f32 %v1419, 1.4214138
    %v1424 = vmul.f32 %v1401, %v1420
    %v1425 = vmul.f32 %v1403, %v1421
    %v1426 = vmul.f32 %v1405, %v1422
    %v1427 = vmul.f32 %v1407, %v1423
    %v1428 = vadd.f32 %v1424, -0.28449672
    %v1429 = vadd.f32 %v1425, -0.28449672
    %v1430 = vadd.f32 %v1426, -0.28449672
    %v1431 = vadd.f32 %v1427, -0.28449672
    %v1432 = vmul.f32 %v1401, %v1428
    %v1433 = vmul.f32 %v1403, %v1429
    %v1434 = vmul.f32 %v1405, %v1430
    %v1435 = vmul.f32 %v1407, %v1431
    %v1436 = vadd.f32 %v1432, 0.2548296
    %v1437 = vadd.f32 %v1433, 0.2548296
    %v1438 = vadd.f32 %v1434, 0.2548296
    %v1439 = vadd.f32 %v1435, 0.2548296
    %v1440 = vmul.f32 %v1401, %v1436
    %v1441 = vmul.f32 %v1403, %v1437
    %v1442 = vmul.f32 %v1405, %v1438
    %v1443 = vmul.f32 %v1407, %v1439
    %v1444 = vsub.f32 0.0, %v1388
    %v1445 = vsub.f32 0.0, %v1389
    %v1446 = vsub.f32 0.0, %v1390
    %v1447 = vsub.f32 0.0, %v1391
    %v1448 = vmul.f32 %v1444, %v1388
    %v1449 = vmul.f32 %v1445, %v1389
    %v1450 = vmul.f32 %v1446, %v1390
    %v1451 = vmul.f32 %v1447, %v1391
    %v1452 = vmul.f32 %v1448, 1.442695
    %v1453 = vpow.pop %v1452
    %v1454 = vmul.f32 %v1449, 1.442695
    %v1455 = vpow.pop %v1454
    %v1456 = vmul.f32 %v1450, 1.442695
    %v1457 = vpow.pop %v1456
    %v1458 = vmul.f32 %v1451, 1.442695
    %v1459 = vpow.pop %v1458
    %v1460 = vmul.f32 %v1440, %v1453
    %v1461 = vmul.f32 %v1441, %v1455
    %v1462 = vmul.f32 %v1442, %v1457
    %v1463 = vmul.f32 %v1443, %v1459
    %v1464 = vsub.f32 1.0, %v1460
    %v1465 = vsub.f32 1.0, %v1461
    %v1466 = vsub.f32 1.0, %v1462
    %v1467 = vsub.f32 1.0, %v1463
    %vm1468 = vcmp.ge.f32.partialorder %v1384, 0.0
    %vm1469 = vcmp.ge.f32.partialorder %v1385, 0.0
    %vm1470 = vcmp.ge.f32.partialorder %v1386, 0.0
    %vm1471 = vcmp.ge.f32.partialorder %v1387, 0.0
    %v1472 = vsub.f32 0.0, %v1464
    %v1473 = vsub.f32 0.0, %v1465
    %v1474 = vsub.f32 0.0, %v1466
    %v1475 = vsub.f32 0.0, %v1467
    %v1476 = vsel %vm1468, %v1464, %v1472
    %v1477 = vsel %vm1469, %v1465, %v1473
    %v1478 = vsel %vm1470, %v1466, %v1474
    %v1479 = vsel %vm1471, %v1467, %v1475
    %v1480 = vadd.f32 %v1476, 1.0
    %v1481 = vadd.f32 %v1477, 1.0
    %v1482 = vadd.f32 %v1478, 1.0
    %v1483 = vadd.f32 %v1479, 1.0
    %v1484 = vmul.f32 %v1380, %v1480
    %v1485 = vmul.f32 %v1381, %v1481
    %v1486 = vmul.f32 %v1382, %v1482
    %v1487 = vmul.f32 %v1383, %v1483
    %1492 = vrot.lane.b32.xlu0 %v1484, 17
    %v1493 = vpop.permute.xlu0 %1492
    %1494 = vrot.lane.b32.xlu0 %v1485, 17
    %v1495 = vpop.permute.xlu0 %1494
    %1496 = vrot.lane.b32.xlu0 %v1486, 17
    %v1497 = vpop.permute.xlu0 %1496
    %1498 = vrot.lane.b32.xlu0 %v1487, 17
    %v1499 = vpop.permute.xlu0 %1498
    %v1500 = vsel %vm137, %v1493, %v1495
    %v1501 = vsel %vm137, %v1495, %v1497
    %v1502 = vsel %vm137, %v1497, %v1499
    %v1508 = vsel %vm137, 0.0, %v1493
    %v1509 = vsel %vm137, %v1499, 0.0
    %v1510 = vmul.f32 %v1508, %v152
    %v1511 = vmul.f32 %v1500, %v156
    %v1512 = vmul.f32 %v1501, %v160
    %v1513 = vmul.f32 %v1502, %v164
    %v1514 = vmul.f32 %v1508, %v191
    %v1515 = vmul.f32 %v1500, %v199
    %v1516 = vmul.f32 %v1501, %v200
    %v1517 = vmul.f32 %v1502, %v201
    %v1518 = vmul.f32 %v1509, %v197
    %v1519 = vmul.f32 %v1508, %v230
    %v1520 = vmul.f32 %v1500, %v238
    %v1521 = vmul.f32 %v1501, %v239
    %v1522 = vmul.f32 %v1502, %v240
    %v1523 = vmul.f32 %v1509, %v236
    %v1524 = vmul.f32 %v1508, %v269
    %v1525 = vmul.f32 %v1500, %v277
    %v1526 = vmul.f32 %v1501, %v278
    %v1527 = vmul.f32 %v1502, %v279
    %v1528 = vmul.f32 %v1509, %v275
    %v1529 = vmul.f32 %v1508, %v308
    %v1530 = vmul.f32 %v1500, %v316
    %v1531 = vmul.f32 %v1501, %v317
    %v1532 = vmul.f32 %v1502, %v318
    %v1533 = vmul.f32 %v1509, %v314
    %v1534 = vmul.f32 %v1508, %v347
    %v1535 = vmul.f32 %v1500, %v355
    %v1536 = vmul.f32 %v1501, %v356
    %v1537 = vmul.f32 %v1502, %v357
    %v1538 = vmul.f32 %v1509, %v353
    %v1539 = vmul.f32 %v1508, %v386
    %v1540 = vmul.f32 %v1500, %v394
    %v1541 = vmul.f32 %v1501, %v395
    %v1542 = vmul.f32 %v1502, %v396
    %v1543 = vmul.f32 %v1509, %v392
    %v1544 = vmul.f32 %v1508, %v425
    %v1545 = vmul.f32 %v1500, %v433
    %v1546 = vmul.f32 %v1501, %v434
    %v1547 = vmul.f32 %v1502, %v435
    %v1548 = vmul.f32 %v1509, %v431
    %1554 = vrot.lane.b32.xlu0 %v1514, 127
    %v1555 = vpop.permute.xlu0 %1554
    %1556 = vrot.lane.b32.xlu0 %v1515, 127
    %v1557 = vpop.permute.xlu0 %1556
    %1558 = vrot.lane.b32.xlu0 %v1516, 127
    %v1559 = vpop.permute.xlu0 %1558
    %1560 = vrot.lane.b32.xlu0 %v1517, 127
    %v1561 = vpop.permute.xlu0 %1560
    %1562 = vrot.lane.b32.xlu0 %v1518, 127
    %v1563 = vpop.permute.xlu0 %1562
    %v1564 = vsel %vm461, %v1555, %v1557
    %v1565 = vsel %vm461, %v1557, %v1559
    %v1566 = vsel %vm461, %v1559, %v1561
    %v1567 = vsel %vm461, %v1561, %v1563
    %1577 = vrot.lane.b32.xlu0 %v1519, 126
    %v1578 = vpop.permute.xlu0 %1577
    %1579 = vrot.lane.b32.xlu0 %v1520, 126
    %v1580 = vpop.permute.xlu0 %1579
    %1581 = vrot.lane.b32.xlu0 %v1521, 126
    %v1582 = vpop.permute.xlu0 %1581
    %1583 = vrot.lane.b32.xlu0 %v1522, 126
    %v1584 = vpop.permute.xlu0 %1583
    %1585 = vrot.lane.b32.xlu0 %v1523, 126
    %v1586 = vpop.permute.xlu0 %1585
    %v1587 = vsel %vm485, %v1578, %v1580
    %v1588 = vsel %vm485, %v1580, %v1582
    %v1589 = vsel %vm485, %v1582, %v1584
    %v1590 = vsel %vm485, %v1584, %v1586
    %1600 = vrot.lane.b32.xlu0 %v1524, 112
    %v1601 = vpop.permute.xlu0 %1600
    %1602 = vrot.lane.b32.xlu0 %v1525, 112
    %v1603 = vpop.permute.xlu0 %1602
    %1604 = vrot.lane.b32.xlu0 %v1526, 112
    %v1605 = vpop.permute.xlu0 %1604
    %1606 = vrot.lane.b32.xlu0 %v1527, 112
    %v1607 = vpop.permute.xlu0 %1606
    %1608 = vrot.lane.b32.xlu0 %v1528, 112
    %v1609 = vpop.permute.xlu0 %1608
    %v1610 = vsel %vm509, %v1601, %v1603
    %v1611 = vsel %vm509, %v1603, %v1605
    %v1612 = vsel %vm509, %v1605, %v1607
    %v1613 = vsel %vm509, %v1607, %v1609
    %1623 = vrot.lane.b32.xlu0 %v1529, 110
    %v1624 = vpop.permute.xlu0 %1623
    %1625 = vrot.lane.b32.xlu0 %v1530, 110
    %v1626 = vpop.permute.xlu0 %1625
    %1627 = vrot.lane.b32.xlu0 %v1531, 110
    %v1628 = vpop.permute.xlu0 %1627
    %1629 = vrot.lane.b32.xlu0 %v1532, 110
    %v1630 = vpop.permute.xlu0 %1629
    %1631 = vrot.lane.b32.xlu0 %v1533, 110
    %v1632 = vpop.permute.xlu0 %1631
    %v1633 = vsel %vm533, %v1624, %v1626
    %v1634 = vsel %vm533, %v1626, %v1628
    %v1635 = vsel %vm533, %v1628, %v1630
    %v1636 = vsel %vm533, %v1630, %v1632
    %1646 = vrot.lane.b32.xlu0 %v1534, 96
    %v1647 = vpop.permute.xlu0 %1646
    %1648 = vrot.lane.b32.xlu0 %v1535, 96
    %v1649 = vpop.permute.xlu0 %1648
    %1650 = vrot.lane.b32.xlu0 %v1536, 96
    %v1651 = vpop.permute.xlu0 %1650
    %1652 = vrot.lane.b32.xlu0 %v1537, 96
    %v1653 = vpop.permute.xlu0 %1652
    %1654 = vrot.lane.b32.xlu0 %v1538, 96
    %v1655 = vpop.permute.xlu0 %1654
    %v1656 = vsel %vm557, %v1647, %v1649
    %v1657 = vsel %vm557, %v1649, %v1651
    %v1658 = vsel %vm557, %v1651, %v1653
    %v1659 = vsel %vm557, %v1653, %v1655
    %1669 = vrot.lane.b32.xlu0 %v1539, 95
    %v1670 = vpop.permute.xlu0 %1669
    %1671 = vrot.lane.b32.xlu0 %v1540, 95
    %v1672 = vpop.permute.xlu0 %1671
    %1673 = vrot.lane.b32.xlu0 %v1541, 95
    %v1674 = vpop.permute.xlu0 %1673
    %1675 = vrot.lane.b32.xlu0 %v1542, 95
    %v1676 = vpop.permute.xlu0 %1675
    %1677 = vrot.lane.b32.xlu0 %v1543, 95
    %v1678 = vpop.permute.xlu0 %1677
    %v1679 = vsel %vm581, %v1670, %v1672
    %v1680 = vsel %vm581, %v1672, %v1674
    %v1681 = vsel %vm581, %v1674, %v1676
    %v1682 = vsel %vm581, %v1676, %v1678
    %1692 = vrot.lane.b32.xlu0 %v1544, 94
    %v1693 = vpop.permute.xlu0 %1692
    %1694 = vrot.lane.b32.xlu0 %v1545, 94
    %v1695 = vpop.permute.xlu0 %1694
    %1696 = vrot.lane.b32.xlu0 %v1546, 94
    %v1697 = vpop.permute.xlu0 %1696
    %1698 = vrot.lane.b32.xlu0 %v1547, 94
    %v1699 = vpop.permute.xlu0 %1698
    %1700 = vrot.lane.b32.xlu0 %v1548, 94
    %v1701 = vpop.permute.xlu0 %1700
    %v1702 = vsel %vm605, %v1693, %v1695
    %v1703 = vsel %vm605, %v1695, %v1697
    %v1704 = vsel %vm605, %v1697, %v1699
    %v1705 = vsel %vm605, %v1699, %v1701
    %v1710 = vld [vmem:[%s6] sm:$0xff]
    %v1711 = vld [vmem:[%s7] sm:$0xff]
    %1713 = vset.pattern.permute.xlu0 0
    %1714 = vperm.xlu0 %1713, %v1711
    %v1715 = vpop.permute.xlu0 %1714
    %v1718 = vsel %vm621, %v1710, 0
    %1720 = vmatprep.subr.mxu0 %v1511
    %1721 = vmatpush1.msra.mxu0 %v1510
    %1722 = vmatprep.subr.mxu0 %v1565
    %1723 = vmatpush1.msra.mxu0 %v1564
    %1724 = vmatprep.subr.mxu0 %v1588
    %1725 = vmatpush1.msra.mxu0 %v1587
    %1726 = vmatprep.subr.mxu0 %v1611
    %1727 = vmatpush1.msra.mxu0 %v1610
    %1728 = vmatprep.subr.mxu0 %v1485
    %1729 = vmatpush1.msra.mxu0 %v1484
    %1730 = vmatprep.subr.mxu0 %v1634
    %1731 = vmatpush1.msra.mxu0 %v1633
    %1732 = vmatprep.subr.mxu0 %v1657
    %1733 = vmatpush1.msra.mxu0 %v1656
    %1734 = vmatprep.subr.mxu0 %v1680
    %1735 = vmatpush1.msra.mxu0 %v1679
    %1736 = vmatprep.subr.mxu0 %v1703
    %1737 = vmatpush1.msra.mxu0 %v1702
    %1738 = vmatprep.subr.mxu0 0.0
    %1739 = vmatpush1.msra.mxu0 0.0
    %1740 = vmatprep.subr.mxu0 0.0
    %1741 = vmatpush1.msra.mxu0 0.0
    %1742 = vmatprep.subr.mxu0 0.0
    %1743 = vmatpush1.msra.mxu0 0.0
    %1744 = vmatprep.subr.mxu0 0.0
    %1745 = vmatpush1.msra.mxu0 0.0
    %1746 = vmatprep.subr.mxu0 0.0
    %1747 = vmatpush1.msra.mxu0 0.0
    %1748 = vmatprep.subr.mxu0 0.0
    %1749 = vmatpush1.msra.mxu0 0.0
    %1750 = vmatprep.subr.mxu0 0.0
    %1751 = vmatpush1.msra.mxu0 0.0
    %1752 = vmatprep.subr.mxu0 0.0
    %1753 = vmatpush1.msra.mxu0 0.0
    %1754 = vmatprep.subr.mxu0 0.0
    %1755 = vmatpush1.msra.mxu0 0.0
    %1756 = vmatprep.subr.mxu0 0.0
    %1757 = vmatpush1.msra.mxu0 0.0
    %1758 = vmatprep.subr.mxu0 0.0
    %1759 = vmatpush1.msra.mxu0 0.0
    %1760 = vmatprep.subr.mxu0 0.0
    %1761 = vmatpush1.msra.mxu0 0.0
    %1762 = vmatprep.subr.mxu0 0.0
    %1763 = vmatpush1.msra.mxu0 0.0
    %1764 = vmatprep.subr.mxu0 0.0
    %1765 = vmatpush1.msra.mxu0 0.0
    %1766 = vmatprep.subr.mxu0 0.0
    %1767 = vmatpush1.msra.mxu0 0.0
    %1768 = vmatprep.subr.mxu0 0.0
    %1769 = vmatpush1.msra.mxu0 0.0
    %1770 = vmatprep.subr.mxu0 0.0
    %1771 = vmatpush1.msra.mxu0 0.0
    %1772 = vmatprep.subr.mxu0 0.0
    %1773 = vmatpush1.msra.mxu0 0.0
    %1774 = vmatprep.subr.mxu0 0.0
    %1775 = vmatpush1.msra.mxu0 0.0
    %1776 = vmatprep.subr.mxu0 0.0
    %1777 = vmatpush1.msra.mxu0 0.0
    %1778 = vmatprep.subr.mxu0 0.0
    %1779 = vmatpush1.msra.mxu0 0.0
    %1780 = vmatprep.subr.mxu0 0.0
    %1781 = vmatpush1.msra.mxu0 0.0
    %1782 = vmatprep.subr.mxu0 0.0
    %1783 = vmatpush1.msra.mxu0 0.0
    %1784 = vmatprep.mubr.f32.mxu0 0.0
    %1785 = vmatmul.mubr.f32.gmra.mrb[0].mxu0 %v1718
    %v1786 = vpop.f32.mrb[0].mxu0
    %v1787 = vadd.f32 %v1715, %v1786
    %v1788 = vpop.f32.mrb[0].mxu0
    %v1789 = vadd.f32 %v1715, %v1788
    %1790 = vdwg.mxu0
    %1791 = vmatprep.subr.mxu0 %v1513
    %1792 = vmatpush1.msra.mxu0 %v1512
    %1793 = vmatprep.subr.mxu0 %v1567
    %1794 = vmatpush1.msra.mxu0 %v1566
    %1795 = vmatprep.subr.mxu0 %v1590
    %1796 = vmatpush1.msra.mxu0 %v1589
    %1797 = vmatprep.subr.mxu0 %v1613
    %1798 = vmatpush1.msra.mxu0 %v1612
    %1799 = vmatprep.subr.mxu0 %v1487
    %1800 = vmatpush1.msra.mxu0 %v1486
    %1801 = vmatprep.subr.mxu0 %v1636
    %1802 = vmatpush1.msra.mxu0 %v1635
    %1803 = vmatprep.subr.mxu0 %v1659
    %1804 = vmatpush1.msra.mxu0 %v1658
    %1805 = vmatprep.subr.mxu0 %v1682
    %1806 = vmatpush1.msra.mxu0 %v1681
    %1807 = vmatprep.subr.mxu0 %v1705
    %1808 = vmatpush1.msra.mxu0 %v1704
    %1809 = vmatprep.subr.mxu0 0.0
    %1810 = vmatpush1.msra.mxu0 0.0
    %1811 = vmatprep.subr.mxu0 0.0
    %1812 = vmatpush1.msra.mxu0 0.0
    %1813 = vmatprep.subr.mxu0 0.0
    %1814 = vmatpush1.msra.mxu0 0.0
    %1815 = vmatprep.subr.mxu0 0.0
    %1816 = vmatpush1.msra.mxu0 0.0
    %1817 = vmatprep.subr.mxu0 0.0
    %1818 = vmatpush1.msra.mxu0 0.0
    %1819 = vmatprep.subr.mxu0 0.0
    %1820 = vmatpush1.msra.mxu0 0.0
    %1821 = vmatprep.subr.mxu0 0.0
    %1822 = vmatpush1.msra.mxu0 0.0
    %1823 = vmatprep.subr.mxu0 0.0
    %1824 = vmatpush1.msra.mxu0 0.0
    %1825 = vmatprep.subr.mxu0 0.0
    %1826 = vmatpush1.msra.mxu0 0.0
    %1827 = vmatprep.subr.mxu0 0.0
    %1828 = vmatpush1.msra.mxu0 0.0
    %1829 = vmatprep.subr.mxu0 0.0
    %1830 = vmatpush1.msra.mxu0 0.0
    %1831 = vmatprep.subr.mxu0 0.0
    %1832 = vmatpush1.msra.mxu0 0.0
    %1833 = vmatprep.subr.mxu0 0.0
    %1834 = vmatpush1.msra.mxu0 0.0
    %1835 = vmatprep.subr.mxu0 0.0
    %1836 = vmatpush1.msra.mxu0 0.0
    %1837 = vmatprep.subr.mxu0 0.0
    %1838 = vmatpush1.msra.mxu0 0.0
    %1839 = vmatprep.subr.mxu0 0.0
    %1840 = vmatpush1.msra.mxu0 0.0
    %1841 = vmatprep.subr.mxu0 0.0
    %1842 = vmatpush1.msra.mxu0 0.0
    %1843 = vmatprep.subr.mxu0 0.0
    %1844 = vmatpush1.msra.mxu0 0.0
    %1845 = vmatprep.subr.mxu0 0.0
    %1846 = vmatpush1.msra.mxu0 0.0
    %1847 = vmatprep.subr.mxu0 0.0
    %1848 = vmatpush1.msra.mxu0 0.0
    %1849 = vmatprep.subr.mxu0 0.0
    %1850 = vmatpush1.msra.mxu0 0.0
    %1851 = vmatprep.subr.mxu0 0.0
    %1852 = vmatpush1.msra.mxu0 0.0
    %1853 = vmatprep.subr.mxu0 0.0
    %1854 = vmatpush1.msra.mxu0 0.0
    %1855 = vmatprep.mubr.f32.mxu0 0.0
    %1856 = vmatmul.mubr.f32.gmra.mrb[0].mxu0 %v1718
    %v1857 = vpop.f32.mrb[0].mxu0
    %v1858 = vadd.f32 %v1715, %v1857
    %v1859 = vpop.f32.mrb[0].mxu0
    %v1860 = vadd.f32 %v1715, %v1859
    %1861 = vdwg.mxu0
    %1862 = vmatprep.subr.mxu0 0.0
    %1863 = vmatpush1.msra.mxu0 %v60
    %1864 = vmatprep.subr.mxu0 0.0
    %1865 = vmatpush1.msra.mxu0 %v61
    %1866 = vmatprep.subr.mxu0 0.0
    %1867 = vmatpush1.msra.mxu0 %v62
    %1868 = vmatprep.subr.mxu0 0.0
    %1869 = vmatpush1.msra.mxu0 %v63
    %1870 = vmatprep.subr.mxu0 0.0
    %1871 = vmatpush1.msra.mxu0 %v64
    %1872 = vmatprep.subr.mxu0 0.0
    %1873 = vmatpush1.msra.mxu0 %v65
    %1874 = vmatprep.subr.mxu0 0.0
    %1875 = vmatpush1.msra.mxu0 %v66
    %1876 = vmatprep.subr.mxu0 0.0
    %1877 = vmatpush1.msra.mxu0 %v67
    %1878 = vmatprep.subr.mxu0 0.0
    %1879 = vmatpush1.msra.mxu0 %v68
    %1880 = vmatprep.subr.mxu0 0.0
    %1881 = vmatpush1.msra.mxu0 %v69
    %1882 = vmatprep.subr.mxu0 0.0
    %1883 = vmatpush1.msra.mxu0 %v70
    %1884 = vmatprep.subr.mxu0 0.0
    %1885 = vmatpush1.msra.mxu0 %v71
    %1886 = vmatprep.subr.mxu0 0.0
    %1887 = vmatpush1.msra.mxu0 %v72
    %1888 = vmatprep.subr.mxu0 0.0
    %1889 = vmatpush1.msra.mxu0 %v73
    %1890 = vmatprep.subr.mxu0 0.0
    %1891 = vmatpush1.msra.mxu0 %v74
    %1892 = vmatprep.subr.mxu0 0.0
    %1893 = vmatpush1.msra.mxu0 %v75
    %1894 = vmatprep.subr.mxu0 0.0
    %1895 = vmatpush1.msra.mxu0 %v76
    %1896 = vmatprep.subr.mxu0 0.0
    %1897 = vmatpush1.msra.mxu0 %v77
    %1898 = vmatprep.subr.mxu0 0.0
    %1899 = vmatpush1.msra.mxu0 %v78
    %1900 = vmatprep.subr.mxu0 0.0
    %1901 = vmatpush1.msra.mxu0 %v79
    %1902 = vmatprep.subr.mxu0 0.0
    %1903 = vmatpush1.msra.mxu0 %v80
    %1904 = vmatprep.subr.mxu0 0.0
    %1905 = vmatpush1.msra.mxu0 %v81
    %1906 = vmatprep.subr.mxu0 0.0
    %1907 = vmatpush1.msra.mxu0 %v82
    %1908 = vmatprep.subr.mxu0 0.0
    %1909 = vmatpush1.msra.mxu0 %v83
    %1910 = vmatprep.subr.mxu0 0.0
    %1911 = vmatpush1.msra.mxu0 %v84
    %1912 = vmatprep.subr.mxu0 0.0
    %1913 = vmatpush1.msra.mxu0 %v85
    %1914 = vmatprep.subr.mxu0 0.0
    %1915 = vmatpush1.msra.mxu0 %v86
    %1916 = vmatprep.subr.mxu0 0.0
    %1917 = vmatpush1.msra.mxu0 %v87
    %1918 = vmatprep.subr.mxu0 0.0
    %1919 = vmatpush1.msra.mxu0 %v88
    %1920 = vmatprep.subr.mxu0 0.0
    %1921 = vmatpush1.msra.mxu0 %v89
    %1922 = vmatprep.subr.mxu0 0.0
    %1923 = vmatpush1.msra.mxu0 %v90
    %1924 = vmatprep.subr.mxu0 0.0
    %1925 = vmatpush1.msra.mxu0 %v91
    %1926 = vmatprep.mubr.f32.mxu0 %v1789
    %1927 = vmatmul.mubr.f32.gmra.mrb[0].mxu0 %v1787
    %v1928 = vpop.f32.mrb[0].mxu0
    %v1929 = vadd.f32 0.0, %v1928
    %v1930 = vpop.f32.mrb[0].mxu0
    %1931 = vdwg.mxu0
    %1932 = vmatprep.subr.mxu0 0.0
    %1933 = vmatpush1.msra.mxu0 %v92
    %1934 = vmatprep.subr.mxu0 0.0
    %1935 = vmatpush1.msra.mxu0 %v93
    %1936 = vmatprep.subr.mxu0 0.0
    %1937 = vmatpush1.msra.mxu0 %v94
    %1938 = vmatprep.subr.mxu0 0.0
    %1939 = vmatpush1.msra.mxu0 %v95
    %1940 = vmatprep.subr.mxu0 0.0
    %1941 = vmatpush1.msra.mxu0 %v96
    %1942 = vmatprep.subr.mxu0 0.0
    %1943 = vmatpush1.msra.mxu0 %v97
    %1944 = vmatprep.subr.mxu0 0.0
    %1945 = vmatpush1.msra.mxu0 %v98
    %1946 = vmatprep.subr.mxu0 0.0
    %1947 = vmatpush1.msra.mxu0 %v99
    %1948 = vmatprep.subr.mxu0 0.0
    %1949 = vmatpush1.msra.mxu0 %v100
    %1950 = vmatprep.subr.mxu0 0.0
    %1951 = vmatpush1.msra.mxu0 %v101
    %1952 = vmatprep.subr.mxu0 0.0
    %1953 = vmatpush1.msra.mxu0 %v102
    %1954 = vmatprep.subr.mxu0 0.0
    %1955 = vmatpush1.msra.mxu0 %v103
    %1956 = vmatprep.subr.mxu0 0.0
    %1957 = vmatpush1.msra.mxu0 %v104
    %1958 = vmatprep.subr.mxu0 0.0
    %1959 = vmatpush1.msra.mxu0 %v105
    %1960 = vmatprep.subr.mxu0 0.0
    %1961 = vmatpush1.msra.mxu0 %v106
    %1962 = vmatprep.subr.mxu0 0.0
    %1963 = vmatpush1.msra.mxu0 %v107
    %1964 = vmatprep.subr.mxu0 0.0
    %1965 = vmatpush1.msra.mxu0 %v108
    %1966 = vmatprep.subr.mxu0 0.0
    %1967 = vmatpush1.msra.mxu0 %v109
    %1968 = vmatprep.subr.mxu0 0.0
    %1969 = vmatpush1.msra.mxu0 %v110
    %1970 = vmatprep.subr.mxu0 0.0
    %1971 = vmatpush1.msra.mxu0 %v111
    %1972 = vmatprep.subr.mxu0 0.0
    %1973 = vmatpush1.msra.mxu0 %v112
    %1974 = vmatprep.subr.mxu0 0.0
    %1975 = vmatpush1.msra.mxu0 %v113
    %1976 = vmatprep.subr.mxu0 0.0
    %1977 = vmatpush1.msra.mxu0 %v114
    %1978 = vmatprep.subr.mxu0 0.0
    %1979 = vmatpush1.msra.mxu0 %v115
    %1980 = vmatprep.subr.mxu0 0.0
    %1981 = vmatpush1.msra.mxu0 %v116
    %1982 = vmatprep.subr.mxu0 0.0
    %1983 = vmatpush1.msra.mxu0 %v117
    %1984 = vmatprep.subr.mxu0 0.0
    %1985 = vmatpush1.msra.mxu0 %v118
    %1986 = vmatprep.subr.mxu0 0.0
    %1987 = vmatpush1.msra.mxu0 %v119
    %1988 = vmatprep.subr.mxu0 0.0
    %1989 = vmatpush1.msra.mxu0 %v120
    %1990 = vmatprep.subr.mxu0 0.0
    %1991 = vmatpush1.msra.mxu0 %v121
    %1992 = vmatprep.subr.mxu0 0.0
    %1993 = vmatpush1.msra.mxu0 %v122
    %1994 = vmatprep.subr.mxu0 0.0
    %1995 = vmatpush1.msra.mxu0 %v123
    %1996 = vmatprep.mubr.f32.mxu0 %v1860
    %1997 = vmatmul.mubr.f32.gmra.mrb[0].mxu0 %v1858
    %v1998 = vpop.f32.mrb[0].mxu0
    %v1999 = vadd.f32 %v1929, %v1998
    %v2000 = vpop.f32.mrb[0].mxu0
    %2001 = vdwg.mxu0
    %v2002 = vmul.f32 %v1999, 0.00390625
    %v2004 = vsel %vm237, %v2002, 0
    %2006 = vmatprep.subr.mxu0 %v932
    %2007 = vmatpush1.msra.mxu0 %v930
    %2008 = vmatprep.subr.mxu0 0.0
    %2009 = vmatpush1.msra.mxu0 0.0
    %2010 = vmatprep.subr.mxu0 0.0
    %2011 = vmatpush1.msra.mxu0 0.0
    %2012 = vmatprep.subr.mxu0 0.0
    %2013 = vmatpush1.msra.mxu0 0.0
    %2014 = vmatprep.subr.mxu0 0.0
    %2015 = vmatpush1.msra.mxu0 0.0
    %2016 = vmatprep.subr.mxu0 0.0
    %2017 = vmatpush1.msra.mxu0 0.0
    %2018 = vmatprep.subr.mxu0 0.0
    %2019 = vmatpush1.msra.mxu0 0.0
    %2020 = vmatprep.subr.mxu0 0.0
    %2021 = vmatpush1.msra.mxu0 0.0
    %2022 = vmatprep.subr.mxu0 0.0
    %2023 = vmatpush1.msra.mxu0 0.0
    %2024 = vmatprep.subr.mxu0 0.0
    %2025 = vmatpush1.msra.mxu0 0.0
    %2026 = vmatprep.subr.mxu0 0.0
    %2027 = vmatpush1.msra.mxu0 0.0
    %2028 = vmatprep.subr.mxu0 0.0
    %2029 = vmatpush1.msra.mxu0 0.0
    %2030 = vmatprep.subr.mxu0 0.0
    %2031 = vmatpush1.msra.mxu0 0.0
    %2032 = vmatprep.subr.mxu0 0.0
    %2033 = vmatpush1.msra.mxu0 0.0
    %2034 = vmatprep.subr.mxu0 0.0
    %2035 = vmatpush1.msra.mxu0 0.0
    %2036 = vmatprep.subr.mxu0 0.0
    %2037 = vmatpush1.msra.mxu0 0.0
    %2038 = vmatprep.subr.mxu0 0.0
    %2039 = vmatpush1.msra.mxu0 0.0
    %2040 = vmatprep.subr.mxu0 0.0
    %2041 = vmatpush1.msra.mxu0 0.0
    %2042 = vmatprep.subr.mxu0 0.0
    %2043 = vmatpush1.msra.mxu0 0.0
    %2044 = vmatprep.subr.mxu0 0.0
    %2045 = vmatpush1.msra.mxu0 0.0
    %2046 = vmatprep.subr.mxu0 0.0
    %2047 = vmatpush1.msra.mxu0 0.0
    %2048 = vmatprep.subr.mxu0 0.0
    %2049 = vmatpush1.msra.mxu0 0.0
    %2050 = vmatprep.subr.mxu0 0.0
    %2051 = vmatpush1.msra.mxu0 0.0
    %2052 = vmatprep.subr.mxu0 0.0
    %2053 = vmatpush1.msra.mxu0 0.0
    %2054 = vmatprep.subr.mxu0 0.0
    %2055 = vmatpush1.msra.mxu0 0.0
    %2056 = vmatprep.subr.mxu0 0.0
    %2057 = vmatpush1.msra.mxu0 0.0
    %2058 = vmatprep.subr.mxu0 0.0
    %2059 = vmatpush1.msra.mxu0 0.0
    %2060 = vmatprep.subr.mxu0 0.0
    %2061 = vmatpush1.msra.mxu0 0.0
    %2062 = vmatprep.subr.mxu0 0.0
    %2063 = vmatpush1.msra.mxu0 0.0
    %2064 = vmatprep.subr.mxu0 0.0
    %2065 = vmatpush1.msra.mxu0 0.0
    %2066 = vmatprep.subr.mxu0 0.0
    %2067 = vmatpush1.msra.mxu0 0.0
    %2068 = vmatprep.subr.mxu0 0.0
    %2069 = vmatpush1.msra.mxu0 0.0
    %2070 = vmatprep.mubr.f32.mxu0 0.0
    %2071 = vmatmul.mubr.f32.gmra.mrb[0].mxu0 %v2004
    %v2072 = vpop.f32.mrb[0].mxu0
    %v2073 = vadd.f32 0.0, %v2072
    %v2074 = vpop.f32.mrb[0].mxu0
    %v2075 = vadd.f32 0.0, %v2074
    %2076 = vdwg.mxu0
    %2077 = vmatprep.subr.mxu0 %v936
    %2078 = vmatpush1.msra.mxu0 %v934
    %2079 = vmatprep.subr.mxu0 0.0
    %2080 = vmatpush1.msra.mxu0 0.0
    %2081 = vmatprep.subr.mxu0 0.0
    %2082 = vmatpush1.msra.mxu0 0.0
    %2083 = vmatprep.subr.mxu0 0.0
    %2084 = vmatpush1.msra.mxu0 0.0
    %2085 = vmatprep.subr.mxu0 0.0
    %2086 = vmatpush1.msra.mxu0 0.0
    %2087 = vmatprep.subr.mxu0 0.0
    %2088 = vmatpush1.msra.mxu0 0.0
    %2089 = vmatprep.subr.mxu0 0.0
    %2090 = vmatpush1.msra.mxu0 0.0
    %2091 = vmatprep.subr.mxu0 0.0
    %2092 = vmatpush1.msra.mxu0 0.0
    %2093 = vmatprep.subr.mxu0 0.0
    %2094 = vmatpush1.msra.mxu0 0.0
    %2095 = vmatprep.subr.mxu0 0.0
    %2096 = vmatpush1.msra.mxu0 0.0
    %2097 = vmatprep.subr.mxu0 0.0
    %2098 = vmatpush1.msra.mxu0 0.0
    %2099 = vmatprep.subr.mxu0 0.0
    %2100 = vmatpush1.msra.mxu0 0.0
    %2101 = vmatprep.subr.mxu0 0.0
    %2102 = vmatpush1.msra.mxu0 0.0
    %2103 = vmatprep.subr.mxu0 0.0
    %2104 = vmatpush1.msra.mxu0 0.0
    %2105 = vmatprep.subr.mxu0 0.0
    %2106 = vmatpush1.msra.mxu0 0.0
    %2107 = vmatprep.subr.mxu0 0.0
    %2108 = vmatpush1.msra.mxu0 0.0
    %2109 = vmatprep.subr.mxu0 0.0
    %2110 = vmatpush1.msra.mxu0 0.0
    %2111 = vmatprep.subr.mxu0 0.0
    %2112 = vmatpush1.msra.mxu0 0.0
    %2113 = vmatprep.subr.mxu0 0.0
    %2114 = vmatpush1.msra.mxu0 0.0
    %2115 = vmatprep.subr.mxu0 0.0
    %2116 = vmatpush1.msra.mxu0 0.0
    %2117 = vmatprep.subr.mxu0 0.0
    %2118 = vmatpush1.msra.mxu0 0.0
    %2119 = vmatprep.subr.mxu0 0.0
    %2120 = vmatpush1.msra.mxu0 0.0
    %2121 = vmatprep.subr.mxu0 0.0
    %2122 = vmatpush1.msra.mxu0 0.0
    %2123 = vmatprep.subr.mxu0 0.0
    %2124 = vmatpush1.msra.mxu0 0.0
    %2125 = vmatprep.subr.mxu0 0.0
    %2126 = vmatpush1.msra.mxu0 0.0
    %2127 = vmatprep.subr.mxu0 0.0
    %2128 = vmatpush1.msra.mxu0 0.0
    %2129 = vmatprep.subr.mxu0 0.0
    %2130 = vmatpush1.msra.mxu0 0.0
    %2131 = vmatprep.subr.mxu0 0.0
    %2132 = vmatpush1.msra.mxu0 0.0
    %2133 = vmatprep.subr.mxu0 0.0
    %2134 = vmatpush1.msra.mxu0 0.0
    %2135 = vmatprep.subr.mxu0 0.0
    %2136 = vmatpush1.msra.mxu0 0.0
    %2137 = vmatprep.subr.mxu0 0.0
    %2138 = vmatpush1.msra.mxu0 0.0
    %2139 = vmatprep.subr.mxu0 0.0
    %2140 = vmatpush1.msra.mxu0 0.0
    %2141 = vmatprep.mubr.f32.mxu0 0.0
    %2142 = vmatmul.mubr.f32.gmra.mrb[0].mxu0 %v2004
    %v2143 = vpop.f32.mrb[0].mxu0
    %v2144 = vadd.f32 0.0, %v2143
    %v2145 = vpop.f32.mrb[0].mxu0
    %v2146 = vadd.f32 0.0, %v2145
    %2147 = vdwg.mxu0
    %v2148 = vsub.f32 %v1787, %v2073
    %v2149 = vsub.f32 %v1789, %v2075
    %v2150 = vsub.f32 %v1858, %v2144
    %v2151 = vsub.f32 %v1860, %v2146
    %v2152 = vmul.f32 %v2148, %v2148
    %v2153 = vmul.f32 %v2149, %v2149
    %v2154 = vmul.f32 %v2150, %v2150
    %v2155 = vmul.f32 %v2151, %v2151
    %2156 = vmatprep.subr.mxu0 0.0
    %2157 = vmatpush1.msra.mxu0 %v60
    %2158 = vmatprep.subr.mxu0 0.0
    %2159 = vmatpush1.msra.mxu0 %v61
    %2160 = vmatprep.subr.mxu0 0.0
    %2161 = vmatpush1.msra.mxu0 %v62
    %2162 = vmatprep.subr.mxu0 0.0
    %2163 = vmatpush1.msra.mxu0 %v63
    %2164 = vmatprep.subr.mxu0 0.0
    %2165 = vmatpush1.msra.mxu0 %v64
    %2166 = vmatprep.subr.mxu0 0.0
    %2167 = vmatpush1.msra.mxu0 %v65
    %2168 = vmatprep.subr.mxu0 0.0
    %2169 = vmatpush1.msra.mxu0 %v66
    %2170 = vmatprep.subr.mxu0 0.0
    %2171 = vmatpush1.msra.mxu0 %v67
    %2172 = vmatprep.subr.mxu0 0.0
    %2173 = vmatpush1.msra.mxu0 %v68
    %2174 = vmatprep.subr.mxu0 0.0
    %2175 = vmatpush1.msra.mxu0 %v69
    %2176 = vmatprep.subr.mxu0 0.0
    %2177 = vmatpush1.msra.mxu0 %v70
    %2178 = vmatprep.subr.mxu0 0.0
    %2179 = vmatpush1.msra.mxu0 %v71
    %2180 = vmatprep.subr.mxu0 0.0
    %2181 = vmatpush1.msra.mxu0 %v72
    %2182 = vmatprep.subr.mxu0 0.0
    %2183 = vmatpush1.msra.mxu0 %v73
    %2184 = vmatprep.subr.mxu0 0.0
    %2185 = vmatpush1.msra.mxu0 %v74
    %2186 = vmatprep.subr.mxu0 0.0
    %2187 = vmatpush1.msra.mxu0 %v75
    %2188 = vmatprep.subr.mxu0 0.0
    %2189 = vmatpush1.msra.mxu0 %v76
    %2190 = vmatprep.subr.mxu0 0.0
    %2191 = vmatpush1.msra.mxu0 %v77
    %2192 = vmatprep.subr.mxu0 0.0
    %2193 = vmatpush1.msra.mxu0 %v78
    %2194 = vmatprep.subr.mxu0 0.0
    %2195 = vmatpush1.msra.mxu0 %v79
    %2196 = vmatprep.subr.mxu0 0.0
    %2197 = vmatpush1.msra.mxu0 %v80
    %2198 = vmatprep.subr.mxu0 0.0
    %2199 = vmatpush1.msra.mxu0 %v81
    %2200 = vmatprep.subr.mxu0 0.0
    %2201 = vmatpush1.msra.mxu0 %v82
    %2202 = vmatprep.subr.mxu0 0.0
    %2203 = vmatpush1.msra.mxu0 %v83
    %2204 = vmatprep.subr.mxu0 0.0
    %2205 = vmatpush1.msra.mxu0 %v84
    %2206 = vmatprep.subr.mxu0 0.0
    %2207 = vmatpush1.msra.mxu0 %v85
    %2208 = vmatprep.subr.mxu0 0.0
    %2209 = vmatpush1.msra.mxu0 %v86
    %2210 = vmatprep.subr.mxu0 0.0
    %2211 = vmatpush1.msra.mxu0 %v87
    %2212 = vmatprep.subr.mxu0 0.0
    %2213 = vmatpush1.msra.mxu0 %v88
    %2214 = vmatprep.subr.mxu0 0.0
    %2215 = vmatpush1.msra.mxu0 %v89
    %2216 = vmatprep.subr.mxu0 0.0
    %2217 = vmatpush1.msra.mxu0 %v90
    %2218 = vmatprep.subr.mxu0 0.0
    %2219 = vmatpush1.msra.mxu0 %v91
    %2220 = vmatprep.mubr.f32.mxu0 %v2153
    %2221 = vmatmul.mubr.f32.gmra.mrb[0].mxu0 %v2152
    %v2222 = vpop.f32.mrb[0].mxu0
    %v2223 = vadd.f32 0.0, %v2222
    %v2224 = vpop.f32.mrb[0].mxu0
    %2225 = vdwg.mxu0
    %2226 = vmatprep.subr.mxu0 0.0
    %2227 = vmatpush1.msra.mxu0 %v92
    %2228 = vmatprep.subr.mxu0 0.0
    %2229 = vmatpush1.msra.mxu0 %v93
    %2230 = vmatprep.subr.mxu0 0.0
    %2231 = vmatpush1.msra.mxu0 %v94
    %2232 = vmatprep.subr.mxu0 0.0
    %2233 = vmatpush1.msra.mxu0 %v95
    %2234 = vmatprep.subr.mxu0 0.0
    %2235 = vmatpush1.msra.mxu0 %v96
    %2236 = vmatprep.subr.mxu0 0.0
    %2237 = vmatpush1.msra.mxu0 %v97
    %2238 = vmatprep.subr.mxu0 0.0
    %2239 = vmatpush1.msra.mxu0 %v98
    %2240 = vmatprep.subr.mxu0 0.0
    %2241 = vmatpush1.msra.mxu0 %v99
    %2242 = vmatprep.subr.mxu0 0.0
    %2243 = vmatpush1.msra.mxu0 %v100
    %2244 = vmatprep.subr.mxu0 0.0
    %2245 = vmatpush1.msra.mxu0 %v101
    %2246 = vmatprep.subr.mxu0 0.0
    %2247 = vmatpush1.msra.mxu0 %v102
    %2248 = vmatprep.subr.mxu0 0.0
    %2249 = vmatpush1.msra.mxu0 %v103
    %2250 = vmatprep.subr.mxu0 0.0
    %2251 = vmatpush1.msra.mxu0 %v104
    %2252 = vmatprep.subr.mxu0 0.0
    %2253 = vmatpush1.msra.mxu0 %v105
    %2254 = vmatprep.subr.mxu0 0.0
    %2255 = vmatpush1.msra.mxu0 %v106
    %2256 = vmatprep.subr.mxu0 0.0
    %2257 = vmatpush1.msra.mxu0 %v107
    %2258 = vmatprep.subr.mxu0 0.0
    %2259 = vmatpush1.msra.mxu0 %v108
    %2260 = vmatprep.subr.mxu0 0.0
    %2261 = vmatpush1.msra.mxu0 %v109
    %2262 = vmatprep.subr.mxu0 0.0
    %2263 = vmatpush1.msra.mxu0 %v110
    %2264 = vmatprep.subr.mxu0 0.0
    %2265 = vmatpush1.msra.mxu0 %v111
    %2266 = vmatprep.subr.mxu0 0.0
    %2267 = vmatpush1.msra.mxu0 %v112
    %2268 = vmatprep.subr.mxu0 0.0
    %2269 = vmatpush1.msra.mxu0 %v113
    %2270 = vmatprep.subr.mxu0 0.0
    %2271 = vmatpush1.msra.mxu0 %v114
    %2272 = vmatprep.subr.mxu0 0.0
    %2273 = vmatpush1.msra.mxu0 %v115
    %2274 = vmatprep.subr.mxu0 0.0
    %2275 = vmatpush1.msra.mxu0 %v116
    %2276 = vmatprep.subr.mxu0 0.0
    %2277 = vmatpush1.msra.mxu0 %v117
    %2278 = vmatprep.subr.mxu0 0.0
    %2279 = vmatpush1.msra.mxu0 %v118
    %2280 = vmatprep.subr.mxu0 0.0
    %2281 = vmatpush1.msra.mxu0 %v119
    %2282 = vmatprep.subr.mxu0 0.0
    %2283 = vmatpush1.msra.mxu0 %v120
    %2284 = vmatprep.subr.mxu0 0.0
    %2285 = vmatpush1.msra.mxu0 %v121
    %2286 = vmatprep.subr.mxu0 0.0
    %2287 = vmatpush1.msra.mxu0 %v122
    %2288 = vmatprep.subr.mxu0 0.0
    %2289 = vmatpush1.msra.mxu0 %v123
    %2290 = vmatprep.mubr.f32.mxu0 %v2155
    %2291 = vmatmul.mubr.f32.gmra.mrb[0].mxu0 %v2154
    %v2292 = vpop.f32.mrb[0].mxu0
    %v2293 = vadd.f32 %v2223, %v2292
    %v2294 = vpop.f32.mrb[0].mxu0
    %2295 = vdwg.mxu0
    %v2296 = vmul.f32 %v2293, 0.00390625
    %v2297 = vadd.f32 %v2296, 1e-05
    %v2298 = vrsqrt.pop %v2297
    %v2300 = vsel %vm237, %v2298, 0
    %2302 = vmatprep.subr.mxu0 %v932
    %2303 = vmatpush1.msra.mxu0 %v930
    %2304 = vmatprep.subr.mxu0 0.0
    %2305 = vmatpush1.msra.mxu0 0.0
    %2306 = vmatprep.subr.mxu0 0.0
    %2307 = vmatpush1.msra.mxu0 0.0
    %2308 = vmatprep.subr.mxu0 0.0
    %2309 = vmatpush1.msra.mxu0 0.0
    %2310 = vmatprep.subr.mxu0 0.0
    %2311 = vmatpush1.msra.mxu0 0.0
    %2312 = vmatprep.subr.mxu0 0.0
    %2313 = vmatpush1.msra.mxu0 0.0
    %2314 = vmatprep.subr.mxu0 0.0
    %2315 = vmatpush1.msra.mxu0 0.0
    %2316 = vmatprep.subr.mxu0 0.0
    %2317 = vmatpush1.msra.mxu0 0.0
    %2318 = vmatprep.subr.mxu0 0.0
    %2319 = vmatpush1.msra.mxu0 0.0
    %2320 = vmatprep.subr.mxu0 0.0
    %2321 = vmatpush1.msra.mxu0 0.0
    %2322 = vmatprep.subr.mxu0 0.0
    %2323 = vmatpush1.msra.mxu0 0.0
    %2324 = vmatprep.subr.mxu0 0.0
    %2325 = vmatpush1.msra.mxu0 0.0
    %2326 = vmatprep.subr.mxu0 0.0
    %2327 = vmatpush1.msra.mxu0 0.0
    %2328 = vmatprep.subr.mxu0 0.0
    %2329 = vmatpush1.msra.mxu0 0.0
    %2330 = vmatprep.subr.mxu0 0.0
    %2331 = vmatpush1.msra.mxu0 0.0
    %2332 = vmatprep.subr.mxu0 0.0
    %2333 = vmatpush1.msra.mxu0 0.0
    %2334 = vmatprep.subr.mxu0 0.0
    %2335 = vmatpush1.msra.mxu0 0.0
    %2336 = vmatprep.subr.mxu0 0.0
    %2337 = vmatpush1.msra.mxu0 0.0
    %2338 = vmatprep.subr.mxu0 0.0
    %2339 = vmatpush1.msra.mxu0 0.0
    %2340 = vmatprep.subr.mxu0 0.0
    %2341 = vmatpush1.msra.mxu0 0.0
    %2342 = vmatprep.subr.mxu0 0.0
    %2343 = vmatpush1.msra.mxu0 0.0
    %2344 = vmatprep.subr.mxu0 0.0
    %2345 = vmatpush1.msra.mxu0 0.0
    %2346 = vmatprep.subr.mxu0 0.0
    %2347 = vmatpush1.msra.mxu0 0.0
    %2348 = vmatprep.subr.mxu0 0.0
    %2349 = vmatpush1.msra.mxu0 0.0
    %2350 = vmatprep.subr.mxu0 0.0
    %2351 = vmatpush1.msra.mxu0 0.0
    %2352 = vmatprep.subr.mxu0 0.0
    %2353 = vmatpush1.msra.mxu0 0.0
    %2354 = vmatprep.subr.mxu0 0.0
    %2355 = vmatpush1.msra.mxu0 0.0
    %2356 = vmatprep.subr.mxu0 0.0
    %2357 = vmatpush1.msra.mxu0 0.0
    %2358 = vmatprep.subr.mxu0 0.0
    %2359 = vmatpush1.msra.mxu0 0.0
    %2360 = vmatprep.subr.mxu0 0.0
    %2361 = vmatpush1.msra.mxu0 0.0
    %2362 = vmatprep.subr.mxu0 0.0
    %2363 = vmatpush1.msra.mxu0 0.0
    %2364 = vmatprep.subr.mxu0 0.0
    %2365 = vmatpush1.msra.mxu0 0.0
    %2366 = vmatprep.mubr.f32.mxu0 0.0
    %2367 = vmatmul.mubr.f32.gmra.mrb[0].mxu0 %v2300
    %v2368 = vpop.f32.mrb[0].mxu0
    %v2369 = vadd.f32 0.0, %v2368
    %v2370 = vpop.f32.mrb[0].mxu0
    %v2371 = vadd.f32 0.0, %v2370
    %2372 = vdwg.mxu0
    %2373 = vmatprep.subr.mxu0 %v936
    %2374 = vmatpush1.msra.mxu0 %v934
    %2375 = vmatprep.subr.mxu0 0.0
    %2376 = vmatpush1.msra.mxu0 0.0
    %2377 = vmatprep.subr.mxu0 0.0
    %2378 = vmatpush1.msra.mxu0 0.0
    %2379 = vmatprep.subr.mxu0 0.0
    %2380 = vmatpush1.msra.mxu0 0.0
    %2381 = vmatprep.subr.mxu0 0.0
    %2382 = vmatpush1.msra.mxu0 0.0
    %2383 = vmatprep.subr.mxu0 0.0
    %2384 = vmatpush1.msra.mxu0 0.0
    %2385 = vmatprep.subr.mxu0 0.0
    %2386 = vmatpush1.msra.mxu0 0.0
    %2387 = vmatprep.subr.mxu0 0.0
    %2388 = vmatpush1.msra.mxu0 0.0
    %2389 = vmatprep.subr.mxu0 0.0
    %2390 = vmatpush1.msra.mxu0 0.0
    %2391 = vmatprep.subr.mxu0 0.0
    %2392 = vmatpush1.msra.mxu0 0.0
    %2393 = vmatprep.subr.mxu0 0.0
    %2394 = vmatpush1.msra.mxu0 0.0
    %2395 = vmatprep.subr.mxu0 0.0
    %2396 = vmatpush1.msra.mxu0 0.0
    %2397 = vmatprep.subr.mxu0 0.0
    %2398 = vmatpush1.msra.mxu0 0.0
    %2399 = vmatprep.subr.mxu0 0.0
    %2400 = vmatpush1.msra.mxu0 0.0
    %2401 = vmatprep.subr.mxu0 0.0
    %2402 = vmatpush1.msra.mxu0 0.0
    %2403 = vmatprep.subr.mxu0 0.0
    %2404 = vmatpush1.msra.mxu0 0.0
    %2405 = vmatprep.subr.mxu0 0.0
    %2406 = vmatpush1.msra.mxu0 0.0
    %2407 = vmatprep.subr.mxu0 0.0
    %2408 = vmatpush1.msra.mxu0 0.0
    %2409 = vmatprep.subr.mxu0 0.0
    %2410 = vmatpush1.msra.mxu0 0.0
    %2411 = vmatprep.subr.mxu0 0.0
    %2412 = vmatpush1.msra.mxu0 0.0
    %2413 = vmatprep.subr.mxu0 0.0
    %2414 = vmatpush1.msra.mxu0 0.0
    %2415 = vmatprep.subr.mxu0 0.0
    %2416 = vmatpush1.msra.mxu0 0.0
    %2417 = vmatprep.subr.mxu0 0.0
    %2418 = vmatpush1.msra.mxu0 0.0
    %2419 = vmatprep.subr.mxu0 0.0
    %2420 = vmatpush1.msra.mxu0 0.0
    %2421 = vmatprep.subr.mxu0 0.0
    %2422 = vmatpush1.msra.mxu0 0.0
    %2423 = vmatprep.subr.mxu0 0.0
    %2424 = vmatpush1.msra.mxu0 0.0
    %2425 = vmatprep.subr.mxu0 0.0
    %2426 = vmatpush1.msra.mxu0 0.0
    %2427 = vmatprep.subr.mxu0 0.0
    %2428 = vmatpush1.msra.mxu0 0.0
    %2429 = vmatprep.subr.mxu0 0.0
    %2430 = vmatpush1.msra.mxu0 0.0
    %2431 = vmatprep.subr.mxu0 0.0
    %2432 = vmatpush1.msra.mxu0 0.0
    %2433 = vmatprep.subr.mxu0 0.0
    %2434 = vmatpush1.msra.mxu0 0.0
    %2435 = vmatprep.subr.mxu0 0.0
    %2436 = vmatpush1.msra.mxu0 0.0
    %2437 = vmatprep.mubr.f32.mxu0 0.0
    %2438 = vmatmul.mubr.f32.gmra.mrb[0].mxu0 %v2300
    %v2439 = vpop.f32.mrb[0].mxu0
    %v2440 = vadd.f32 0.0, %v2439
    %v2441 = vpop.f32.mrb[0].mxu0
    %v2442 = vadd.f32 0.0, %v2441
    %2443 = vdwg.mxu0
    %v2444 = vmul.f32 %v2148, %v2369
    %v2445 = vmul.f32 %v2149, %v2371
    %v2446 = vmul.f32 %v2150, %v2440
    %v2447 = vmul.f32 %v2151, %v2442
    %v2448 = vmul.f32 %v2444, 0.5
    %v2449 = vmul.f32 %v2445, 0.5
    %v2450 = vmul.f32 %v2446, 0.5
    %v2451 = vmul.f32 %v2447, 0.5
    %v2452 = vmul.f32 %v2444, 0.70710677
    %v2453 = vmul.f32 %v2445, 0.70710677
    %v2454 = vmul.f32 %v2446, 0.70710677
    %v2455 = vmul.f32 %v2447, 0.70710677
    %v2456 = vand.u32 2147483647, %v2452
    %v2457 = vand.u32 2147483647, %v2453
    %v2458 = vand.u32 2147483647, %v2454
    %v2459 = vand.u32 2147483647, %v2455
    %v2460 = vmul.f32 %v2456, 0.3275911
    %v2461 = vmul.f32 %v2457, 0.3275911
    %v2462 = vmul.f32 %v2458, 0.3275911
    %v2463 = vmul.f32 %v2459, 0.3275911
    %v2464 = vadd.f32 %v2460, 1.0
    %v2465 = vadd.f32 %v2461, 1.0
    %v2466 = vadd.f32 %v2462, 1.0
    %v2467 = vadd.f32 %v2463, 1.0
    %v2468 = vrcp.pop %v2464
    %v2469 = vmul.f32 1.0, %v2468
    %v2470 = vrcp.pop %v2465
    %v2471 = vmul.f32 1.0, %v2470
    %v2472 = vrcp.pop %v2466
    %v2473 = vmul.f32 1.0, %v2472
    %v2474 = vrcp.pop %v2467
    %v2475 = vmul.f32 1.0, %v2474
    %v2476 = vmul.f32 %v2469, 1.0614054
    %v2477 = vmul.f32 %v2471, 1.0614054
    %v2478 = vmul.f32 %v2473, 1.0614054
    %v2479 = vmul.f32 %v2475, 1.0614054
    %v2480 = vadd.f32 %v2476, -1.4531521
    %v2481 = vadd.f32 %v2477, -1.4531521
    %v2482 = vadd.f32 %v2478, -1.4531521
    %v2483 = vadd.f32 %v2479, -1.4531521
    %v2484 = vmul.f32 %v2469, %v2480
    %v2485 = vmul.f32 %v2471, %v2481
    %v2486 = vmul.f32 %v2473, %v2482
    %v2487 = vmul.f32 %v2475, %v2483
    %v2488 = vadd.f32 %v2484, 1.4214138
    %v2489 = vadd.f32 %v2485, 1.4214138
    %v2490 = vadd.f32 %v2486, 1.4214138
    %v2491 = vadd.f32 %v2487, 1.4214138
    %v2492 = vmul.f32 %v2469, %v2488
    %v2493 = vmul.f32 %v2471, %v2489
    %v2494 = vmul.f32 %v2473, %v2490
    %v2495 = vmul.f32 %v2475, %v2491
    %v2496 = vadd.f32 %v2492, -0.28449672
    %v2497 = vadd.f32 %v2493, -0.28449672
    %v2498 = vadd.f32 %v2494, -0.28449672
    %v2499 = vadd.f32 %v2495, -0.28449672
    %v2500 = vmul.f32 %v2469, %v2496
    %v2501 = vmul.f32 %v2471, %v2497
    %v2502 = vmul.f32 %v2473, %v2498
    %v2503 = vmul.f32 %v2475, %v2499
    %v2504 = vadd.f32 %v2500, 0.2548296
    %v2505 = vadd.f32 %v2501, 0.2548296
    %v2506 = vadd.f32 %v2502, 0.2548296
    %v2507 = vadd.f32 %v2503, 0.2548296
    %v2508 = vmul.f32 %v2469, %v2504
    %v2509 = vmul.f32 %v2471, %v2505
    %v2510 = vmul.f32 %v2473, %v2506
    %v2511 = vmul.f32 %v2475, %v2507
    %v2512 = vsub.f32 0.0, %v2456
    %v2513 = vsub.f32 0.0, %v2457
    %v2514 = vsub.f32 0.0, %v2458
    %v2515 = vsub.f32 0.0, %v2459
    %v2516 = vmul.f32 %v2512, %v2456
    %v2517 = vmul.f32 %v2513, %v2457
    %v2518 = vmul.f32 %v2514, %v2458
    %v2519 = vmul.f32 %v2515, %v2459
    %v2520 = vmul.f32 %v2516, 1.442695
    %v2521 = vpow.pop %v2520
    %v2522 = vmul.f32 %v2517, 1.442695
    %v2523 = vpow.pop %v2522
    %v2524 = vmul.f32 %v2518, 1.442695
    %v2525 = vpow.pop %v2524
    %v2526 = vmul.f32 %v2519, 1.442695
    %v2527 = vpow.pop %v2526
    %v2528 = vmul.f32 %v2508, %v2521
    %v2529 = vmul.f32 %v2509, %v2523
    %v2530 = vmul.f32 %v2510, %v2525
    %v2531 = vmul.f32 %v2511, %v2527
    %v2532 = vsub.f32 1.0, %v2528
    %v2533 = vsub.f32 1.0, %v2529
    %v2534 = vsub.f32 1.0, %v2530
    %v2535 = vsub.f32 1.0, %v2531
    %vm2536 = vcmp.ge.f32.partialorder %v2452, 0.0
    %vm2537 = vcmp.ge.f32.partialorder %v2453, 0.0
    %vm2538 = vcmp.ge.f32.partialorder %v2454, 0.0
    %vm2539 = vcmp.ge.f32.partialorder %v2455, 0.0
    %v2540 = vsub.f32 0.0, %v2532
    %v2541 = vsub.f32 0.0, %v2533
    %v2542 = vsub.f32 0.0, %v2534
    %v2543 = vsub.f32 0.0, %v2535
    %v2544 = vsel %vm2536, %v2532, %v2540
    %v2545 = vsel %vm2537, %v2533, %v2541
    %v2546 = vsel %vm2538, %v2534, %v2542
    %v2547 = vsel %vm2539, %v2535, %v2543
    %v2548 = vadd.f32 %v2544, 1.0
    %v2549 = vadd.f32 %v2545, 1.0
    %v2550 = vadd.f32 %v2546, 1.0
    %v2551 = vadd.f32 %v2547, 1.0
    %v2552 = vmul.f32 %v2448, %v2548
    %v2553 = vmul.f32 %v2449, %v2549
    %v2554 = vmul.f32 %v2450, %v2550
    %v2555 = vmul.f32 %v2451, %v2551
    %v2556 = vld [vmem:[%s8] sm:$0xff]
    %v2557 = vld [vmem:[%s9] sm:$0xff]
    %2559 = vset.pattern.permute.xlu0 0
    %2560 = vperm.xlu0 %2559, %v2557
    %v2561 = vpop.permute.xlu0 %2560
    %vm2563 = vcmask 64512
    %v2565 = vsel %vm2563, %v2556, 0
    %2567 = vmatprep.subr.mxu0 %v2553
    %2568 = vmatpush1.msra.mxu0 %v2552
    %2569 = vmatprep.subr.mxu0 0.0
    %2570 = vmatpush1.msra.mxu0 0.0
    %2571 = vmatprep.subr.mxu0 0.0
    %2572 = vmatpush1.msra.mxu0 0.0
    %2573 = vmatprep.subr.mxu0 0.0
    %2574 = vmatpush1.msra.mxu0 0.0
    %2575 = vmatprep.subr.mxu0 0.0
    %2576 = vmatpush1.msra.mxu0 0.0
    %2577 = vmatprep.subr.mxu0 0.0
    %2578 = vmatpush1.msra.mxu0 0.0
    %2579 = vmatprep.subr.mxu0 0.0
    %2580 = vmatpush1.msra.mxu0 0.0
    %2581 = vmatprep.subr.mxu0 0.0
    %2582 = vmatpush1.msra.mxu0 0.0
    %2583 = vmatprep.subr.mxu0 0.0
    %2584 = vmatpush1.msra.mxu0 0.0
    %2585 = vmatprep.subr.mxu0 0.0
    %2586 = vmatpush1.msra.mxu0 0.0
    %2587 = vmatprep.subr.mxu0 0.0
    %2588 = vmatpush1.msra.mxu0 0.0
    %2589 = vmatprep.subr.mxu0 0.0
    %2590 = vmatpush1.msra.mxu0 0.0
    %2591 = vmatprep.subr.mxu0 0.0
    %2592 = vmatpush1.msra.mxu0 0.0
    %2593 = vmatprep.subr.mxu0 0.0
    %2594 = vmatpush1.msra.mxu0 0.0
    %2595 = vmatprep.subr.mxu0 0.0
    %2596 = vmatpush1.msra.mxu0 0.0
    %2597 = vmatprep.subr.mxu0 0.0
    %2598 = vmatpush1.msra.mxu0 0.0
    %2599 = vmatprep.subr.mxu0 0.0
    %2600 = vmatpush1.msra.mxu0 0.0
    %2601 = vmatprep.subr.mxu0 0.0
    %2602 = vmatpush1.msra.mxu0 0.0
    %2603 = vmatprep.subr.mxu0 0.0
    %2604 = vmatpush1.msra.mxu0 0.0
    %2605 = vmatprep.subr.mxu0 0.0
    %2606 = vmatpush1.msra.mxu0 0.0
    %2607 = vmatprep.subr.mxu0 0.0
    %2608 = vmatpush1.msra.mxu0 0.0
    %2609 = vmatprep.subr.mxu0 0.0
    %2610 = vmatpush1.msra.mxu0 0.0
    %2611 = vmatprep.subr.mxu0 0.0
    %2612 = vmatpush1.msra.mxu0 0.0
    %2613 = vmatprep.subr.mxu0 0.0
    %2614 = vmatpush1.msra.mxu0 0.0
    %2615 = vmatprep.subr.mxu0 0.0
    %2616 = vmatpush1.msra.mxu0 0.0
    %2617 = vmatprep.subr.mxu0 0.0
    %2618 = vmatpush1.msra.mxu0 0.0
    %2619 = vmatprep.subr.mxu0 0.0
    %2620 = vmatpush1.msra.mxu0 0.0
    %2621 = vmatprep.subr.mxu0 0.0
    %2622 = vmatpush1.msra.mxu0 0.0
    %2623 = vmatprep.subr.mxu0 0.0
    %2624 = vmatpush1.msra.mxu0 0.0
    %2625 = vmatprep.subr.mxu0 0.0
    %2626 = vmatpush1.msra.mxu0 0.0
    %2627 = vmatprep.subr.mxu0 0.0
    %2628 = vmatpush1.msra.mxu0 0.0
    %2629 = vmatprep.subr.mxu0 0.0
    %2630 = vmatpush1.msra.mxu0 0.0
    %2631 = vmatprep.mubr.f32.mxu0 0.0
    %2632 = vmatmul.mubr.f32.gmra.mrb[0].mxu0 %v2565
    %v2633 = vpop.f32.mrb[0].mxu0
    %v2634 = vadd.f32 %v2561, %v2633
    %v2635 = vpop.f32.mrb[0].mxu0
    %v2636 = vadd.f32 %v2561, %v2635
    %2637 = vdwg.mxu0
    %2638 = vmatprep.subr.mxu0 %v2555
    %2639 = vmatpush1.msra.mxu0 %v2554
    %2640 = vmatprep.subr.mxu0 0.0
    %2641 = vmatpush1.msra.mxu0 0.0
    %2642 = vmatprep.subr.mxu0 0.0
    %2643 = vmatpush1.msra.mxu0 0.0
    %2644 = vmatprep.subr.mxu0 0.0
    %2645 = vmatpush1.msra.mxu0 0.0
    %2646 = vmatprep.subr.mxu0 0.0
    %2647 = vmatpush1.msra.mxu0 0.0
    %2648 = vmatprep.subr.mxu0 0.0
    %2649 = vmatpush1.msra.mxu0 0.0
    %2650 = vmatprep.subr.mxu0 0.0
    %2651 = vmatpush1.msra.mxu0 0.0
    %2652 = vmatprep.subr.mxu0 0.0
    %2653 = vmatpush1.msra.mxu0 0.0
    %2654 = vmatprep.subr.mxu0 0.0
    %2655 = vmatpush1.msra.mxu0 0.0
    %2656 = vmatprep.subr.mxu0 0.0
    %2657 = vmatpush1.msra.mxu0 0.0
    %2658 = vmatprep.subr.mxu0 0.0
    %2659 = vmatpush1.msra.mxu0 0.0
    %2660 = vmatprep.subr.mxu0 0.0
    %2661 = vmatpush1.msra.mxu0 0.0
    %2662 = vmatprep.subr.mxu0 0.0
    %2663 = vmatpush1.msra.mxu0 0.0
    %2664 = vmatprep.subr.mxu0 0.0
    %2665 = vmatpush1.msra.mxu0 0.0
    %2666 = vmatprep.subr.mxu0 0.0
    %2667 = vmatpush1.msra.mxu0 0.0
    %2668 = vmatprep.subr.mxu0 0.0
    %2669 = vmatpush1.msra.mxu0 0.0
    %2670 = vmatprep.subr.mxu0 0.0
    %2671 = vmatpush1.msra.mxu0 0.0
    %2672 = vmatprep.subr.mxu0 0.0
    %2673 = vmatpush1.msra.mxu0 0.0
    %2674 = vmatprep.subr.mxu0 0.0
    %2675 = vmatpush1.msra.mxu0 0.0
    %2676 = vmatprep.subr.mxu0 0.0
    %2677 = vmatpush1.msra.mxu0 0.0
    %2678 = vmatprep.subr.mxu0 0.0
    %2679 = vmatpush1.msra.mxu0 0.0
    %2680 = vmatprep.subr.mxu0 0.0
    %2681 = vmatpush1.msra.mxu0 0.0
    %2682 = vmatprep.subr.mxu0 0.0
    %2683 = vmatpush1.msra.mxu0 0.0
    %2684 = vmatprep.subr.mxu0 0.0
    %2685 = vmatpush1.msra.mxu0 0.0
    %2686 = vmatprep.subr.mxu0 0.0
    %2687 = vmatpush1.msra.mxu0 0.0
    %2688 = vmatprep.subr.mxu0 0.0
    %2689 = vmatpush1.msra.mxu0 0.0
    %2690 = vmatprep.subr.mxu0 0.0
    %2691 = vmatpush1.msra.mxu0 0.0
    %2692 = vmatprep.subr.mxu0 0.0
    %2693 = vmatpush1.msra.mxu0 0.0
    %2694 = vmatprep.subr.mxu0 0.0
    %2695 = vmatpush1.msra.mxu0 0.0
    %2696 = vmatprep.subr.mxu0 0.0
    %2697 = vmatpush1.msra.mxu0 0.0
    %2698 = vmatprep.subr.mxu0 0.0
    %2699 = vmatpush1.msra.mxu0 0.0
    %2700 = vmatprep.subr.mxu0 0.0
    %2701 = vmatpush1.msra.mxu0 0.0
    %2702 = vmatprep.mubr.f32.mxu0 0.0
    %2703 = vmatmul.mubr.f32.gmra.mrb[0].mxu0 %v2565
    %v2704 = vpop.f32.mrb[0].mxu0
    %v2705 = vadd.f32 %v2561, %v2704
    %v2706 = vpop.f32.mrb[0].mxu0
    %v2707 = vadd.f32 %v2561, %v2706
    %2708 = vdwg.mxu0
    %2709 = vmatprep.subr.mxu0 0.0
    %2710 = vmatpush1.msra.mxu0 %v60
    %2711 = vmatprep.subr.mxu0 0.0
    %2712 = vmatpush1.msra.mxu0 %v61
    %2713 = vmatprep.subr.mxu0 0.0
    %2714 = vmatpush1.msra.mxu0 %v62
    %2715 = vmatprep.subr.mxu0 0.0
    %2716 = vmatpush1.msra.mxu0 %v63
    %2717 = vmatprep.subr.mxu0 0.0
    %2718 = vmatpush1.msra.mxu0 %v64
    %2719 = vmatprep.subr.mxu0 0.0
    %2720 = vmatpush1.msra.mxu0 %v65
    %2721 = vmatprep.subr.mxu0 0.0
    %2722 = vmatpush1.msra.mxu0 %v66
    %2723 = vmatprep.subr.mxu0 0.0
    %2724 = vmatpush1.msra.mxu0 %v67
    %2725 = vmatprep.subr.mxu0 0.0
    %2726 = vmatpush1.msra.mxu0 %v68
    %2727 = vmatprep.subr.mxu0 0.0
    %2728 = vmatpush1.msra.mxu0 %v69
    %2729 = vmatprep.subr.mxu0 0.0
    %2730 = vmatpush1.msra.mxu0 %v70
    %2731 = vmatprep.subr.mxu0 0.0
    %2732 = vmatpush1.msra.mxu0 %v71
    %2733 = vmatprep.subr.mxu0 0.0
    %2734 = vmatpush1.msra.mxu0 %v72
    %2735 = vmatprep.subr.mxu0 0.0
    %2736 = vmatpush1.msra.mxu0 %v73
    %2737 = vmatprep.subr.mxu0 0.0
    %2738 = vmatpush1.msra.mxu0 %v74
    %2739 = vmatprep.subr.mxu0 0.0
    %2740 = vmatpush1.msra.mxu0 %v75
    %2741 = vmatprep.subr.mxu0 0.0
    %2742 = vmatpush1.msra.mxu0 %v76
    %2743 = vmatprep.subr.mxu0 0.0
    %2744 = vmatpush1.msra.mxu0 %v77
    %2745 = vmatprep.subr.mxu0 0.0
    %2746 = vmatpush1.msra.mxu0 %v78
    %2747 = vmatprep.subr.mxu0 0.0
    %2748 = vmatpush1.msra.mxu0 %v79
    %2749 = vmatprep.subr.mxu0 0.0
    %2750 = vmatpush1.msra.mxu0 %v80
    %2751 = vmatprep.subr.mxu0 0.0
    %2752 = vmatpush1.msra.mxu0 %v81
    %2753 = vmatprep.subr.mxu0 0.0
    %2754 = vmatpush1.msra.mxu0 %v82
    %2755 = vmatprep.subr.mxu0 0.0
    %2756 = vmatpush1.msra.mxu0 %v83
    %2757 = vmatprep.subr.mxu0 0.0
    %2758 = vmatpush1.msra.mxu0 %v84
    %2759 = vmatprep.subr.mxu0 0.0
    %2760 = vmatpush1.msra.mxu0 %v85
    %2761 = vmatprep.subr.mxu0 0.0
    %2762 = vmatpush1.msra.mxu0 %v86
    %2763 = vmatprep.subr.mxu0 0.0
    %2764 = vmatpush1.msra.mxu0 %v87
    %2765 = vmatprep.subr.mxu0 0.0
    %2766 = vmatpush1.msra.mxu0 %v88
    %2767 = vmatprep.subr.mxu0 0.0
    %2768 = vmatpush1.msra.mxu0 %v89
    %2769 = vmatprep.subr.mxu0 0.0
    %2770 = vmatpush1.msra.mxu0 %v90
    %2771 = vmatprep.subr.mxu0 0.0
    %2772 = vmatpush1.msra.mxu0 %v91
    %2773 = vmatprep.mubr.f32.mxu0 %v2553
    %2774 = vmatmul.mubr.f32.gmra.mrb[0].mxu0 %v2552
    %v2775 = vpop.f32.mrb[0].mxu0
    %v2776 = vadd.f32 0.0, %v2775
    %v2777 = vpop.f32.mrb[0].mxu0
    %2778 = vdwg.mxu0
    %2779 = vmatprep.subr.mxu0 0.0
    %2780 = vmatpush1.msra.mxu0 %v92
    %2781 = vmatprep.subr.mxu0 0.0
    %2782 = vmatpush1.msra.mxu0 %v93
    %2783 = vmatprep.subr.mxu0 0.0
    %2784 = vmatpush1.msra.mxu0 %v94
    %2785 = vmatprep.subr.mxu0 0.0
    %2786 = vmatpush1.msra.mxu0 %v95
    %2787 = vmatprep.subr.mxu0 0.0
    %2788 = vmatpush1.msra.mxu0 %v96
    %2789 = vmatprep.subr.mxu0 0.0
    %2790 = vmatpush1.msra.mxu0 %v97
    %2791 = vmatprep.subr.mxu0 0.0
    %2792 = vmatpush1.msra.mxu0 %v98
    %2793 = vmatprep.subr.mxu0 0.0
    %2794 = vmatpush1.msra.mxu0 %v99
    %2795 = vmatprep.subr.mxu0 0.0
    %2796 = vmatpush1.msra.mxu0 %v100
    %2797 = vmatprep.subr.mxu0 0.0
    %2798 = vmatpush1.msra.mxu0 %v101
    %2799 = vmatprep.subr.mxu0 0.0
    %2800 = vmatpush1.msra.mxu0 %v102
    %2801 = vmatprep.subr.mxu0 0.0
    %2802 = vmatpush1.msra.mxu0 %v103
    %2803 = vmatprep.subr.mxu0 0.0
    %2804 = vmatpush1.msra.mxu0 %v104
    %2805 = vmatprep.subr.mxu0 0.0
    %2806 = vmatpush1.msra.mxu0 %v105
    %2807 = vmatprep.subr.mxu0 0.0
    %2808 = vmatpush1.msra.mxu0 %v106
    %2809 = vmatprep.subr.mxu0 0.0
    %2810 = vmatpush1.msra.mxu0 %v107
    %2811 = vmatprep.subr.mxu0 0.0
    %2812 = vmatpush1.msra.mxu0 %v108
    %2813 = vmatprep.subr.mxu0 0.0
    %2814 = vmatpush1.msra.mxu0 %v109
    %2815 = vmatprep.subr.mxu0 0.0
    %2816 = vmatpush1.msra.mxu0 %v110
    %2817 = vmatprep.subr.mxu0 0.0
    %2818 = vmatpush1.msra.mxu0 %v111
    %2819 = vmatprep.subr.mxu0 0.0
    %2820 = vmatpush1.msra.mxu0 %v112
    %2821 = vmatprep.subr.mxu0 0.0
    %2822 = vmatpush1.msra.mxu0 %v113
    %2823 = vmatprep.subr.mxu0 0.0
    %2824 = vmatpush1.msra.mxu0 %v114
    %2825 = vmatprep.subr.mxu0 0.0
    %2826 = vmatpush1.msra.mxu0 %v115
    %2827 = vmatprep.subr.mxu0 0.0
    %2828 = vmatpush1.msra.mxu0 %v116
    %2829 = vmatprep.subr.mxu0 0.0
    %2830 = vmatpush1.msra.mxu0 %v117
    %2831 = vmatprep.subr.mxu0 0.0
    %2832 = vmatpush1.msra.mxu0 %v118
    %2833 = vmatprep.subr.mxu0 0.0
    %2834 = vmatpush1.msra.mxu0 %v119
    %2835 = vmatprep.subr.mxu0 0.0
    %2836 = vmatpush1.msra.mxu0 %v120
    %2837 = vmatprep.subr.mxu0 0.0
    %2838 = vmatpush1.msra.mxu0 %v121
    %2839 = vmatprep.subr.mxu0 0.0
    %2840 = vmatpush1.msra.mxu0 %v122
    %2841 = vmatprep.subr.mxu0 0.0
    %2842 = vmatpush1.msra.mxu0 %v123
    %2843 = vmatprep.mubr.f32.mxu0 %v2555
    %2844 = vmatmul.mubr.f32.gmra.mrb[0].mxu0 %v2554
    %v2845 = vpop.f32.mrb[0].mxu0
    %v2846 = vadd.f32 %v2776, %v2845
    %v2847 = vpop.f32.mrb[0].mxu0
    %2848 = vdwg.mxu0
    %v2849 = vmul.f32 %v2846, 0.00390625
    %v2850 = vld [vmem:[%s10] sm:$0xf]
    %v2851 = vld [vmem:[%s11] sm:$0xf]
    %2853 = vset.pattern.permute.xlu0 0
    %2854 = vperm.xlu0 %2853, %v2851
    %v2855 = vpop.permute.xlu0 %2854
    %v2858 = vsel %vm2563, %v2850, 0
    %2860 = vmatprep.subr.mxu0 0.0
    %2861 = vmatpush1.msra.mxu0 %v2849
    %2862 = vmatprep.subr.mxu0 0.0
    %2863 = vmatpush1.msra.mxu0 0.0
    %2864 = vmatprep.subr.mxu0 0.0
    %2865 = vmatpush1.msra.mxu0 0.0
    %2866 = vmatprep.subr.mxu0 0.0
    %2867 = vmatpush1.msra.mxu0 0.0
    %2868 = vmatprep.subr.mxu0 0.0
    %2869 = vmatpush1.msra.mxu0 0.0
    %2870 = vmatprep.subr.mxu0 0.0
    %2871 = vmatpush1.msra.mxu0 0.0
    %2872 = vmatprep.subr.mxu0 0.0
    %2873 = vmatpush1.msra.mxu0 0.0
    %2874 = vmatprep.subr.mxu0 0.0
    %2875 = vmatpush1.msra.mxu0 0.0
    %2876 = vmatprep.subr.mxu0 0.0
    %2877 = vmatpush1.msra.mxu0 0.0
    %2878 = vmatprep.subr.mxu0 0.0
    %2879 = vmatpush1.msra.mxu0 0.0
    %2880 = vmatprep.subr.mxu0 0.0
    %2881 = vmatpush1.msra.mxu0 0.0
    %2882 = vmatprep.subr.mxu0 0.0
    %2883 = vmatpush1.msra.mxu0 0.0
    %2884 = vmatprep.subr.mxu0 0.0
    %2885 = vmatpush1.msra.mxu0 0.0
    %2886 = vmatprep.subr.mxu0 0.0
    %2887 = vmatpush1.msra.mxu0 0.0
    %2888 = vmatprep.subr.mxu0 0.0
    %2889 = vmatpush1.msra.mxu0 0.0
    %2890 = vmatprep.subr.mxu0 0.0
    %2891 = vmatpush1.msra.mxu0 0.0
    %2892 = vmatprep.subr.mxu0 0.0
    %2893 = vmatpush1.msra.mxu0 0.0
    %2894 = vmatprep.subr.mxu0 0.0
    %2895 = vmatpush1.msra.mxu0 0.0
    %2896 = vmatprep.subr.mxu0 0.0
    %2897 = vmatpush1.msra.mxu0 0.0
    %2898 = vmatprep.subr.mxu0 0.0
    %2899 = vmatpush1.msra.mxu0 0.0
    %2900 = vmatprep.subr.mxu0 0.0
    %2901 = vmatpush1.msra.mxu0 0.0
    %2902 = vmatprep.subr.mxu0 0.0
    %2903 = vmatpush1.msra.mxu0 0.0
    %2904 = vmatprep.subr.mxu0 0.0
    %2905 = vmatpush1.msra.mxu0 0.0
    %2906 = vmatprep.subr.mxu0 0.0
    %2907 = vmatpush1.msra.mxu0 0.0
    %2908 = vmatprep.subr.mxu0 0.0
    %2909 = vmatpush1.msra.mxu0 0.0
    %2910 = vmatprep.subr.mxu0 0.0
    %2911 = vmatpush1.msra.mxu0 0.0
    %2912 = vmatprep.subr.mxu0 0.0
    %2913 = vmatpush1.msra.mxu0 0.0
    %2914 = vmatprep.subr.mxu0 0.0
    %2915 = vmatpush1.msra.mxu0 0.0
    %2916 = vmatprep.subr.mxu0 0.0
    %2917 = vmatpush1.msra.mxu0 0.0
    %2918 = vmatprep.subr.mxu0 0.0
    %2919 = vmatpush1.msra.mxu0 0.0
    %2920 = vmatprep.subr.mxu0 0.0
    %2921 = vmatpush1.msra.mxu0 0.0
    %2922 = vmatprep.subr.mxu0 0.0
    %2923 = vmatpush1.msra.mxu0 0.0
    %2924 = vmatprep.mubr.f32.mxu0 0.0
    %2925 = vmatmul.mubr.f32.gmra.mrb[0].mxu0 %v2858
    %v2926 = vpop.f32.mrb[0].mxu0
    %v2927 = vadd.f32 %v2855, %v2926
    %v2928 = vpop.f32.mrb[0].mxu0
    %2929 = vdwg.mxu0
    %v2930 = vmul.f32 %v2927, 0.5
    %v2931 = vmul.f32 %v2927, 0.70710677
    %v2932 = vand.u32 2147483647, %v2931
    %v2933 = vmul.f32 %v2932, 0.3275911
    %v2934 = vadd.f32 %v2933, 1.0
    %v2935 = vrcp.pop %v2934
    %v2936 = vmul.f32 1.0, %v2935
    %v2937 = vmul.f32 %v2936, 1.0614054
    %v2938 = vadd.f32 %v2937, -1.4531521
    %v2939 = vmul.f32 %v2936, %v2938
    %v2940 = vadd.f32 %v2939, 1.4214138
    %v2941 = vmul.f32 %v2936, %v2940
    %v2942 = vadd.f32 %v2941, -0.28449672
    %v2943 = vmul.f32 %v2936, %v2942
    %v2944 = vadd.f32 %v2943, 0.2548296
    %v2945 = vmul.f32 %v2936, %v2944
    %v2946 = vsub.f32 0.0, %v2932
    %v2947 = vmul.f32 %v2946, %v2932
    %v2948 = vmul.f32 %v2947, 1.442695
    %v2949 = vpow.pop %v2948
    %v2950 = vmul.f32 %v2945, %v2949
    %v2951 = vsub.f32 1.0, %v2950
    %vm2952 = vcmp.ge.f32.partialorder %v2931, 0.0
    %v2953 = vsub.f32 0.0, %v2951
    %v2954 = vsel %vm2952, %v2951, %v2953
    %v2955 = vadd.f32 %v2954, 1.0
    %v2956 = vmul.f32 %v2930, %v2955
    %v2957 = vld [vmem:[%s12] sm:$0xff]
    %v2958 = vld [vmem:[%s13] sm:$0xff]
    %2960 = vset.pattern.permute.xlu0 0
    %2961 = vperm.xlu0 %2960, %v2958
    %v2962 = vpop.permute.xlu0 %2961
    %vm2964 = vcmask 31744
    %v2966 = vsel %vm2964, %v2957, 0
    %vm2968 = vcmask 1043456
    %v2970 = vsel %vm2968, %v2956, 0
    %2972 = vmatprep.subr.mxu0 0.0
    %2973 = vmatpush1.msra.mxu0 %v2970
    %2974 = vmatprep.subr.mxu0 0.0
    %2975 = vmatpush1.msra.mxu0 0.0
    %2976 = vmatprep.subr.mxu0 0.0
    %2977 = vmatpush1.msra.mxu0 0.0
    %2978 = vmatprep.subr.mxu0 0.0
    %2979 = vmatpush1.msra.mxu0 0.0
    %2980 = vmatprep.subr.mxu0 0.0
    %2981 = vmatpush1.msra.mxu0 0.0
    %2982 = vmatprep.subr.mxu0 0.0
    %2983 = vmatpush1.msra.mxu0 0.0
    %2984 = vmatprep.subr.mxu0 0.0
    %2985 = vmatpush1.msra.mxu0 0.0
    %2986 = vmatprep.subr.mxu0 0.0
    %2987 = vmatpush1.msra.mxu0 0.0
    %2988 = vmatprep.subr.mxu0 0.0
    %2989 = vmatpush1.msra.mxu0 0.0
    %2990 = vmatprep.subr.mxu0 0.0
    %2991 = vmatpush1.msra.mxu0 0.0
    %2992 = vmatprep.subr.mxu0 0.0
    %2993 = vmatpush1.msra.mxu0 0.0
    %2994 = vmatprep.subr.mxu0 0.0
    %2995 = vmatpush1.msra.mxu0 0.0
    %2996 = vmatprep.subr.mxu0 0.0
    %2997 = vmatpush1.msra.mxu0 0.0
    %2998 = vmatprep.subr.mxu0 0.0
    %2999 = vmatpush1.msra.mxu0 0.0
    %3000 = vmatprep.subr.mxu0 0.0
    %3001 = vmatpush1.msra.mxu0 0.0
    %3002 = vmatprep.subr.mxu0 0.0
    %3003 = vmatpush1.msra.mxu0 0.0
    %3004 = vmatprep.subr.mxu0 0.0
    %3005 = vmatpush1.msra.mxu0 0.0
    %3006 = vmatprep.subr.mxu0 0.0
    %3007 = vmatpush1.msra.mxu0 0.0
    %3008 = vmatprep.subr.mxu0 0.0
    %3009 = vmatpush1.msra.mxu0 0.0
    %3010 = vmatprep.subr.mxu0 0.0
    %3011 = vmatpush1.msra.mxu0 0.0
    %3012 = vmatprep.subr.mxu0 0.0
    %3013 = vmatpush1.msra.mxu0 0.0
    %3014 = vmatprep.subr.mxu0 0.0
    %3015 = vmatpush1.msra.mxu0 0.0
    %3016 = vmatprep.subr.mxu0 0.0
    %3017 = vmatpush1.msra.mxu0 0.0
    %3018 = vmatprep.subr.mxu0 0.0
    %3019 = vmatpush1.msra.mxu0 0.0
    %3020 = vmatprep.subr.mxu0 0.0
    %3021 = vmatpush1.msra.mxu0 0.0
    %3022 = vmatprep.subr.mxu0 0.0
    %3023 = vmatpush1.msra.mxu0 0.0
    %3024 = vmatprep.subr.mxu0 0.0
    %3025 = vmatpush1.msra.mxu0 0.0
    %3026 = vmatprep.subr.mxu0 0.0
    %3027 = vmatpush1.msra.mxu0 0.0
    %3028 = vmatprep.subr.mxu0 0.0
    %3029 = vmatpush1.msra.mxu0 0.0
    %3030 = vmatprep.subr.mxu0 0.0
    %3031 = vmatpush1.msra.mxu0 0.0
    %3032 = vmatprep.subr.mxu0 0.0
    %3033 = vmatpush1.msra.mxu0 0.0
    %3034 = vmatprep.subr.mxu0 0.0
    %3035 = vmatpush1.msra.mxu0 0.0
    %3036 = vmatprep.mubr.f32.mxu0 0.0
    %3037 = vmatmul.mubr.f32.gmra.mrb[0].mxu0 %v2966
    %v3038 = vpop.f32.mrb[0].mxu0
    %v3039 = vadd.f32 %v2962, %v3038
    %v3040 = vpop.f32.mrb[0].mxu0
    %3041 = vdwg.mxu0
    %v3042 = vsub.f32 0.0, %v3039
    %v3043 = vmul.f32 %v3042, 1.442695
    %v3044 = vpow.pop %v3043
    %v3045 = vadd.f32 %v3044, 1.0
    %v3046 = vrcp.pop %v3045
    %v3047 = vmul.f32 1.0, %v3046
    %v3049 = vsel %vm237, %v3047, 0
    %3051 = vmatprep.subr.mxu0 %v932
    %3052 = vmatpush1.msra.mxu0 %v930
    %3053 = vmatprep.subr.mxu0 0.0
    %3054 = vmatpush1.msra.mxu0 0.0
    %3055 = vmatprep.subr.mxu0 0.0
    %3056 = vmatpush1.msra.mxu0 0.0
    %3057 = vmatprep.subr.mxu0 0.0
    %3058 = vmatpush1.msra.mxu0 0.0
    %3059 = vmatprep.subr.mxu0 0.0
    %3060 = vmatpush1.msra.mxu0 0.0
    %3061 = vmatprep.subr.mxu0 0.0
    %3062 = vmatpush1.msra.mxu0 0.0
    %3063 = vmatprep.subr.mxu0 0.0
    %3064 = vmatpush1.msra.mxu0 0.0
    %3065 = vmatprep.subr.mxu0 0.0
    %3066 = vmatpush1.msra.mxu0 0.0
    %3067 = vmatprep.subr.mxu0 0.0
    %3068 = vmatpush1.msra.mxu0 0.0
    %3069 = vmatprep.subr.mxu0 0.0
    %3070 = vmatpush1.msra.mxu0 0.0
    %3071 = vmatprep.subr.mxu0 0.0
    %3072 = vmatpush1.msra.mxu0 0.0
    %3073 = vmatprep.subr.mxu0 0.0
    %3074 = vmatpush1.msra.mxu0 0.0
    %3075 = vmatprep.subr.mxu0 0.0
    %3076 = vmatpush1.msra.mxu0 0.0
    %3077 = vmatprep.subr.mxu0 0.0
    %3078 = vmatpush1.msra.mxu0 0.0
    %3079 = vmatprep.subr.mxu0 0.0
    %3080 = vmatpush1.msra.mxu0 0.0
    %3081 = vmatprep.subr.mxu0 0.0
    %3082 = vmatpush1.msra.mxu0 0.0
    %3083 = vmatprep.subr.mxu0 0.0
    %3084 = vmatpush1.msra.mxu0 0.0
    %3085 = vmatprep.subr.mxu0 0.0
    %3086 = vmatpush1.msra.mxu0 0.0
    %3087 = vmatprep.subr.mxu0 0.0
    %3088 = vmatpush1.msra.mxu0 0.0
    %3089 = vmatprep.subr.mxu0 0.0
    %3090 = vmatpush1.msra.mxu0 0.0
    %3091 = vmatprep.subr.mxu0 0.0
    %3092 = vmatpush1.msra.mxu0 0.0
    %3093 = vmatprep.subr.mxu0 0.0
    %3094 = vmatpush1.msra.mxu0 0.0
    %3095 = vmatprep.subr.mxu0 0.0
    %3096 = vmatpush1.msra.mxu0 0.0
    %3097 = vmatprep.subr.mxu0 0.0
    %3098 = vmatpush1.msra.mxu0 0.0
    %3099 = vmatprep.subr.mxu0 0.0
    %3100 = vmatpush1.msra.mxu0 0.0
    %3101 = vmatprep.subr.mxu0 0.0
    %3102 = vmatpush1.msra.mxu0 0.0
    %3103 = vmatprep.subr.mxu0 0.0
    %3104 = vmatpush1.msra.mxu0 0.0
    %3105 = vmatprep.subr.mxu0 0.0
    %3106 = vmatpush1.msra.mxu0 0.0
    %3107 = vmatprep.subr.mxu0 0.0
    %3108 = vmatpush1.msra.mxu0 0.0
    %3109 = vmatprep.subr.mxu0 0.0
    %3110 = vmatpush1.msra.mxu0 0.0
    %3111 = vmatprep.subr.mxu0 0.0
    %3112 = vmatpush1.msra.mxu0 0.0
    %3113 = vmatprep.subr.mxu0 0.0
    %3114 = vmatpush1.msra.mxu0 0.0
    %3115 = vmatprep.mubr.f32.mxu0 0.0
    %3116 = vmatmul.mubr.f32.gmra.mrb[0].mxu0 %v3049
    %v3117 = vpop.f32.mrb[0].mxu0
    %v3118 = vadd.f32 0.0, %v3117
    %v3119 = vpop.f32.mrb[0].mxu0
    %v3120 = vadd.f32 0.0, %v3119
    %3121 = vdwg.mxu0
    %3122 = vmatprep.subr.mxu0 %v936
    %3123 = vmatpush1.msra.mxu0 %v934
    %3124 = vmatprep.subr.mxu0 0.0
    %3125 = vmatpush1.msra.mxu0 0.0
    %3126 = vmatprep.subr.mxu0 0.0
    %3127 = vmatpush1.msra.mxu0 0.0
    %3128 = vmatprep.subr.mxu0 0.0
    %3129 = vmatpush1.msra.mxu0 0.0
    %3130 = vmatprep.subr.mxu0 0.0
    %3131 = vmatpush1.msra.mxu0 0.0
    %3132 = vmatprep.subr.mxu0 0.0
    %3133 = vmatpush1.msra.mxu0 0.0
    %3134 = vmatprep.subr.mxu0 0.0
    %3135 = vmatpush1.msra.mxu0 0.0
    %3136 = vmatprep.subr.mxu0 0.0
    %3137 = vmatpush1.msra.mxu0 0.0
    %3138 = vmatprep.subr.mxu0 0.0
    %3139 = vmatpush1.msra.mxu0 0.0
    %3140 = vmatprep.subr.mxu0 0.0
    %3141 = vmatpush1.msra.mxu0 0.0
    %3142 = vmatprep.subr.mxu0 0.0
    %3143 = vmatpush1.msra.mxu0 0.0
    %3144 = vmatprep.subr.mxu0 0.0
    %3145 = vmatpush1.msra.mxu0 0.0
    %3146 = vmatprep.subr.mxu0 0.0
    %3147 = vmatpush1.msra.mxu0 0.0
    %3148 = vmatprep.subr.mxu0 0.0
    %3149 = vmatpush1.msra.mxu0 0.0
    %3150 = vmatprep.subr.mxu0 0.0
    %3151 = vmatpush1.msra.mxu0 0.0
    %3152 = vmatprep.subr.mxu0 0.0
    %3153 = vmatpush1.msra.mxu0 0.0
    %3154 = vmatprep.subr.mxu0 0.0
    %3155 = vmatpush1.msra.mxu0 0.0
    %3156 = vmatprep.subr.mxu0 0.0
    %3157 = vmatpush1.msra.mxu0 0.0
    %3158 = vmatprep.subr.mxu0 0.0
    %3159 = vmatpush1.msra.mxu0 0.0
    %3160 = vmatprep.subr.mxu0 0.0
    %3161 = vmatpush1.msra.mxu0 0.0
    %3162 = vmatprep.subr.mxu0 0.0
    %3163 = vmatpush1.msra.mxu0 0.0
    %3164 = vmatprep.subr.mxu0 0.0
    %3165 = vmatpush1.msra.mxu0 0.0
    %3166 = vmatprep.subr.mxu0 0.0
    %3167 = vmatpush1.msra.mxu0 0.0
    %3168 = vmatprep.subr.mxu0 0.0
    %3169 = vmatpush1.msra.mxu0 0.0
    %3170 = vmatprep.subr.mxu0 0.0
    %3171 = vmatpush1.msra.mxu0 0.0
    %3172 = vmatprep.subr.mxu0 0.0
    %3173 = vmatpush1.msra.mxu0 0.0
    %3174 = vmatprep.subr.mxu0 0.0
    %3175 = vmatpush1.msra.mxu0 0.0
    %3176 = vmatprep.subr.mxu0 0.0
    %3177 = vmatpush1.msra.mxu0 0.0
    %3178 = vmatprep.subr.mxu0 0.0
    %3179 = vmatpush1.msra.mxu0 0.0
    %3180 = vmatprep.subr.mxu0 0.0
    %3181 = vmatpush1.msra.mxu0 0.0
    %3182 = vmatprep.subr.mxu0 0.0
    %3183 = vmatpush1.msra.mxu0 0.0
    %3184 = vmatprep.subr.mxu0 0.0
    %3185 = vmatpush1.msra.mxu0 0.0
    %3186 = vmatprep.mubr.f32.mxu0 0.0
    %3187 = vmatmul.mubr.f32.gmra.mrb[0].mxu0 %v3049
    %v3188 = vpop.f32.mrb[0].mxu0
    %v3189 = vadd.f32 0.0, %v3188
    %v3190 = vpop.f32.mrb[0].mxu0
    %v3191 = vadd.f32 0.0, %v3190
    %3192 = vdwg.mxu0
    %v3193 = vmul.f32 %v2634, %v3118
    %v3194 = vmul.f32 %v2636, %v3120
    %v3195 = vmul.f32 %v2705, %v3189
    %v3196 = vmul.f32 %v2707, %v3191
    %3197 = vst [vmem:[#allocation2] sm:$0xff] %v3193
    %3198 = vst [vmem:[#allocation2 + $0x8] sm:$0xff] %v3194
    %3199 = vst [vmem:[#allocation2 + $0x10] sm:$0xff] %v3195
    %3200 = vst [vmem:[#allocation2 + $0x18] sm:$0xff] %v3196
    // Predicated region
    $region58: #{tpu_custom_call.1} parent=1 // pred_check
      _
    $region59: #{tpu_custom_call.1} parent=1 // pred_check_branch
      %3202 = sbr.rel (0) target = $region61
    $region60: #{tpu_custom_call.1} parent=1 // pred_region
      %s3204 = ssub.s32 512, 512
      %3205 = vsyncadd [#allocation3], %s3204
      %s3207 = sshll.u32 [#allocation2], 4
      %s3208 = int_to_ptr.vmem [resolvable:$true] %s3207
      %3210 = dma.vmem_to_hbm [thread:$0]  %s3208, 512, %s14, [#allocation3]
    $region61: #{tpu_custom_call.1} parent=1 // pred_fallthru
      _
    // Predicated region
    $region62: #{tpu_custom_call.1} parent=1 // pred_check
      _
    $region63: #{tpu_custom_call.1} parent=1 // pred_check_branch
      %3212 = sbr.rel (0) target = $region65
    $region64: #{tpu_custom_call.1} parent=1 // pred_region
      %3213 = dma.done [#allocation3], 512
    $region65: #{tpu_custom_call.1} parent=1 // pred_fallthru
      _
    %3214 = vsyncpa [#allocation3], 1

</llo_original>
